<compile_context>
chip_gen: v7x
topology: tpu7x:2x2x1
jax: 0.10.0
libtpu: 0.0.40
codegen_flags: <defaults>
</compile_context>

<pallas_src>
import functools
import numpy as np

import jax
import jax.numpy as jnp
from jax.experimental import pallas as pl
from jax.experimental.pallas import tpu as pltpu

H = W = 8                   # board is 8x8 (forced by .view(-1, 8*8) in the module)
CIN = 21                    # input planes
CIN_PAD = 128               # input channels padded only to 128 (not 256)
C = 256                     # trunk channels
N_RES = 13
N_LAYERS = 1 + 2 * N_RES    # 27 trunk convolutions
EPS = 1e-5                  # BatchNorm eps (PyTorch default)

_OFFSETS = tuple((dy, dx) for dy in (-1, 0, 1) for dx in (-1, 0, 1))  # ky*3+kx order
_VMEM = functools.partial(pl.BlockSpec, memory_space=pltpu.MemorySpace.VMEM)


# ----------------------------- Pallas kernels ------------------------------
def _trunk_kernel(x_ref, mask_ref, w_ref, shift_ref, wc_ref, cshift_ref,
                  v_ref, act_ref, res_ref):
    """One grid step == one of the 27 trunk convs for one batch block.

    x_ref      (RB, 128)         bf16 channel-padded NHWC input rows (used at l==0)
    mask_ref   (RB, 9)           bf16 board-edge masks (layer/block invariant)
    w_ref      (1, 9, 256, 256)  bf16 streamed weights of layer l (BN scale folded)
    shift_ref  (1, 1, 256)       f32  folded BN shift (+conv bias) of layer l
    wc_ref     (256, 1)          f32  critic 1x1 conv weight (BN scale folded in)
    cshift_ref (1, 1)            f32  critic folded BN shift
    v_ref      (RB, 1)           f32  out: ReLU(BN(conv1x1(y))), written at last l
    act_ref    (RB, 256)         f32  VMEM-resident activation
    res_ref    (RB, 256)         f32  VMEM-resident residual
    """
    l = pl.program_id(1)
    last = pl.num_programs(1) - 1
    rows = act_ref.shape[0]

    @pl.when(l == 0)
    def _():                                  # load input into the resident act
        act_ref[:, :CIN_PAD] = x_ref[...].astype(jnp.float32)
        act_ref[:, CIN_PAD:] = jnp.zeros((rows, C - CIN_PAD), jnp.float32)

    @pl.when(l % 2 == 1)
    def _():                                  # first conv of a ResBlock
        res_ref[...] = act_ref[...]

    act = act_ref[...]                        # (RB, 256) f32
    masks = mask_ref[...]                     # (RB, 9)   bf16 {0, 1}

    # In-kernel im2col as 9 accumulating K=256 MXU matmuls (no big LHS tensor):
    # shifted + edge-masked bf16 copies of the activation feed the MXU directly.
    acc = None
    for k, (dy, dx) in enumerate(_OFFSETS):
        off = dy * W + dx
        shifted = act if off == 0 else pltpu.roll(act, (-off) % rows, axis=0)
        chunk = shifted.astype(jnp.bfloat16) * masks[:, k:k + 1]
        d = jnp.dot(chunk, w_ref[0, k], preferred_element_type=jnp.float32)
        acc = d if acc is None else acc + d

    y = acc + shift_ref[0]                    # BN scale already in the weights

    # Fused epilogue: exactly one full (RB, 256) store per layer.
    is_second = (l >= 2) & (l % 2 == 0)

    @pl.when(is_second)
    def _():                                  # second conv of a ResBlock
        act_ref[...] = jnp.maximum(y + res_ref[...], 0.0)

    @pl.when(jnp.logical_not(is_second))
    def _():                                  # conv1 / first conv of a ResBlock
        act_ref[...] = jnp.maximum(y, 0.0)

    @pl.when(l == last)
    def _():                                  # fused critic 1x1 conv + BN + ReLU
        v = jnp.dot(act_ref[...], wc_ref[...], preferred_element_type=jnp.float32)
        v_ref[...] = jnp.maximum(v + cshift_ref[...], 0.0)


def _head_kernel(v_ref, w1t_ref, b1_ref, w2t_ref, b2_ref, out_ref):
    """Critic fc1 + ReLU, fc2 + tanh, batched over all boards at once."""
    h = jnp.dot(v_ref[...], w1t_ref[...], preferred_element_type=jnp.float32)
    h = jnp.maximum(h + b1_ref[...], 0.0)                         # (B, 64)
    o = jnp.dot(h, w2t_ref[...], preferred_element_type=jnp.float32) + b2_ref[...]
    out_ref[...] = jnp.tanh(o)                                    # (B, 1)


# ------------------------------- forward -----------------------------------
@jax.jit
def value_network_forward(x_nchw, params):
    """x_nchw: (B, 21, 8, 8) f32 (PyTorch NCHW).  Returns (B,) values in [-1, 1]."""
    batch = x_nchw.shape[0]

    # NCHW -> NHWC, zero-pad channels 21 -> 128, cast to bf16 (cheap input DMA).
    x = jnp.transpose(x_nchw, (0, 2, 3, 1))
    x = jnp.pad(x, ((0, 0), (0, 0), (0, 0), (0, CIN_PAD - CIN))).astype(jnp.bfloat16)

    # Batch blocking: big blocks amortize weight streaming + grid-step overhead;
    # for small batches use two blocks so the "parallel" axis feeds both v7x TCs.
    if batch <= 1:
        bb = 1
    elif batch <= 64:
        bb = (batch + 1) // 2
    else:
        bb = 32
    padded_batch = ((batch + bb - 1) // bb) * bb
    if padded_batch != batch:
        x = jnp.pad(x, ((0, padded_batch - batch), (0, 0), (0, 0), (0, 0)))
    rows_per_block = bb * H * W
    n_blocks = padded_batch // bb
    rows = x.reshape(padded_batch * H * W, CIN_PAD)

    # Layer/block-invariant 3x3 edge masks, hoisted out of the kernel
    # (constant-folded by XLA; rows are in (sample, h, w) order).
    r = jnp.arange(rows_per_block)
    hh = (r % (H * W)) // W
    ww = r % W
    mask = jnp.stack(
        [(hh + dy >= 0) & (hh + dy < H) & (ww + dx >= 0) & (ww + dx < W)
         for dy, dx in _OFFSETS], axis=1).astype(jnp.bfloat16)    # (RB, 9)

    v = pl.pallas_call(
        _trunk_kernel,
        out_shape=jax.ShapeDtypeStruct((padded_batch * H * W, 1), jnp.float32),
        grid_spec=pltpu.PrefetchScalarGridSpec(
            num_scalar_prefetch=0,
            grid=(n_blocks, N_LAYERS),
            in_specs=[
                pl.BlockSpec((rows_per_block, CIN_PAD), lambda b, l: (b, 0)),  # x
                pl.BlockSpec((rows_per_block, 9), lambda b, l: (0, 0)),        # masks
                pl.BlockSpec((1, 9, C, C), lambda b, l: (l, 0, 0, 0)),         # weights
                pl.BlockSpec((1, 1, C), lambda b, l: (l, 0, 0)),               # BN shift
                pl.BlockSpec((C, 1), lambda b, l: (0, 0)),                     # head wc
                pl.BlockSpec((1, 1), lambda b, l: (0, 0)),                     # head shift
            ],
            out_specs=pl.BlockSpec((rows_per_block, 1), lambda b, l: (b, 0)),
            scratch_shapes=[pltpu.VMEM((rows_per_block, C), jnp.float32),   # act
                            pltpu.VMEM((rows_per_block, C), jnp.float32)],  # residual
        ),
        compiler_params=pltpu.CompilerParams(
            dimension_semantics=("parallel", "arbitrary"),
            vmem_limit_bytes=48 * 1024 * 1024),
    )(rows, mask, params["w_stack"], params["shift_stack"],
      params["wc"], params["cshift"])

    v = v.reshape(padded_batch, H * W)[:batch]                    # (B, 64)

    out = pl.pallas_call(
        _head_kernel,
        out_shape=jax.ShapeDtypeStruct((batch, 1), jnp.float32),
        in_specs=[_VMEM()] * 5,
        out_specs=_VMEM(),
    )(v, params["w1t"], params["b1"], params["w2t"], params["b2"])
    return out[:, 0]                                              # torch .squeeze(1)


# --------------------------- parameter handling -----------------------------
def _fold_bn(gamma, beta, mean, var, conv_bias=None):
    scale = gamma * jax.lax.rsqrt(var + EPS)
    bias = jnp.zeros_like(mean) if conv_bias is None else conv_bias
    shift = beta + scale * (bias - mean)
    return scale, shift


def pack_params(raw):
    """PyTorch-layout parameters -> Pallas tensors (BN scale folded into bf16 weights)."""
    w_list, sh_list = [], []

    # conv1: HWIO (3,3,21,256), Cin zero-padded to 256; bias folded into BN shift.
    s, sh = _fold_bn(*raw["bn1"], conv_bias=raw["conv1_b"])
    w0 = jnp.zeros((3, 3, C, C), jnp.float32).at[:, :, :CIN, :].set(raw["conv1_w"])
    w_list.append((w0 * s).reshape(9, C, C))
    sh_list.append(sh)

    for (w_a, bn_a), (w_b, bn_b) in raw["res"]:
        for w, bn in ((w_a, bn_a), (w_b, bn_b)):
            s, sh = _fold_bn(*bn)
            w_list.append((w * s).reshape(9, C, C))
            sh_list.append(sh)

    cscale, cshift = _fold_bn(*raw["bn_c"], conv_bias=raw["head_cb"])
    return {
        "w_stack": jnp.stack(w_list).astype(jnp.bfloat16),        # (27, 9, 256, 256)
        "shift_stack": jnp.stack(sh_list)[:, None, :],            # (27, 1, 256) f32
        "wc": (raw["head_wc"] * cscale[0]).reshape(C, 1),         # BN scale folded in
        "cshift": cshift.reshape(1, 1),
        "w1t": raw["fc1_w"].T, "b1": raw["fc1_b"].reshape(1, H * W),
        "w2t": raw["fc2_w"].T, "b2": raw["fc2_b"].reshape(1, 1),
    }


def init_params(key):
    """Deterministic eval-mode parameters (PyTorch layout) + packed Pallas params."""
    keys = iter(jax.random.split(key, 64))

    def bn(c):
        k1, k2, k3, k4 = jax.random.split(next(keys), 4)
        return (1.0 + 0.1 * jax.random.normal(k1, (c,), jnp.float32),   # gamma
                0.1 * jax.random.normal(k2, (c,), jnp.float32),         # beta
                0.1 * jax.random.normal(k3, (c,), jnp.float32),         # running_mean
                jax.random.uniform(k4, (c,), jnp.float32, 0.5, 1.5))    # running_var

    raw = {
        "conv1_w": 0.08 * jax.random.normal(next(keys), (3, 3, CIN, C), jnp.float32),
        "conv1_b": 0.05 * jax.random.normal(next(keys), (C,), jnp.float32),
        "bn1": bn(C),
        "res": [],
        "head_wc": 0.06 * jax.random.normal(next(keys), (C,), jnp.float32),
        "head_cb": 0.05 * jax.random.normal(next(keys), (1,), jnp.float32),
        "bn_c": bn(1),
        "fc1_w": 0.05 * jax.random.normal(next(keys), (H * W, H * W), jnp.float32),
        "fc1_b": 0.05 * jax.random.normal(next(keys), (H * W,), jnp.float32),
        "fc2_w": 0.1 * jax.random.normal(next(keys), (1, H * W), jnp.float32),
        "fc2_b": 0.05 * jax.random.normal(next(keys), (1,), jnp.float32),
    }
    for _ in range(N_RES):
        raw["res"].append(tuple(
            (0.02 * jax.random.normal(next(keys), (3, 3, C, C), jnp.float32), bn(C))
            for _ in range(2)))
    return pack_params(raw), raw


# ----------------------------- pure-JAX reference ---------------------------
def reference_forward(x_nchw, raw):
    """Plain-JAX reference of the torch module (eval-mode BN folded, bf16 convs)."""
    hi = jax.lax.Precision.HIGHEST

    def conv_bn_relu(x, w_hwio, bn, conv_bias=None, residual=None):
        scale, shift = _fold_bn(*bn, conv_bias=conv_bias)
        w = (w_hwio * scale).astype(jnp.bfloat16)     # BN scale folded pre-bf16-cast
        y = jax.lax.conv_general_dilated(
            x.astype(jnp.bfloat16), w, (1, 1), "SAME",
            dimension_numbers=("NHWC", "HWIO", "NHWC"),
            preferred_element_type=jnp.float32)
        y = y + shift
        if residual is not None:
            y = y + residual
        return jnp.maximum(y, 0.0)

    x = jnp.transpose(x_nchw, (0, 2, 3, 1)).astype(jnp.float32)   # NHWC
    y = conv_bn_relu(x, raw["conv1_w"], raw["bn1"], conv_bias=raw["conv1_b"])
    for (w_a, bn_a), (w_b, bn_b) in raw["res"]:
        res = y
        y = conv_bn_relu(y, w_a, bn_a)
        y = conv_bn_relu(y, w_b, bn_b, residual=res)

    cscale, cshift = _fold_bn(*raw["bn_c"], conv_bias=raw["head_cb"])
    v = jnp.einsum("bhwc,c->bhw", y, raw["head_wc"] * cscale[0], precision=hi)
    v = jnp.maximum(v + cshift[0], 0.0).reshape(x.shape[0], H * W)
    h1 = jnp.maximum(jnp.dot(v, raw["fc1_w"].T, precision=hi) + raw["fc1_b"], 0.0)
    return jnp.tanh(jnp.dot(h1, raw["fc2_w"].T, precision=hi) + raw["fc2_b"])[:, 0]


if __name__ == "__main__":
    key = jax.random.PRNGKey(0)
    pkey, xkey = jax.random.split(key)
    params, raw = init_params(pkey)

    # batch=3 -> bb=2, 2 batch blocks, padded batch of 4: exercises multi-sample
    # blocks (cross-sample roll masking), multiple grid blocks, and batch padding.
    x = jax.random.normal(xkey, (3, CIN, H, W), jnp.float32)      # NCHW like PyTorch

    out = jax.block_until_ready(value_network_forward(x, params))
    assert out.shape == (3,), out.shape
    assert bool(jnp.all(jnp.isfinite(out)))
    assert bool(jnp.all(jnp.abs(out) <= 1.0))

    # Cross-check against the plain-JAX reference of the torch module.
    ref = jax.block_until_ready(reference_forward(x, raw))
    np.testing.assert_allclose(np.asarray(out), np.asarray(ref), atol=2e-2, rtol=0)
    print("KERNEL_OK")
</pallas_src>

<mosaic_0001>
module attributes {stable_mosaic.version = 11 : i64} {
  func.func @_trunk_kernel(%arg0: i32, %arg1: i32, %arg2: memref<128x128xbf16, #tpu.memory_space<vmem>>, %arg3: memref<128x9xbf16, #tpu.memory_space<vmem>>, %arg4: memref<1x9x256x256xbf16, #tpu.memory_space<vmem>>, %arg5: memref<1x1x256xf32, #tpu.memory_space<vmem>>, %arg6: memref<256x1xf32, #tpu.memory_space<vmem>>, %arg7: memref<1x1xf32, #tpu.memory_space<vmem>>, %arg8: memref<128x1xf32, #tpu.memory_space<vmem>>, %arg9: memref<128x256xf32, #tpu.memory_space<vmem>>, %arg10: memref<128x256xf32, #tpu.memory_space<vmem>>) attributes {dimension_semantics = [#tpu.dimension_semantics<parallel>, #tpu.dimension_semantics<arbitrary>], iteration_bounds = array<i64: 2, 27>, scalar_prefetch = 0 : i64, scratch_operands = 2 : i64, tpu.core_type = #tpu.core_type<tc>, window_params = [{transform_indices = @transform_0, window_bounds = array<i64: 128, 128>}, {pipeline_mode = #tpu.pipeline_mode<synchronous>, transform_indices = @transform_1, window_bounds = array<i64: 128, 9>}, {transform_indices = @transform_2, window_bounds = array<i64: 1, 9, 256, 256>}, {transform_indices = @transform_3, window_bounds = array<i64: 1, 1, 256>}, {pipeline_mode = #tpu.pipeline_mode<synchronous>, transform_indices = @transform_4, window_bounds = array<i64: 256, 1>}, {pipeline_mode = #tpu.pipeline_mode<synchronous>, transform_indices = @transform_5, window_bounds = array<i64: 1, 1>}, {transform_indices = @transform_6, window_bounds = array<i64: 128, 1>}]} {
    %c0_i32 = arith.constant 0 : i32
    %0 = arith.cmpi eq, %arg1, %c0_i32 : i32
    %1 = arith.extui %0 : i1 to i32
    %c0_i32_0 = arith.constant 0 : i32
    %2 = arith.cmpi ne, %1, %c0_i32_0 : i32
    scf.if %2 {
      %c0_61 = arith.constant 0 : index
      %c0_62 = arith.constant 0 : index
      %122 = vector.load %arg2[%c0_61, %c0_62] : memref<128x128xbf16, #tpu.memory_space<vmem>>, vector<128x128xbf16>
      %123 = arith.extf %122 : vector<128x128xbf16> to vector<128x128xf32>
      %c0_63 = arith.constant 0 : index
      %c0_64 = arith.constant 0 : index
      %124 = vector.load %arg9[%c0_63, %c0_64] : memref<128x256xf32, #tpu.memory_space<vmem>>, vector<128x128xf32>
      tpu.vector_store %arg9[%c0_63, %c0_64], %123 {strides = array<i32>} : memref<128x256xf32, #tpu.memory_space<vmem>>, vector<128x128xf32>,
      %cst_65 = arith.constant 0.000000e+00 : f32
      %125 = vector.broadcast %cst_65 : f32 to vector<128x128xf32>
      %c0_66 = arith.constant 0 : index
      %c128 = arith.constant 128 : index
      %126 = vector.load %arg9[%c0_66, %c128] : memref<128x256xf32, #tpu.memory_space<vmem>>, vector<128x128xf32>
      tpu.vector_store %arg9[%c0_66, %c128], %125 {strides = array<i32>} : memref<128x256xf32, #tpu.memory_space<vmem>>, vector<128x128xf32>,
    } else {
    }
    %c2_i32 = arith.constant 2 : i32
    %c0_i32_1 = arith.constant 0 : i32
    %3 = arith.cmpi eq, %c2_i32, %c0_i32_1 : i32
    %c1_i32 = arith.constant 1 : i32
    %4 = arith.select %3, %c1_i32, %c2_i32 : i32
    %5 = arith.remsi %arg1, %4 : i32
    %c0_i32_2 = arith.constant 0 : i32
    %6 = arith.cmpi ne, %5, %c0_i32_2 : i32
    %c0_i32_3 = arith.constant 0 : i32
    %7 = arith.cmpi slt, %5, %c0_i32_3 : i32
    %c0_i32_4 = arith.constant 0 : i32
    %8 = arith.cmpi slt, %4, %c0_i32_4 : i32
    %9 = arith.xori %7, %8 : i1
    %10 = arith.andi %9, %6 : i1
    %11 = arith.addi %5, %4 : i32
    %12 = arith.select %10, %11, %5 : i32
    %c1_i32_5 = arith.constant 1 : i32
    %13 = arith.cmpi eq, %12, %c1_i32_5 : i32
    %14 = arith.extui %13 : i1 to i32
    %c0_i32_6 = arith.constant 0 : i32
    %15 = arith.cmpi ne, %14, %c0_i32_6 : i32
    scf.if %15 {
      %c0_61 = arith.constant 0 : index
      %c0_62 = arith.constant 0 : index
      %122 = vector.load %arg9[%c0_61, %c0_62] : memref<128x256xf32, #tpu.memory_space<vmem>>, vector<128x256xf32>
      %c0_63 = arith.constant 0 : index
      %c0_64 = arith.constant 0 : index
      %123 = vector.load %arg10[%c0_63, %c0_64] : memref<128x256xf32, #tpu.memory_space<vmem>>, vector<128x256xf32>
      tpu.vector_store %arg10[%c0_63, %c0_64], %122 {strides = array<i32>} : memref<128x256xf32, #tpu.memory_space<vmem>>, vector<128x256xf32>,
    } else {
    }
    %c0 = arith.constant 0 : index
    %c0_7 = arith.constant 0 : index
    %16 = vector.load %arg9[%c0, %c0_7] : memref<128x256xf32, #tpu.memory_space<vmem>>, vector<128x256xf32>
    %c0_8 = arith.constant 0 : index
    %c0_9 = arith.constant 0 : index
    %17 = vector.load %arg3[%c0_8, %c0_9] : memref<128x9xbf16, #tpu.memory_space<vmem>>, vector<128x9xbf16>
    %c9_i32 = arith.constant 9 : i32
    %18 = tpu.dynamic_rotate %16 by %c9_i32 dim 0 : vector<128x256xf32>, i32 -> vector<128x256xf32>
    %19 = arith.truncf %18 : vector<128x256xf32> to vector<128x256xbf16>
    %20 = vector.extract_strided_slice %17 {offsets = [0, 0], sizes = [128, 1], strides = [1, 1]} : vector<128x9xbf16> to vector<128x1xbf16>
    %21 = vector.broadcast %20 : vector<128x1xbf16> to vector<128x256xbf16>
    %22 = arith.mulf %19, %21 : vector<128x256xbf16>
    %c0_10 = arith.constant 0 : index
    %c0_11 = arith.constant 0 : index
    %c0_12 = arith.constant 0 : index
    %c0_13 = arith.constant 0 : index
    %23 = vector.load %arg4[%c0_10, %c0_11, %c0_12, %c0_13] : memref<1x9x256x256xbf16, #tpu.memory_space<vmem>>, vector<1x1x256x256xbf16>
    %24 = vector.shape_cast %23 : vector<1x1x256x256xbf16> to vector<256x256xbf16>
    %cst = arith.constant dense<0.000000e+00> : vector<128x256xf32>
    %25 = tpu.matmul %22, %24, %cst {dimension_numbers = #tpu.dot_dimension_numbers<[1], [0], [0], [1], [0, 0, 1, 1], [], []>} : vector<128x256xbf16>, vector<256x256xbf16>, vector<128x256xf32> -> vector<128x256xf32>
    %c8_i32 = arith.constant 8 : i32
    %26 = tpu.dynamic_rotate %16 by %c8_i32 dim 0 : vector<128x256xf32>, i32 -> vector<128x256xf32>
    %27 = arith.truncf %26 : vector<128x256xf32> to vector<128x256xbf16>
    %28 = vector.extract_strided_slice %17 {offsets = [0, 1], sizes = [128, 1], strides = [1, 1]} : vector<128x9xbf16> to vector<128x1xbf16>
    %29 = vector.broadcast %28 : vector<128x1xbf16> to vector<128x256xbf16>
    %30 = arith.mulf %27, %29 : vector<128x256xbf16>
    %c0_14 = arith.constant 0 : index
    %c1 = arith.constant 1 : index
    %c0_15 = arith.constant 0 : index
    %c0_16 = arith.constant 0 : index
    %31 = vector.load %arg4[%c0_14, %c1, %c0_15, %c0_16] : memref<1x9x256x256xbf16, #tpu.memory_space<vmem>>, vector<1x1x256x256xbf16>
    %32 = vector.shape_cast %31 : vector<1x1x256x256xbf16> to vector<256x256xbf16>
    %cst_17 = arith.constant dense<0.000000e+00> : vector<128x256xf32>
    %33 = tpu.matmul %30, %32, %cst_17 {dimension_numbers = #tpu.dot_dimension_numbers<[1], [0], [0], [1], [0, 0, 1, 1], [], []>} : vector<128x256xbf16>, vector<256x256xbf16>, vector<128x256xf32> -> vector<128x256xf32>
    %34 = arith.addf %25, %33 : vector<128x256xf32>
    %c7_i32 = arith.constant 7 : i32
    %35 = tpu.dynamic_rotate %16 by %c7_i32 dim 0 : vector<128x256xf32>, i32 -> vector<128x256xf32>
    %36 = arith.truncf %35 : vector<128x256xf32> to vector<128x256xbf16>
    %37 = vector.extract_strided_slice %17 {offsets = [0, 2], sizes = [128, 1], strides = [1, 1]} : vector<128x9xbf16> to vector<128x1xbf16>
    %38 = vector.broadcast %37 : vector<128x1xbf16> to vector<128x256xbf16>
    %39 = arith.mulf %36, %38 : vector<128x256xbf16>
    %c0_18 = arith.constant 0 : index
    %c2 = arith.constant 2 : index
    %c0_19 = arith.constant 0 : index
    %c0_20 = arith.constant 0 : index
    %40 = vector.load %arg4[%c0_18, %c2, %c0_19, %c0_20] : memref<1x9x256x256xbf16, #tpu.memory_space<vmem>>, vector<1x1x256x256xbf16>
    %41 = vector.shape_cast %40 : vector<1x1x256x256xbf16> to vector<256x256xbf16>
    %cst_21 = arith.constant dense<0.000000e+00> : vector<128x256xf32>
    %42 = tpu.matmul %39, %41, %cst_21 {dimension_numbers = #tpu.dot_dimension_numbers<[1], [0], [0], [1], [0, 0, 1, 1], [], []>} : vector<128x256xbf16>, vector<256x256xbf16>, vector<128x256xf32> -> vector<128x256xf32>
    %43 = arith.addf %34, %42 : vector<128x256xf32>
    %c1_i32_22 = arith.constant 1 : i32
    %44 = tpu.dynamic_rotate %16 by %c1_i32_22 dim 0 : vector<128x256xf32>, i32 -> vector<128x256xf32>
    %45 = arith.truncf %44 : vector<128x256xf32> to vector<128x256xbf16>
    %46 = vector.extract_strided_slice %17 {offsets = [0, 3], sizes = [128, 1], strides = [1, 1]} : vector<128x9xbf16> to vector<128x1xbf16>
    %47 = vector.broadcast %46 : vector<128x1xbf16> to vector<128x256xbf16>
    %48 = arith.mulf %45, %47 : vector<128x256xbf16>
    %c0_23 = arith.constant 0 : index
    %c3 = arith.constant 3 : index
    %c0_24 = arith.constant 0 : index
    %c0_25 = arith.constant 0 : index
    %49 = vector.load %arg4[%c0_23, %c3, %c0_24, %c0_25] : memref<1x9x256x256xbf16, #tpu.memory_space<vmem>>, vector<1x1x256x256xbf16>
    %50 = vector.shape_cast %49 : vector<1x1x256x256xbf16> to vector<256x256xbf16>
    %cst_26 = arith.constant dense<0.000000e+00> : vector<128x256xf32>
    %51 = tpu.matmul %48, %50, %cst_26 {dimension_numbers = #tpu.dot_dimension_numbers<[1], [0], [0], [1], [0, 0, 1, 1], [], []>} : vector<128x256xbf16>, vector<256x256xbf16>, vector<128x256xf32> -> vector<128x256xf32>
    %52 = arith.addf %43, %51 : vector<128x256xf32>
    %53 = arith.truncf %16 : vector<128x256xf32> to vector<128x256xbf16>
    %54 = vector.extract_strided_slice %17 {offsets = [0, 4], sizes = [128, 1], strides = [1, 1]} : vector<128x9xbf16> to vector<128x1xbf16>
    %55 = vector.broadcast %54 : vector<128x1xbf16> to vector<128x256xbf16>
    %56 = arith.mulf %53, %55 : vector<128x256xbf16>
    %c0_27 = arith.constant 0 : index
    %c4 = arith.constant 4 : index
    %c0_28 = arith.constant 0 : index
    %c0_29 = arith.constant 0 : index
    %57 = vector.load %arg4[%c0_27, %c4, %c0_28, %c0_29] : memref<1x9x256x256xbf16, #tpu.memory_space<vmem>>, vector<1x1x256x256xbf16>
    %58 = vector.shape_cast %57 : vector<1x1x256x256xbf16> to vector<256x256xbf16>
    %cst_30 = arith.constant dense<0.000000e+00> : vector<128x256xf32>
    %59 = tpu.matmul %56, %58, %cst_30 {dimension_numbers = #tpu.dot_dimension_numbers<[1], [0], [0], [1], [0, 0, 1, 1], [], []>} : vector<128x256xbf16>, vector<256x256xbf16>, vector<128x256xf32> -> vector<128x256xf32>
    %60 = arith.addf %52, %59 : vector<128x256xf32>
    %c127_i32 = arith.constant 127 : i32
    %61 = tpu.dynamic_rotate %16 by %c127_i32 dim 0 : vector<128x256xf32>, i32 -> vector<128x256xf32>
    %62 = arith.truncf %61 : vector<128x256xf32> to vector<128x256xbf16>
    %63 = vector.extract_strided_slice %17 {offsets = [0, 5], sizes = [128, 1], strides = [1, 1]} : vector<128x9xbf16> to vector<128x1xbf16>
    %64 = vector.broadcast %63 : vector<128x1xbf16> to vector<128x256xbf16>
    %65 = arith.mulf %62, %64 : vector<128x256xbf16>
    %c0_31 = arith.constant 0 : index
    %c5 = arith.constant 5 : index
    %c0_32 = arith.constant 0 : index
    %c0_33 = arith.constant 0 : index
    %66 = vector.load %arg4[%c0_31, %c5, %c0_32, %c0_33] : memref<1x9x256x256xbf16, #tpu.memory_space<vmem>>, vector<1x1x256x256xbf16>
    %67 = vector.shape_cast %66 : vector<1x1x256x256xbf16> to vector<256x256xbf16>
    %cst_34 = arith.constant dense<0.000000e+00> : vector<128x256xf32>
    %68 = tpu.matmul %65, %67, %cst_34 {dimension_numbers = #tpu.dot_dimension_numbers<[1], [0], [0], [1], [0, 0, 1, 1], [], []>} : vector<128x256xbf16>, vector<256x256xbf16>, vector<128x256xf32> -> vector<128x256xf32>
    %69 = arith.addf %60, %68 : vector<128x256xf32>
    %c121_i32 = arith.constant 121 : i32
    %70 = tpu.dynamic_rotate %16 by %c121_i32 dim 0 : vector<128x256xf32>, i32 -> vector<128x256xf32>
    %71 = arith.truncf %70 : vector<128x256xf32> to vector<128x256xbf16>
    %72 = vector.extract_strided_slice %17 {offsets = [0, 6], sizes = [128, 1], strides = [1, 1]} : vector<128x9xbf16> to vector<128x1xbf16>
    %73 = vector.broadcast %72 : vector<128x1xbf16> to vector<128x256xbf16>
    %74 = arith.mulf %71, %73 : vector<128x256xbf16>
    %c0_35 = arith.constant 0 : index
    %c6 = arith.constant 6 : index
    %c0_36 = arith.constant 0 : index
    %c0_37 = arith.constant 0 : index
    %75 = vector.load %arg4[%c0_35, %c6, %c0_36, %c0_37] : memref<1x9x256x256xbf16, #tpu.memory_space<vmem>>, vector<1x1x256x256xbf16>
    %76 = vector.shape_cast %75 : vector<1x1x256x256xbf16> to vector<256x256xbf16>
    %cst_38 = arith.constant dense<0.000000e+00> : vector<128x256xf32>
    %77 = tpu.matmul %74, %76, %cst_38 {dimension_numbers = #tpu.dot_dimension_numbers<[1], [0], [0], [1], [0, 0, 1, 1], [], []>} : vector<128x256xbf16>, vector<256x256xbf16>, vector<128x256xf32> -> vector<128x256xf32>
    %78 = arith.addf %69, %77 : vector<128x256xf32>
    %c120_i32 = arith.constant 120 : i32
    %79 = tpu.dynamic_rotate %16 by %c120_i32 dim 0 : vector<128x256xf32>, i32 -> vector<128x256xf32>
    %80 = arith.truncf %79 : vector<128x256xf32> to vector<128x256xbf16>
    %81 = vector.extract_strided_slice %17 {offsets = [0, 7], sizes = [128, 1], strides = [1, 1]} : vector<128x9xbf16> to vector<128x1xbf16>
    %82 = vector.broadcast %81 : vector<128x1xbf16> to vector<128x256xbf16>
    %83 = arith.mulf %80, %82 : vector<128x256xbf16>
    %c0_39 = arith.constant 0 : index
    %c7 = arith.constant 7 : index
    %c0_40 = arith.constant 0 : index
    %c0_41 = arith.constant 0 : index
    %84 = vector.load %arg4[%c0_39, %c7, %c0_40, %c0_41] : memref<1x9x256x256xbf16, #tpu.memory_space<vmem>>, vector<1x1x256x256xbf16>
    %85 = vector.shape_cast %84 : vector<1x1x256x256xbf16> to vector<256x256xbf16>
    %cst_42 = arith.constant dense<0.000000e+00> : vector<128x256xf32>
    %86 = tpu.matmul %83, %85, %cst_42 {dimension_numbers = #tpu.dot_dimension_numbers<[1], [0], [0], [1], [0, 0, 1, 1], [], []>} : vector<128x256xbf16>, vector<256x256xbf16>, vector<128x256xf32> -> vector<128x256xf32>
    %87 = arith.addf %78, %86 : vector<128x256xf32>
    %c119_i32 = arith.constant 119 : i32
    %88 = tpu.dynamic_rotate %16 by %c119_i32 dim 0 : vector<128x256xf32>, i32 -> vector<128x256xf32>
    %89 = arith.truncf %88 : vector<128x256xf32> to vector<128x256xbf16>
    %90 = vector.extract_strided_slice %17 {offsets = [0, 8], sizes = [128, 1], strides = [1, 1]} : vector<128x9xbf16> to vector<128x1xbf16>
    %91 = vector.broadcast %90 : vector<128x1xbf16> to vector<128x256xbf16>
    %92 = arith.mulf %89, %91 : vector<128x256xbf16>
    %c0_43 = arith.constant 0 : index
    %c8 = arith.constant 8 : index
    %c0_44 = arith.constant 0 : index
    %c0_45 = arith.constant 0 : index
    %93 = vector.load %arg4[%c0_43, %c8, %c0_44, %c0_45] : memref<1x9x256x256xbf16, #tpu.memory_space<vmem>>, vector<1x1x256x256xbf16>
    %94 = vector.shape_cast %93 : vector<1x1x256x256xbf16> to vector<256x256xbf16>
    %cst_46 = arith.constant dense<0.000000e+00> : vector<128x256xf32>
    %95 = tpu.matmul %92, %94, %cst_46 {dimension_numbers = #tpu.dot_dimension_numbers<[1], [0], [0], [1], [0, 0, 1, 1], [], []>} : vector<128x256xbf16>, vector<256x256xbf16>, vector<128x256xf32> -> vector<128x256xf32>
    %96 = arith.addf %87, %95 : vector<128x256xf32>
    %c0_47 = arith.constant 0 : index
    %c0_48 = arith.constant 0 : index
    %c0_49 = arith.constant 0 : index
    %97 = vector.load %arg5[%c0_47, %c0_48, %c0_49] : memref<1x1x256xf32, #tpu.memory_space<vmem>>, vector<1x1x256xf32>
    %98 = vector.shape_cast %97 : vector<1x1x256xf32> to vector<1x256xf32>
    %99 = vector.broadcast %98 : vector<1x256xf32> to vector<128x256xf32>
    %100 = arith.addf %96, %99 : vector<128x256xf32>
    %c2_i32_50 = arith.constant 2 : i32
    %101 = arith.cmpi sge, %arg1, %c2_i32_50 : i32
    %c2_i32_51 = arith.constant 2 : i32
    %c0_i32_52 = arith.constant 0 : i32
    %102 = arith.cmpi eq, %c2_i32_51, %c0_i32_52 : i32
    %c1_i32_53 = arith.constant 1 : i32
    %103 = arith.select %102, %c1_i32_53, %c2_i32_51 : i32
    %104 = arith.remsi %arg1, %103 : i32
    %c0_i32_54 = arith.constant 0 : i32
    %105 = arith.cmpi ne, %104, %c0_i32_54 : i32
    %c0_i32_55 = arith.constant 0 : i32
    %106 = arith.cmpi slt, %104, %c0_i32_55 : i32
    %c0_i32_56 = arith.constant 0 : i32
    %107 = arith.cmpi slt, %103, %c0_i32_56 : i32
    %108 = arith.xori %106, %107 : i1
    %109 = arith.andi %108, %105 : i1
    %110 = arith.addi %104, %103 : i32
    %111 = arith.select %109, %110, %104 : i32
    %c0_i32_57 = arith.constant 0 : i32
    %112 = arith.cmpi eq, %111, %c0_i32_57 : i32
    %113 = arith.andi %101, %112 : i1
    %114 = arith.extui %113 : i1 to i32
    %c0_i32_58 = arith.constant 0 : i32
    %115 = arith.cmpi ne, %114, %c0_i32_58 : i32
    scf.if %115 {
      %c0_61 = arith.constant 0 : index
      %c0_62 = arith.constant 0 : index
      %122 = vector.load %arg10[%c0_61, %c0_62] : memref<128x256xf32, #tpu.memory_space<vmem>>, vector<128x256xf32>
      %123 = arith.addf %100, %122 : vector<128x256xf32>
      %cst_63 = arith.constant 0.000000e+00 : f32
      %124 = vector.broadcast %cst_63 : f32 to vector<128x256xf32>
      %125 = arith.maximumf %123, %124 : vector<128x256xf32>
      %c0_64 = arith.constant 0 : index
      %c0_65 = arith.constant 0 : index
      %126 = vector.load %arg9[%c0_64, %c0_65] : memref<128x256xf32, #tpu.memory_space<vmem>>, vector<128x256xf32>
      tpu.vector_store %arg9[%c0_64, %c0_65], %125 {strides = array<i32>} : memref<128x256xf32, #tpu.memory_space<vmem>>, vector<128x256xf32>,
    } else {
    }
    %true = arith.constant true
    %116 = arith.xori %113, %true : i1
    %117 = arith.extui %116 : i1 to i32
    %c0_i32_59 = arith.constant 0 : i32
    %118 = arith.cmpi ne, %117, %c0_i32_59 : i32
    scf.if %118 {
      %cst_61 = arith.constant 0.000000e+00 : f32
      %122 = vector.broadcast %cst_61 : f32 to vector<128x256xf32>
      %123 = arith.maximumf %100, %122 : vector<128x256xf32>
      %c0_62 = arith.constant 0 : index
      %c0_63 = arith.constant 0 : index
      %124 = vector.load %arg9[%c0_62, %c0_63] : memref<128x256xf32, #tpu.memory_space<vmem>>, vector<128x256xf32>
      tpu.vector_store %arg9[%c0_62, %c0_63], %123 {strides = array<i32>} : memref<128x256xf32, #tpu.memory_space<vmem>>, vector<128x256xf32>,
    } else {
    }
    %c26_i32 = arith.constant 26 : i32
    %119 = arith.cmpi eq, %arg1, %c26_i32 : i32
    %120 = arith.extui %119 : i1 to i32
    %c0_i32_60 = arith.constant 0 : i32
    %121 = arith.cmpi ne, %120, %c0_i32_60 : i32
    scf.if %121 {
      %c0_61 = arith.constant 0 : index
      %c0_62 = arith.constant 0 : index
      %122 = vector.load %arg9[%c0_61, %c0_62] : memref<128x256xf32, #tpu.memory_space<vmem>>, vector<128x256xf32>
      %c0_63 = arith.constant 0 : index
      %c0_64 = arith.constant 0 : index
      %123 = vector.load %arg6[%c0_63, %c0_64] : memref<256x1xf32, #tpu.memory_space<vmem>>, vector<256x1xf32>
      %cst_65 = arith.constant dense<0.000000e+00> : vector<128x1xf32>
      %124 = tpu.matmul %122, %123, %cst_65 {dimension_numbers = #tpu.dot_dimension_numbers<[1], [0], [0], [1], [0, 0, 1, 1], [], []>} : vector<128x256xf32>, vector<256x1xf32>, vector<128x1xf32> -> vector<128x1xf32>
      %c0_66 = arith.constant 0 : index
      %c0_67 = arith.constant 0 : index
      %125 = vector.load %arg7[%c0_66, %c0_67] : memref<1x1xf32, #tpu.memory_space<vmem>>, vector<1x1xf32>
      %126 = vector.broadcast %125 : vector<1x1xf32> to vector<128x1xf32>
      %127 = arith.addf %124, %126 : vector<128x1xf32>
      %cst_68 = arith.constant 0.000000e+00 : f32
      %128 = vector.broadcast %cst_68 : f32 to vector<128x1xf32>
      %129 = arith.maximumf %127, %128 : vector<128x1xf32>
      %c0_69 = arith.constant 0 : index
      %c0_70 = arith.constant 0 : index
      %130 = vector.load %arg8[%c0_69, %c0_70] : memref<128x1xf32, #tpu.memory_space<vmem>>, vector<128x1xf32>
      tpu.vector_store %arg8[%c0_69, %c0_70], %129 {strides = array<i32>} : memref<128x1xf32, #tpu.memory_space<vmem>>, vector<128x1xf32>,
    } else {
    }
    return
  }
  func.func @transform_0(%arg0: i32, %arg1: i32) -> (i32, i32) {
    %c0_i32 = arith.constant 0 : i32
    %c0_i32_0 = arith.constant 0 : i32
    return %arg0, %c0_i32 : i32, i32
  }
  func.func @transform_1(%arg0: i32, %arg1: i32) -> (i32, i32) {
    %c0_i32 = arith.constant 0 : i32
    %c0_i32_0 = arith.constant 0 : i32
    %c0_i32_1 = arith.constant 0 : i32
    return %c0_i32, %c0_i32_0 : i32, i32
  }
  func.func @transform_2(%arg0: i32, %arg1: i32) -> (i32, i32, i32, i32) {
    %c0_i32 = arith.constant 0 : i32
    %c0_i32_0 = arith.constant 0 : i32
    %c0_i32_1 = arith.constant 0 : i32
    %c0_i32_2 = arith.constant 0 : i32
    return %arg1, %c0_i32, %c0_i32_0, %c0_i32_1 : i32, i32, i32, i32
  }
  func.func @transform_3(%arg0: i32, %arg1: i32) -> (i32, i32, i32) {
    %c0_i32 = arith.constant 0 : i32
    %c0_i32_0 = arith.constant 0 : i32
    %c0_i32_1 = arith.constant 0 : i32
    return %arg1, %c0_i32, %c0_i32_0 : i32, i32, i32
  }
  func.func @transform_4(%arg0: i32, %arg1: i32) -> (i32, i32) {
    %c0_i32 = arith.constant 0 : i32
    %c0_i32_0 = arith.constant 0 : i32
    %c0_i32_1 = arith.constant 0 : i32
    return %c0_i32, %c0_i32_0 : i32, i32
  }
  func.func @transform_5(%arg0: i32, %arg1: i32) -> (i32, i32) {
    %c0_i32 = arith.constant 0 : i32
    %c0_i32_0 = arith.constant 0 : i32
    %c0_i32_1 = arith.constant 0 : i32
    return %c0_i32, %c0_i32_0 : i32, i32
  }
  func.func @transform_6(%arg0: i32, %arg1: i32) -> (i32, i32) {
    %c0_i32 = arith.constant 0 : i32
    %c0_i32_0 = arith.constant 0 : i32
    return %arg0, %c0_i32 : i32, i32
  }
}

module attributes {stable_mosaic.version = 11 : i64} {
  func.func @_head_kernel(%arg0: memref<3x64xf32, #tpu.memory_space<vmem>>, %arg1: memref<64x64xf32, #tpu.memory_space<vmem>>, %arg2: memref<1x64xf32, #tpu.memory_space<vmem>>, %arg3: memref<64x1xf32, #tpu.memory_space<vmem>>, %arg4: memref<1x1xf32, #tpu.memory_space<vmem>>, %arg5: memref<3x1xf32, #tpu.memory_space<vmem>>) attributes {dimension_semantics = [], scalar_prefetch = 0 : i64, scratch_operands = 0 : i64, tpu.core_type = #tpu.core_type<tc>} {
    %c0 = arith.constant 0 : index
    %c0_0 = arith.constant 0 : index
    %0 = vector.load %arg0[%c0, %c0_0] : memref<3x64xf32, #tpu.memory_space<vmem>>, vector<3x64xf32>
    %c0_1 = arith.constant 0 : index
    %c0_2 = arith.constant 0 : index
    %1 = vector.load %arg1[%c0_1, %c0_2] : memref<64x64xf32, #tpu.memory_space<vmem>>, vector<64x64xf32>
    %cst = arith.constant dense<0.000000e+00> : vector<3x64xf32>
    %2 = tpu.matmul %0, %1, %cst {dimension_numbers = #tpu.dot_dimension_numbers<[1], [0], [0], [1], [0, 0, 1, 1], [], []>} : vector<3x64xf32>, vector<64x64xf32>, vector<3x64xf32> -> vector<3x64xf32>
    %c0_3 = arith.constant 0 : index
    %c0_4 = arith.constant 0 : index
    %3 = vector.load %arg2[%c0_3, %c0_4] : memref<1x64xf32, #tpu.memory_space<vmem>>, vector<1x64xf32>
    %4 = vector.broadcast %3 : vector<1x64xf32> to vector<3x64xf32>
    %5 = arith.addf %2, %4 : vector<3x64xf32>
    %cst_5 = arith.constant 0.000000e+00 : f32
    %6 = vector.broadcast %cst_5 : f32 to vector<3x64xf32>
    %7 = arith.maximumf %5, %6 : vector<3x64xf32>
    %c0_6 = arith.constant 0 : index
    %c0_7 = arith.constant 0 : index
    %8 = vector.load %arg3[%c0_6, %c0_7] : memref<64x1xf32, #tpu.memory_space<vmem>>, vector<64x1xf32>
    %cst_8 = arith.constant dense<0.000000e+00> : vector<3x1xf32>
    %9 = tpu.matmul %7, %8, %cst_8 {dimension_numbers = #tpu.dot_dimension_numbers<[1], [0], [0], [1], [0, 0, 1, 1], [], []>} : vector<3x64xf32>, vector<64x1xf32>, vector<3x1xf32> -> vector<3x1xf32>
    %c0_9 = arith.constant 0 : index
    %c0_10 = arith.constant 0 : index
    %10 = vector.load %arg4[%c0_9, %c0_10] : memref<1x1xf32, #tpu.memory_space<vmem>>, vector<1x1xf32>
    %11 = vector.broadcast %10 : vector<1x1xf32> to vector<3x1xf32>
    %12 = arith.addf %9, %11 : vector<3x1xf32>
    %13 = math.tanh %12 : vector<3x1xf32>
    %c0_11 = arith.constant 0 : index
    %c0_12 = arith.constant 0 : index
    %14 = vector.load %arg5[%c0_11, %c0_12] : memref<3x1xf32, #tpu.memory_space<vmem>>, vector<3x1xf32>
    tpu.vector_store %arg5[%c0_11, %c0_12], %13 {strides = array<i32>} : memref<3x1xf32, #tpu.memory_space<vmem>>, vector<3x1xf32>,
    return
  }
}

</mosaic_0001>

<llo_original>
// kernel: value_network_forward.3
$region0: #{value_network_forward.3}
  #allocation0 [shape = 'u32[]', space=smem, size = 0x4, offset = 0x4, fixed_abs, tag = 'smem constant byte address 0x4 - core index']
  #allocation1 [shape = 'u32[144,128]{1,0:T(1,128)}', space=vmem, size = 0x12000, scoped, tag = 'internal scratch']
  #allocation2 [shape = 'f32[1,1]{1,0:T(1,128)S(1)}', space=vmem, size = 0x200, scoped, tag = 'scoped memory for value_network_forward.3']
  %s0 = inlined_call_operand.vmem [shape: f32[3,64], index: 0, kind: input, shape index: {}]
  %s1 = inlined_call_operand.vmem [shape: f32[64,64], index: 1, kind: input, shape index: {}]
  %s2 = inlined_call_operand.vmem [shape: f32[1,64], index: 2, kind: input, shape index: {}]
  %s3 = inlined_call_operand.vmem [shape: f32[64,1], index: 3, kind: input, shape index: {}]
  %s4 = inlined_call_operand.<no memory space> [shape: f32[1,1], index: 4, kind: input, shape index: {}]
  %s5 = inlined_call_operand.vmem [shape: f32[3,1], index: 5, kind: output, shape index: {}]
  %s6 = sld [smem:[#allocation0]]
  $region30: #{value_network_forward.3} parent=0
    _
  %s8 = ssub.s32 1, %s6
  %s9 = scalar_select 0, %s8, %s6
  %v10 = vstv %s4
  %11 = vst [vmem:[#allocation2] sm:$0x1] %v10
  // Predicated region
  $region2: #{value_network_forward.3} parent=0 // pred_check
    _
  $region3: #{value_network_forward.3} parent=0 // pred_check_branch
    %13 = sbr.rel (0) target = $region5
  $region4: #{value_network_forward.3} parent=0 // pred_region
    _
  $region5: #{value_network_forward.3} parent=0 // pred_fallthru
    _
  // Predicated region
  $region6: #{value_network_forward.3} parent=0 // pred_check
    _
  $region7: #{value_network_forward.3} parent=0 // pred_check_branch
    %15 = sbr.rel (0) target = $region9
  $region8: #{value_network_forward.3} parent=0 // pred_region
    _
  $region9: #{value_network_forward.3} parent=0 // pred_fallthru
    _
  // Predicated region
  $region10: #{value_network_forward.3} parent=0 // pred_check
    _
  $region11: #{value_network_forward.3} parent=0 // pred_check_branch
    %17 = sbr.rel (0) target = $region13
  $region12: #{value_network_forward.3} parent=0 // pred_region
    _
  $region13: #{value_network_forward.3} parent=0 // pred_fallthru
    _
  // Predicated region
  $region14: #{value_network_forward.3} parent=0 // pred_check
    _
  $region15: #{value_network_forward.3} parent=0 // pred_check_branch
    %19 = sbr.rel (0) target = $region17
  $region16: #{value_network_forward.3} parent=0 // pred_region
    _
  $region17: #{value_network_forward.3} parent=0 // pred_fallthru
    _
  // Predicated region
  $region18: #{value_network_forward.3} parent=0 // pred_check
    _
  $region19: #{value_network_forward.3} parent=0 // pred_check_branch
    %21 = sbr.rel (0) target = $region21
  $region20: #{value_network_forward.3} parent=0 // pred_region
    _
  $region21: #{value_network_forward.3} parent=0 // pred_fallthru
    _
  %v22 = vld [vmem:[%s0] sm:$0x7]
  %v23 = vld [vmem:[%s1] sm:$0xff]
  %v24 = vld [vmem:[%s1 + $0x8] sm:$0xff]
  %v25 = vld [vmem:[%s1 + $0x10] sm:$0xff]
  %v26 = vld [vmem:[%s1 + $0x18] sm:$0xff]
  %v27 = vld [vmem:[%s1 + $0x20] sm:$0xff]
  %v28 = vld [vmem:[%s1 + $0x28] sm:$0xff]
  %v29 = vld [vmem:[%s1 + $0x30] sm:$0xff]
  %v30 = vld [vmem:[%s1 + $0x38] sm:$0xff]
  %v31 = vld [vmem:[%s2] sm:$0x1]
  %v33 = vlaneseq
  %v34 = vshrl.u32 %v33, 7
  %v35 = vsub.s32 0, %v34
  %v36 = vrot.slane %v31, %v35
  %vm38 = vcmask 523264
  %v40 = vsel %vm38, %v22, 0
  %42 = vmatprep.subr.mxu0 0.0
  %43 = vmatpush1.msra.mxu0 %v23
  %44 = vmatprep.subr.mxu0 0.0
  %45 = vmatpush1.msra.mxu0 %v24
  %46 = vmatprep.subr.mxu0 0.0
  %47 = vmatpush1.msra.mxu0 %v25
  %48 = vmatprep.subr.mxu0 0.0
  %49 = vmatpush1.msra.mxu0 %v26
  %50 = vmatprep.subr.mxu0 0.0
  %51 = vmatpush1.msra.mxu0 %v27
  %52 = vmatprep.subr.mxu0 0.0
  %53 = vmatpush1.msra.mxu0 %v28
  %54 = vmatprep.subr.mxu0 0.0
  %55 = vmatpush1.msra.mxu0 %v29
  %56 = vmatprep.subr.mxu0 0.0
  %57 = vmatpush1.msra.mxu0 %v30
  %58 = vmatprep.subr.mxu0 0.0
  %59 = vmatpush1.msra.mxu0 0.0
  %60 = vmatprep.subr.mxu0 0.0
  %61 = vmatpush1.msra.mxu0 0.0
  %62 = vmatprep.subr.mxu0 0.0
  %63 = vmatpush1.msra.mxu0 0.0
  %64 = vmatprep.subr.mxu0 0.0
  %65 = vmatpush1.msra.mxu0 0.0
  %66 = vmatprep.subr.mxu0 0.0
  %67 = vmatpush1.msra.mxu0 0.0
  %68 = vmatprep.subr.mxu0 0.0
  %69 = vmatpush1.msra.mxu0 0.0
  %70 = vmatprep.subr.mxu0 0.0
  %71 = vmatpush1.msra.mxu0 0.0
  %72 = vmatprep.subr.mxu0 0.0
  %73 = vmatpush1.msra.mxu0 0.0
  %74 = vmatprep.subr.mxu0 0.0
  %75 = vmatpush1.msra.mxu0 0.0
  %76 = vmatprep.subr.mxu0 0.0
  %77 = vmatpush1.msra.mxu0 0.0
  %78 = vmatprep.subr.mxu0 0.0
  %79 = vmatpush1.msra.mxu0 0.0
  %80 = vmatprep.subr.mxu0 0.0
  %81 = vmatpush1.msra.mxu0 0.0
  %82 = vmatprep.subr.mxu0 0.0
  %83 = vmatpush1.msra.mxu0 0.0
  %84 = vmatprep.subr.mxu0 0.0
  %85 = vmatpush1.msra.mxu0 0.0
  %86 = vmatprep.subr.mxu0 0.0
  %87 = vmatpush1.msra.mxu0 0.0
  %88 = vmatprep.subr.mxu0 0.0
  %89 = vmatpush1.msra.mxu0 0.0
  %90 = vmatprep.subr.mxu0 0.0
  %91 = vmatpush1.msra.mxu0 0.0
  %92 = vmatprep.subr.mxu0 0.0
  %93 = vmatpush1.msra.mxu0 0.0
  %94 = vmatprep.subr.mxu0 0.0
  %95 = vmatpush1.msra.mxu0 0.0
  %96 = vmatprep.subr.mxu0 0.0
  %97 = vmatpush1.msra.mxu0 0.0
  %98 = vmatprep.subr.mxu0 0.0
  %99 = vmatpush1.msra.mxu0 0.0
  %100 = vmatprep.subr.mxu0 0.0
  %101 = vmatpush1.msra.mxu0 0.0
  %102 = vmatprep.subr.mxu0 0.0
  %103 = vmatpush1.msra.mxu0 0.0
  %104 = vmatprep.subr.mxu0 0.0
  %105 = vmatpush1.msra.mxu0 0.0
  %106 = vmatprep.mubr.f32.mxu0 0.0
  %107 = vmatmul.mubr.f32.gmra.mrb[0].mxu0 %v40
  %v108 = vpop.f32.mrb[0].mxu0
  %v109 = vadd.f32 %v36, %v108
  %v110 = vpop.f32.mrb[0].mxu0
  %111 = vdwg.mxu0
  %v112 = vmax.f32 %v109, 0.0
  %v113 = vld [vmem:[%s3] sm:$0xff]
  %v114 = vld [vmem:[%s3 + $0x8] sm:$0xff]
  %v115 = vld [vmem:[%s3 + $0x10] sm:$0xff]
  %v116 = vld [vmem:[%s3 + $0x18] sm:$0xff]
  %v117 = vld [vmem:[%s3 + $0x20] sm:$0xff]
  %v118 = vld [vmem:[%s3 + $0x28] sm:$0xff]
  %v119 = vld [vmem:[%s3 + $0x30] sm:$0xff]
  %v120 = vld [vmem:[%s3 + $0x38] sm:$0xff]
  %v121 = vld [vmem:[#allocation2] sm:$0x1]
  %v123 = vlaneseq
  %v124 = vshrl.u32 %v123, 7
  %v125 = vsub.s32 0, %v124
  %v126 = vrot.slane %v121, %v125
  %v129 = vsel %vm38, %v112, 0
  %131 = vmatprep.subr.mxu0 0.0
  %132 = vmatpush1.msra.mxu0 %v113
  %133 = vmatprep.subr.mxu0 0.0
  %134 = vmatpush1.msra.mxu0 %v114
  %135 = vmatprep.subr.mxu0 0.0
  %136 = vmatpush1.msra.mxu0 %v115
  %137 = vmatprep.subr.mxu0 0.0
  %138 = vmatpush1.msra.mxu0 %v116
  %139 = vmatprep.subr.mxu0 0.0
  %140 = vmatpush1.msra.mxu0 %v117
  %141 = vmatprep.subr.mxu0 0.0
  %142 = vmatpush1.msra.mxu0 %v118
  %143 = vmatprep.subr.mxu0 0.0
  %144 = vmatpush1.msra.mxu0 %v119
  %145 = vmatprep.subr.mxu0 0.0
  %146 = vmatpush1.msra.mxu0 %v120
  %147 = vmatprep.subr.mxu0 0.0
  %148 = vmatpush1.msra.mxu0 0.0
  %149 = vmatprep.subr.mxu0 0.0
  %150 = vmatpush1.msra.mxu0 0.0
  %151 = vmatprep.subr.mxu0 0.0
  %152 = vmatpush1.msra.mxu0 0.0
  %153 = vmatprep.subr.mxu0 0.0
  %154 = vmatpush1.msra.mxu0 0.0
  %155 = vmatprep.subr.mxu0 0.0
  %156 = vmatpush1.msra.mxu0 0.0
  %157 = vmatprep.subr.mxu0 0.0
  %158 = vmatpush1.msra.mxu0 0.0
  %159 = vmatprep.subr.mxu0 0.0
  %160 = vmatpush1.msra.mxu0 0.0
  %161 = vmatprep.subr.mxu0 0.0
  %162 = vmatpush1.msra.mxu0 0.0
  %163 = vmatprep.subr.mxu0 0.0
  %164 = vmatpush1.msra.mxu0 0.0
  %165 = vmatprep.subr.mxu0 0.0
  %166 = vmatpush1.msra.mxu0 0.0
  %167 = vmatprep.subr.mxu0 0.0
  %168 = vmatpush1.msra.mxu0 0.0
  %169 = vmatprep.subr.mxu0 0.0
  %170 = vmatpush1.msra.mxu0 0.0
  %171 = vmatprep.subr.mxu0 0.0
  %172 = vmatpush1.msra.mxu0 0.0
  %173 = vmatprep.subr.mxu0 0.0
  %174 = vmatpush1.msra.mxu0 0.0
  %175 = vmatprep.subr.mxu0 0.0
  %176 = vmatpush1.msra.mxu0 0.0
  %177 = vmatprep.subr.mxu0 0.0
  %178 = vmatpush1.msra.mxu0 0.0
  %179 = vmatprep.subr.mxu0 0.0
  %180 = vmatpush1.msra.mxu0 0.0
  %181 = vmatprep.subr.mxu0 0.0
  %182 = vmatpush1.msra.mxu0 0.0
  %183 = vmatprep.subr.mxu0 0.0
  %184 = vmatpush1.msra.mxu0 0.0
  %185 = vmatprep.subr.mxu0 0.0
  %186 = vmatpush1.msra.mxu0 0.0
  %187 = vmatprep.subr.mxu0 0.0
  %188 = vmatpush1.msra.mxu0 0.0
  %189 = vmatprep.subr.mxu0 0.0
  %190 = vmatpush1.msra.mxu0 0.0
  %191 = vmatprep.subr.mxu0 0.0
  %192 = vmatpush1.msra.mxu0 0.0
  %193 = vmatprep.subr.mxu0 0.0
  %194 = vmatpush1.msra.mxu0 0.0
  %195 = vmatprep.mubr.f32.mxu0 0.0
  %196 = vmatmul.mubr.f32.gmra.mrb[0].mxu0 %v129
  %v197 = vpop.f32.mrb[0].mxu0
  %v198 = vadd.f32 %v126, %v197
  %v199 = vpop.f32.mrb[0].mxu0
  %200 = vdwg.mxu0
  %v201 = vtanh.pop %v198
  %vm202 = vcmask 2048
  %203 = vst.msk [vmem:[%s5] sm:$0x7] %vm202, %v201
  // Predicated region
  $region22: #{value_network_forward.3} parent=0 // pred_check
    _
  $region23: #{value_network_forward.3} parent=0 // pred_check_branch
    %205 = sbr.rel (0) target = $region25
  $region24: #{value_network_forward.3} parent=0 // pred_region
    _
  $region25: #{value_network_forward.3} parent=0 // pred_fallthru
    _
  // Predicated region
  $region26: #{value_network_forward.3} parent=0 // pred_check
    _
  $region27: #{value_network_forward.3} parent=0 // pred_check_branch
    %207 = sbr.rel (0) target = $region29
  $region28: #{value_network_forward.3} parent=0 // pred_region
    _
  $region29: #{value_network_forward.3} parent=0 // pred_fallthru
    _

// kernel: value_network_forward.2
$region0: #{value_network_forward.2}
  #allocation0 [shape = 'u32[]', space=smem, size = 0x4, offset = 0x4, fixed_abs, tag = 'smem constant byte address 0x4 - core index']
  #allocation1 [shape = 'u32[144,128]{1,0:T(1,128)}', space=vmem, size = 0x12000, scoped, tag = 'internal scratch']
  #allocation2 [shape = 'f32[128,256]{1,0:T(8,128)}', space=vmem, size = 0x20000, scoped, tag = 'scratch operand']
  #allocation3 [shape = 'f32[128,256]{1,0:T(8,128)}', space=vmem, size = 0x20000, scoped, tag = 'scratch operand']
  #allocation4 [shape = 'f32[1,1]{1,0:T(1,128)S(1)}', space=vmem, size = 0x200, scoped, tag = 'scoped memory for value_network_forward.2']
  %s0 = inlined_call_operand.vmem [shape: bf16[256,128], index: 0, kind: input, shape index: {}]
  %s1 = inlined_call_operand.vmem [shape: bf16[128,9], index: 1, kind: input, shape index: {}]
  %s2 = inlined_call_operand.hbm [shape: bf16[27,9,256,256], index: 2, kind: input, shape index: {}]
  %s3 = inlined_call_operand.hbm [shape: f32[27,1,256], index: 3, kind: input, shape index: {}]
  %s4 = inlined_call_operand.vmem [shape: f32[256,1], index: 4, kind: input, shape index: {}]
  %s5 = inlined_call_operand.<no memory space> [shape: f32[1,1], index: 5, kind: input, shape index: {}]
  %s6 = inlined_call_operand.vmem [shape: f32[256,1], index: 6, kind: output, shape index: {}]
  %s7 = sld [smem:[#allocation0]]
  $region85: #{value_network_forward.2} parent=0
    _
  %s9 = ssub.s32 1, %s7
  %s10 = scalar_select 0, %s9, %s7
  %v11 = vstv %s5
  %12 = vst [vmem:[#allocation4] sm:$0x1] %v11
  $region1: #{value_network_forward.2} parent=0
    #allocation5 [shape = 'u8[2359296]{0}', space=vmem, size = 0x240000, scoped, tag = 'input window, operand 2']
    #allocation6 [shape = 's32[2]{0}', space=sflag, size = 0x8, scoped, tag = 'scoped memory for value_network_forward.2']
    #allocation7 [shape = 'u8[2048]{0}', space=vmem, size = 0x800, scoped, tag = 'input window, operand 3']
    #allocation8 [shape = 's32[2]{0}', space=sflag, size = 0x8, scoped, tag = 'scoped memory for value_network_forward.2']
    %13 = vsyncpa [#allocation6], 0
    %s14 = scalar_lea.sflag [#allocation6], 1
    %15 = vsyncpa %s14, 0
    %16 = vsyncpa [#allocation8], 0
    %s17 = scalar_lea.sflag [#allocation8], 1
    %18 = vsyncpa %s17, 0
    loop: start=0, step=1, limit=56
    $region2: #{value_network_forward.2} parent=1 // loop_pre_header
      _
    $region3: #{value_network_forward.2} parent=1 // loop_header
      %s20 = sphi 0, %s24
      %p21 = scmp.ge.s32.totalorder %s20, 56
      %s27 = sphi 0, %s39
      %s28 = sphi 0, %s35
      %s29 = sphi 0, %s27
      %s30 = sphi 0, %s28
      %s31 = sphi 0, %s29
      %s32 = sphi 0, %s30
      %s42 = sphi 0, %s44
      %s45 = sphi 0, %s42
      %s46 = sphi 0, %s45
      %s62 = sphi 0, %s46
      %s66 = sphi 0, %s66
      %s68 = sphi 0, %s66
      %s69 = sphi 0, %s68
      %s83 = sphi 0, %s69
      %s89 = sphi 0, %s91
      %s92 = sphi 0, %s89
      %s93 = sphi 0, %s92
      %s109 = sphi 0, %s93
      %s115 = sphi 0, %s117
      %s118 = sphi 0, %s115
      %s119 = sphi 0, %s118
      %s135 = sphi 0, %s119
      %s139 = sphi 0, %s139
      %s141 = sphi 0, %s139
      %s142 = sphi 0, %s141
      %s156 = sphi 0, %s142
      %s160 = sphi 0, %s160
      %s162 = sphi 0, %s160
      %s163 = sphi 0, %s162
      %s177 = sphi 0, %s163
      %s183 = sphi 0, %s185
      %s186 = sphi 0, %s183
      %s187 = sphi 0, %s186
      %s203 = sphi 0, %s187
    $region4: #{value_network_forward.2} parent=1 // loop_header_branch
      %23 = sbr.rel (%p21) target = $region8
    $region5: #{value_network_forward.2} parent=1 // loop_body
      %s25 = ssub.s32 %s20, 1
      %s26 = ssub.s32 %s20, 2
      %s33 = sadd.s32 1, %s28
      %p34 = scmp.ge.s32.totalorder %s33, 27
      %s35 = scalar_select %p34, 0, %s33
      %s36 = sadd.s32 1, %s27
      %s37 = scalar_select %p34, %s36, %s27
      %p38 = scmp.ge.s32.totalorder %s37, 2
      %s39 = scalar_select %p38, 0, %s37
      %s40 = ssub.s32 %s27, %s39
      %p41 = scmp.eq.s32.totalorder %s40, 0
      %s43 = sadd.s32 %s42, 1
      %s44 = scalar_select %p41, %s42, %s43
      %p47 = pneg %p41
      %p48 = scmp.eq.s32.totalorder %s20, 53
      %p49 = por %p47, %p48
      %p50 = scmp.ne.s32.totalorder %s42, %s45
      %p51 = scmp.eq.s32.totalorder %s20, 0
      %p52 = por %p50, %p51
      %p53 = scmp.ne.s32.totalorder %s42, %s45
      %p54 = scmp.eq.s32.totalorder %s25, 53
      %p55 = por %p53, %p54
      %p56 = scmp.ne.s32.totalorder %s45, %s46
      %p57 = scmp.eq.s32.totalorder %s25, 0
      %p58 = por %p56, %p57
      %p59 = scmp.ne.s32.totalorder %s45, %s46
      %p60 = scmp.eq.s32.totalorder %s26, 53
      %p61 = por %p59, %p60
      %p63 = scmp.ne.s32.totalorder %s46, %s62
      %p64 = scmp.eq.s32.totalorder %s26, 0
      %p65 = por %p63, %p64
      %s67 = sadd.s32 %s66, 1
      %p70 = scmp.eq.s32.totalorder %s20, 53
      %p71 = scmp.ne.s32.totalorder %s66, %s68
      %p72 = scmp.eq.s32.totalorder %s20, 0
      %p73 = por %p71, %p72
      %p74 = scmp.ne.s32.totalorder %s66, %s68
      %p75 = scmp.eq.s32.totalorder %s25, 53
      %p76 = por %p74, %p75
      %p77 = scmp.ne.s32.totalorder %s68, %s69
      %p78 = scmp.eq.s32.totalorder %s25, 0
      %p79 = por %p77, %p78
      %p80 = scmp.ne.s32.totalorder %s68, %s69
      %p81 = scmp.eq.s32.totalorder %s26, 53
      %p82 = por %p80, %p81
      %p84 = scmp.ne.s32.totalorder %s69, %s83
      %p85 = scmp.eq.s32.totalorder %s26, 0
      %p86 = por %p84, %p85
      %s87 = ssub.s32 %s28, %s35
      %p88 = scmp.eq.s32.totalorder %s87, 0
      %s90 = sadd.s32 %s89, 1
      %s91 = scalar_select %p88, %s89, %s90
      %p94 = pneg %p88
      %p95 = scmp.eq.s32.totalorder %s20, 53
      %p96 = por %p94, %p95
      %p97 = scmp.ne.s32.totalorder %s89, %s92
      %p98 = scmp.eq.s32.totalorder %s20, 0
      %p99 = por %p97, %p98
      %p100 = scmp.ne.s32.totalorder %s89, %s92
      %p101 = scmp.eq.s32.totalorder %s25, 53
      %p102 = por %p100, %p101
      %p103 = scmp.ne.s32.totalorder %s92, %s93
      %p104 = scmp.eq.s32.totalorder %s25, 0
      %p105 = por %p103, %p104
      %p106 = scmp.ne.s32.totalorder %s92, %s93
      %p107 = scmp.eq.s32.totalorder %s26, 53
      %p108 = por %p106, %p107
      %p110 = scmp.ne.s32.totalorder %s93, %s109
      %p111 = scmp.eq.s32.totalorder %s26, 0
      %p112 = por %p110, %p111
      %s113 = ssub.s32 %s28, %s35
      %p114 = scmp.eq.s32.totalorder %s113, 0
      %s116 = sadd.s32 %s115, 1
      %s117 = scalar_select %p114, %s115, %s116
      %p120 = pneg %p114
      %p121 = scmp.eq.s32.totalorder %s20, 53
      %p122 = por %p120, %p121
      %p123 = scmp.ne.s32.totalorder %s115, %s118
      %p124 = scmp.eq.s32.totalorder %s20, 0
      %p125 = por %p123, %p124
      %p126 = scmp.ne.s32.totalorder %s115, %s118
      %p127 = scmp.eq.s32.totalorder %s25, 53
      %p128 = por %p126, %p127
      %p129 = scmp.ne.s32.totalorder %s118, %s119
      %p130 = scmp.eq.s32.totalorder %s25, 0
      %p131 = por %p129, %p130
      %p132 = scmp.ne.s32.totalorder %s118, %s119
      %p133 = scmp.eq.s32.totalorder %s26, 53
      %p134 = por %p132, %p133
      %p136 = scmp.ne.s32.totalorder %s119, %s135
      %p137 = scmp.eq.s32.totalorder %s26, 0
      %p138 = por %p136, %p137
      %s140 = sadd.s32 %s139, 1
      %p143 = scmp.eq.s32.totalorder %s20, 53
      %p144 = scmp.ne.s32.totalorder %s139, %s141
      %p145 = scmp.eq.s32.totalorder %s20, 0
      %p146 = por %p144, %p145
      %p147 = scmp.ne.s32.totalorder %s139, %s141
      %p148 = scmp.eq.s32.totalorder %s25, 53
      %p149 = por %p147, %p148
      %p150 = scmp.ne.s32.totalorder %s141, %s142
      %p151 = scmp.eq.s32.totalorder %s25, 0
      %p152 = por %p150, %p151
      %p153 = scmp.ne.s32.totalorder %s141, %s142
      %p154 = scmp.eq.s32.totalorder %s26, 53
      %p155 = por %p153, %p154
      %p157 = scmp.ne.s32.totalorder %s142, %s156
      %p158 = scmp.eq.s32.totalorder %s26, 0
      %p159 = por %p157, %p158
      %s161 = sadd.s32 %s160, 1
      %p164 = scmp.eq.s32.totalorder %s20, 53
      %p165 = scmp.ne.s32.totalorder %s160, %s162
      %p166 = scmp.eq.s32.totalorder %s20, 0
      %p167 = por %p165, %p166
      %p168 = scmp.ne.s32.totalorder %s160, %s162
      %p169 = scmp.eq.s32.totalorder %s25, 53
      %p170 = por %p168, %p169
      %p171 = scmp.ne.s32.totalorder %s162, %s163
      %p172 = scmp.eq.s32.totalorder %s25, 0
      %p173 = por %p171, %p172
      %p174 = scmp.ne.s32.totalorder %s162, %s163
      %p175 = scmp.eq.s32.totalorder %s26, 53
      %p176 = por %p174, %p175
      %p178 = scmp.ne.s32.totalorder %s163, %s177
      %p179 = scmp.eq.s32.totalorder %s26, 0
      %p180 = por %p178, %p179
      %s181 = ssub.s32 %s27, %s39
      %p182 = scmp.eq.s32.totalorder %s181, 0
      %s184 = sadd.s32 %s183, 1
      %s185 = scalar_select %p182, %s183, %s184
      %p188 = pneg %p182
      %p189 = scmp.eq.s32.totalorder %s20, 53
      %p190 = por %p188, %p189
      %p191 = scmp.ne.s32.totalorder %s183, %s186
      %p192 = scmp.eq.s32.totalorder %s20, 0
      %p193 = por %p191, %p192
      %p194 = scmp.ne.s32.totalorder %s183, %s186
      %p195 = scmp.eq.s32.totalorder %s25, 53
      %p196 = por %p194, %p195
      %p197 = scmp.ne.s32.totalorder %s186, %s187
      %p198 = scmp.eq.s32.totalorder %s25, 0
      %p199 = por %p197, %p198
      %p200 = scmp.ne.s32.totalorder %s186, %s187
      %p201 = scmp.eq.s32.totalorder %s26, 53
      %p202 = por %p200, %p201
      %p204 = scmp.ne.s32.totalorder %s187, %s203
      %p205 = scmp.eq.s32.totalorder %s26, 0
      %p206 = por %p204, %p205
      %p207 = scmp.le.s32.totalorder 1, %s20
      %p208 = scmp.lt.s32.totalorder %s20, 55
      %p209 = pnand %p207, %p208
      %p210 = pneg %p209
      // Predicated region
      $region9: #{value_network_forward.2} parent=5 // pred_check
        _
      $region10: #{value_network_forward.2} parent=5 // pred_check_branch
        %212 = sbr.rel (%p209) target = $region12
      $region11: #{value_network_forward.2} parent=5 // pred_region
        %s213 = ssub.s32 %s20, 1
        // Predicated region
        $region13: #{value_network_forward.2} parent=11 // pred_check
          %p214 = pneg %p79
        $region14: #{value_network_forward.2} parent=11 // pred_check_branch
          %216 = sbr.rel (%p214) target = $region16
        $region15: #{value_network_forward.2} parent=11 // pred_region
          _
        $region16: #{value_network_forward.2} parent=11 // pred_fallthru
          _
        // Predicated region
        $region17: #{value_network_forward.2} parent=11 // pred_check
          %p217 = pneg %p152
        $region18: #{value_network_forward.2} parent=11 // pred_check_branch
          %219 = sbr.rel (%p217) target = $region20
        $region19: #{value_network_forward.2} parent=11 // pred_region
          _
        $region20: #{value_network_forward.2} parent=11 // pred_fallthru
          _
        // Predicated region
        $region21: #{value_network_forward.2} parent=11 // pred_check
          %p220 = pneg %p173
        $region22: #{value_network_forward.2} parent=11 // pred_check_branch
          %222 = sbr.rel (%p220) target = $region24
        $region23: #{value_network_forward.2} parent=11 // pred_region
          _
        $region24: #{value_network_forward.2} parent=11 // pred_fallthru
          _
      $region12: #{value_network_forward.2} parent=5 // pred_fallthru
        _
      %p223 = scmp.lt.s32.totalorder %s20, 54
      // Predicated region
      $region25: #{value_network_forward.2} parent=5 // pred_check
        %p224 = pneg %p223
      $region26: #{value_network_forward.2} parent=5 // pred_check_branch
        %226 = sbr.rel (%p224) target = $region28
      $region27: #{value_network_forward.2} parent=5 // pred_region
        // Predicated region
        $region29: #{value_network_forward.2} parent=27 // pred_check
          %p227 = pneg %p52
        $region30: #{value_network_forward.2} parent=27 // pred_check_branch
          %229 = sbr.rel (%p227) target = $region32
        $region31: #{value_network_forward.2} parent=27 // pred_region
          %s230 = smul.u32 16, %s27
          %p231 = scmp.lt.s32.totalorder %s230, 31
          %s232 = scalar_select %p231, %s230, 31
          %s233 = smul.addr %s232, 4
          %s234 = scalar_lea.vmem %s0, %s233
          %s235 = smul.u32 16, %s27
        $region32: #{value_network_forward.2} parent=27 // pred_fallthru
          _
        // Predicated region
        $region33: #{value_network_forward.2} parent=27 // pred_check
          %p236 = pneg %p99
        $region34: #{value_network_forward.2} parent=27 // pred_check_branch
          %238 = sbr.rel (%p236) target = $region36
        $region35: #{value_network_forward.2} parent=27 // pred_region
          %s239 = sand.u32 %s89, 1
          %s240 = scalar_lea.sflag [#allocation6], %s239
          %s241 = sand.u32 %s89, 1
          %s242 = smul.addr %s241, 2304
          %s243 = scalar_lea.vmem [#allocation5], %s242
          %s245 = ssub.s32 36864, 36864
          %246 = vsyncadd %s240, %s245
          %s247 = smul.addr %s28, 576
          %s248 = smul.addr %s247, 64
          %s249 = scalar_lea.hbm %s2, %s248
          %s250 = sshll.u32 %s243, 4
          %s251 = int_to_ptr.vmem [resolvable:$true] %s250
          %256 = dma.hbm_to_vmem [thread:$0]  %s249, 36864, %s251, %s240, 128, 128, 8
        $region36: #{value_network_forward.2} parent=27 // pred_fallthru
          _
        // Predicated region
        $region37: #{value_network_forward.2} parent=27 // pred_check
          %p257 = pneg %p125
        $region38: #{value_network_forward.2} parent=27 // pred_check_branch
          %259 = sbr.rel (%p257) target = $region40
        $region39: #{value_network_forward.2} parent=27 // pred_region
          %s260 = sand.u32 %s115, 1
          %s261 = scalar_lea.sflag [#allocation8], %s260
          %s262 = sand.u32 %s115, 1
          %s263 = smul.addr %s262, 2
          %s264 = scalar_lea.vmem [#allocation7], %s263
          %s266 = ssub.s32 32, 32
          %267 = vsyncadd %s261, %s266
          %s268 = smul.addr %s28, 2
          %s269 = smul.addr %s268, 16
          %s270 = scalar_lea.hbm %s3, %s269
          %s272 = sshll.u32 %s264, 4
          %s273 = int_to_ptr.vmem [resolvable:$true] %s272
          %275 = dma.hbm_to_vmem [thread:$0]  %s270, 32, %s273, %s261
        $region40: #{value_network_forward.2} parent=27 // pred_fallthru
          _
      $region28: #{value_network_forward.2} parent=5 // pred_fallthru
        _
      %p276 = scmp.le.s32.totalorder 1, %s20
      %p277 = scmp.lt.s32.totalorder %s20, 55
      %p278 = pnand %p276, %p277
      %p279 = pneg %p278
      // Predicated region
      $region41: #{value_network_forward.2} parent=5 // pred_check
        _
      $region42: #{value_network_forward.2} parent=5 // pred_check_branch
        %281 = sbr.rel (%p278) target = $region44
      $region43: #{value_network_forward.2} parent=5 // pred_region
        %s282 = ssub.s32 %s20, 1
        %s283 = sand.u32 %s92, 1
        %s284 = scalar_lea.sflag [#allocation6], %s283
        %s285 = sand.u32 %s92, 1
        %s286 = smul.addr %s285, 2304
        %s287 = scalar_lea.vmem [#allocation5], %s286
        // Predicated region
        $region45: #{value_network_forward.2} parent=43 // pred_check
          %p288 = pneg %p105
        $region46: #{value_network_forward.2} parent=43 // pred_check_branch
          %290 = sbr.rel (%p288) target = $region48
        $region47: #{value_network_forward.2} parent=43 // pred_region
          %291 = dma.done %s284, 36864
        $region48: #{value_network_forward.2} parent=43 // pred_fallthru
          _
        %s292 = sand.u32 %s118, 1
        %s293 = scalar_lea.sflag [#allocation8], %s292
        %s294 = sand.u32 %s118, 1
        %s295 = smul.addr %s294, 2
        %s296 = scalar_lea.vmem [#allocation7], %s295
        // Predicated region
        $region49: #{value_network_forward.2} parent=43 // pred_check
          %p297 = pneg %p131
        $region50: #{value_network_forward.2} parent=43 // pred_check_branch
          %299 = sbr.rel (%p297) target = $region52
        $region51: #{value_network_forward.2} parent=43 // pred_region
          %300 = dma.done %s293, 32
        $region52: #{value_network_forward.2} parent=43 // pred_fallthru
          _
        %s301 = smul.u32 16, %s29
        %p302 = scmp.lt.s32.totalorder %s301, 31
        %s303 = scalar_select %p302, %s301, 31
        %s304 = smul.addr %s303, 4
        %s305 = scalar_lea.vmem %s0, %s304
        %p306 = pneg %p58
        %p307 = pneg %p55
        %p308 = pneg %p79
        %p309 = pneg %p76
        %s310 = sand.u32 %s92, 1
        %s311 = scalar_lea.sflag [#allocation6], %s310
        %s312 = sand.u32 %s92, 1
        %s313 = smul.addr %s312, 2304
        %s314 = scalar_lea.vmem [#allocation5], %s313
        %p315 = pneg %p105
        %p316 = pneg %p102
        %s317 = sand.u32 %s118, 1
        %s318 = scalar_lea.sflag [#allocation8], %s317
        %s319 = sand.u32 %s118, 1
        %s320 = smul.addr %s319, 2
        %s321 = scalar_lea.vmem [#allocation7], %s320
        %p322 = pneg %p131
        %p323 = pneg %p128
        %p324 = pneg %p152
        %p325 = pneg %p149
        %p326 = pneg %p173
        %p327 = pneg %p170
        %p328 = pneg %p199
        %p329 = pneg %p196
        %s330 = smul.u32 16, %s29
        %p331 = scmp.lt.s32.totalorder %s330, 31
        %s332 = scalar_select %p331, %s330, 31
        %s333 = smul.addr %s332, 8
        %s334 = scalar_lea.vmem %s6, %s333
        %s335 = smul.u32 16, %s29
        %p336 = scmp.lt.s32.totalorder %s335, 31
        %s337 = scalar_select %p336, %s335, 31
        %s338 = smul.addr %s337, 4
        %s339 = scalar_lea.vmem %s0, %s338
        %s340 = smul.u32 16, %s29
        %s341 = smul.u32 16, %s29
        %p342 = scmp.lt.s32.totalorder %s341, 31
        %s343 = scalar_select %p342, %s341, 31
        %s344 = smul.addr %s343, 8
        %s345 = scalar_lea.vmem %s6, %s344
        %s346 = smul.u32 16, %s29
        %p347 = scmp.eq.s32.totalorder %s30, 0
        // Predicated region
        $region53: #{value_network_forward.2} parent=43 // pred_check
          %p348 = pneg %p347
        $region54: #{value_network_forward.2} parent=43 // pred_check_branch
          %350 = sbr.rel (%p348) target = $region56
        $region55: #{value_network_forward.2} parent=43 // pred_region
          %v351 = vld [vmem:[%s339] sm:$0xf]
          %v352 = vld [vmem:[%s339 + $0x4] sm:$0xf]
          %v353 = vld [vmem:[%s339 + $0x8] sm:$0xf]
          %v354 = vld [vmem:[%s339 + $0xc] sm:$0xf]
          %v355 = vld [vmem:[%s339 + $0x10] sm:$0xf]
          %v356 = vld [vmem:[%s339 + $0x14] sm:$0xf]
          %v357 = vld [vmem:[%s339 + $0x18] sm:$0xf]
          %v358 = vld [vmem:[%s339 + $0x1c] sm:$0xf]
          %v359 = vld [vmem:[%s339 + $0x20] sm:$0xf]
          %v360 = vld [vmem:[%s339 + $0x24] sm:$0xf]
          %v361 = vld [vmem:[%s339 + $0x28] sm:$0xf]
          %v362 = vld [vmem:[%s339 + $0x2c] sm:$0xf]
          %v363 = vld [vmem:[%s339 + $0x30] sm:$0xf]
          %v364 = vld [vmem:[%s339 + $0x34] sm:$0xf]
          %v365 = vld [vmem:[%s339 + $0x38] sm:$0xf]
          %v366 = vld [vmem:[%s339 + $0x3c] sm:$0xf]
          %v367 = vunpack.c.l.bf16 %v351
          %v368 = vunpack.c.l.bf16 %v352
          %v369 = vunpack.c.l.bf16 %v353
          %v370 = vunpack.c.l.bf16 %v354
          %v371 = vunpack.c.l.bf16 %v355
          %v372 = vunpack.c.l.bf16 %v356
          %v373 = vunpack.c.l.bf16 %v357
          %v374 = vunpack.c.l.bf16 %v358
          %v375 = vunpack.c.l.bf16 %v359
          %v376 = vunpack.c.l.bf16 %v360
          %v377 = vunpack.c.l.bf16 %v361
          %v378 = vunpack.c.l.bf16 %v362
          %v379 = vunpack.c.l.bf16 %v363
          %v380 = vunpack.c.l.bf16 %v364
          %v381 = vunpack.c.l.bf16 %v365
          %v382 = vunpack.c.l.bf16 %v366
          %383 = vst [vmem:[#allocation2] sm:$0xff] %v367
          %384 = vst [vmem:[#allocation2 + $0x10] sm:$0xff] %v368
          %385 = vst [vmem:[#allocation2 + $0x20] sm:$0xff] %v369
          %386 = vst [vmem:[#allocation2 + $0x30] sm:$0xff] %v370
          %387 = vst [vmem:[#allocation2 + $0x40] sm:$0xff] %v371
          %388 = vst [vmem:[#allocation2 + $0x50] sm:$0xff] %v372
          %389 = vst [vmem:[#allocation2 + $0x60] sm:$0xff] %v373
          %390 = vst [vmem:[#allocation2 + $0x70] sm:$0xff] %v374
          %391 = vst [vmem:[#allocation2 + $0x80] sm:$0xff] %v375
          %392 = vst [vmem:[#allocation2 + $0x90] sm:$0xff] %v376
          %393 = vst [vmem:[#allocation2 + $0xa0] sm:$0xff] %v377
          %394 = vst [vmem:[#allocation2 + $0xb0] sm:$0xff] %v378
          %395 = vst [vmem:[#allocation2 + $0xc0] sm:$0xff] %v379
          %396 = vst [vmem:[#allocation2 + $0xd0] sm:$0xff] %v380
          %397 = vst [vmem:[#allocation2 + $0xe0] sm:$0xff] %v381
          %398 = vst [vmem:[#allocation2 + $0xf0] sm:$0xff] %v382
          %399 = vst [vmem:[#allocation2 + $0x8] sm:$0xff] 0.0
          %400 = vst [vmem:[#allocation2 + $0x18] sm:$0xff] 0.0
          %401 = vst [vmem:[#allocation2 + $0x28] sm:$0xff] 0.0
          %402 = vst [vmem:[#allocation2 + $0x38] sm:$0xff] 0.0
          %403 = vst [vmem:[#allocation2 + $0x48] sm:$0xff] 0.0
          %404 = vst [vmem:[#allocation2 + $0x58] sm:$0xff] 0.0
          %405 = vst [vmem:[#allocation2 + $0x68] sm:$0xff] 0.0
          %406 = vst [vmem:[#allocation2 + $0x78] sm:$0xff] 0.0
          %407 = vst [vmem:[#allocation2 + $0x88] sm:$0xff] 0.0
          %408 = vst [vmem:[#allocation2 + $0x98] sm:$0xff] 0.0
          %409 = vst [vmem:[#allocation2 + $0xa8] sm:$0xff] 0.0
          %410 = vst [vmem:[#allocation2 + $0xb8] sm:$0xff] 0.0
          %411 = vst [vmem:[#allocation2 + $0xc8] sm:$0xff] 0.0
          %412 = vst [vmem:[#allocation2 + $0xd8] sm:$0xff] 0.0
          %413 = vst [vmem:[#allocation2 + $0xe8] sm:$0xff] 0.0
          %414 = vst [vmem:[#allocation2 + $0xf8] sm:$0xff] 0.0
        $region56: #{value_network_forward.2} parent=43 // pred_fallthru
          _
        %p415 = scmp.lt.s32.totalorder %s30, 0
        %s416 = ssub.s32 0, %s30
        %s417 = scalar_select %p415, %s416, %s30
        %s418 = sand.u32 %s417, 1
        %s419 = ssub.s32 0, %s418
        %s420 = scalar_select %p415, %s419, %s418
        %p421 = scmp.ne.s32.totalorder %s420, 0
        %p422 = scmp.lt.s32.totalorder %s420, 0
        %p423 = pnand %p422, %p421
        %p424 = pneg %p423
        %s425 = sadd.s32 %s420, 2
        %s426 = scalar_select %p424, %s425, %s420
        %p427 = scmp.eq.s32.totalorder %s426, 1
        // Predicated region
        $region57: #{value_network_forward.2} parent=43 // pred_check
          %p428 = pneg %p427
        $region58: #{value_network_forward.2} parent=43 // pred_check_branch
          %430 = sbr.rel (%p428) target = $region60
        $region59: #{value_network_forward.2} parent=43 // pred_region
          %v431 = vld [vmem:[#allocation2] sm:$0xff]
          %v432 = vld [vmem:[#allocation2 + $0x8] sm:$0xff]
          %v433 = vld [vmem:[#allocation2 + $0x10] sm:$0xff]
          %v434 = vld [vmem:[#allocation2 + $0x18] sm:$0xff]
          %v435 = vld [vmem:[#allocation2 + $0x20] sm:$0xff]
          %v436 = vld [vmem:[#allocation2 + $0x28] sm:$0xff]
          %v437 = vld [vmem:[#allocation2 + $0x30] sm:$0xff]
          %v438 = vld [vmem:[#allocation2 + $0x38] sm:$0xff]
          %v439 = vld [vmem:[#allocation2 + $0x40] sm:$0xff]
          %v440 = vld [vmem:[#allocation2 + $0x48] sm:$0xff]
          %v441 = vld [vmem:[#allocation2 + $0x50] sm:$0xff]
          %v442 = vld [vmem:[#allocation2 + $0x58] sm:$0xff]
          %v443 = vld [vmem:[#allocation2 + $0x60] sm:$0xff]
          %v444 = vld [vmem:[#allocation2 + $0x68] sm:$0xff]
          %v445 = vld [vmem:[#allocation2 + $0x70] sm:$0xff]
          %v446 = vld [vmem:[#allocation2 + $0x78] sm:$0xff]
          %v447 = vld [vmem:[#allocation2 + $0x80] sm:$0xff]
          %v448 = vld [vmem:[#allocation2 + $0x88] sm:$0xff]
          %v449 = vld [vmem:[#allocation2 + $0x90] sm:$0xff]
          %v450 = vld [vmem:[#allocation2 + $0x98] sm:$0xff]
          %v451 = vld [vmem:[#allocation2 + $0xa0] sm:$0xff]
          %v452 = vld [vmem:[#allocation2 + $0xa8] sm:$0xff]
          %v453 = vld [vmem:[#allocation2 + $0xb0] sm:$0xff]
          %v454 = vld [vmem:[#allocation2 + $0xb8] sm:$0xff]
          %v455 = vld [vmem:[#allocation2 + $0xc0] sm:$0xff]
          %v456 = vld [vmem:[#allocation2 + $0xc8] sm:$0xff]
          %v457 = vld [vmem:[#allocation2 + $0xd0] sm:$0xff]
          %v458 = vld [vmem:[#allocation2 + $0xd8] sm:$0xff]
          %v459 = vld [vmem:[#allocation2 + $0xe0] sm:$0xff]
          %v460 = vld [vmem:[#allocation2 + $0xe8] sm:$0xff]
          %v461 = vld [vmem:[#allocation2 + $0xf0] sm:$0xff]
          %v462 = vld [vmem:[#allocation2 + $0xf8] sm:$0xff]
          %463 = vst [vmem:[#allocation3] sm:$0xff] %v431
          %464 = vst [vmem:[#allocation3 + $0x8] sm:$0xff] %v432
          %465 = vst [vmem:[#allocation3 + $0x10] sm:$0xff] %v433
          %466 = vst [vmem:[#allocation3 + $0x18] sm:$0xff] %v434
          %467 = vst [vmem:[#allocation3 + $0x20] sm:$0xff] %v435
          %468 = vst [vmem:[#allocation3 + $0x28] sm:$0xff] %v436
          %469 = vst [vmem:[#allocation3 + $0x30] sm:$0xff] %v437
          %470 = vst [vmem:[#allocation3 + $0x38] sm:$0xff] %v438
          %471 = vst [vmem:[#allocation3 + $0x40] sm:$0xff] %v439
          %472 = vst [vmem:[#allocation3 + $0x48] sm:$0xff] %v440
          %473 = vst [vmem:[#allocation3 + $0x50] sm:$0xff] %v441
          %474 = vst [vmem:[#allocation3 + $0x58] sm:$0xff] %v442
          %475 = vst [vmem:[#allocation3 + $0x60] sm:$0xff] %v443
          %476 = vst [vmem:[#allocation3 + $0x68] sm:$0xff] %v444
          %477 = vst [vmem:[#allocation3 + $0x70] sm:$0xff] %v445
          %478 = vst [vmem:[#allocation3 + $0x78] sm:$0xff] %v446
          %479 = vst [vmem:[#allocation3 + $0x80] sm:$0xff] %v447
          %480 = vst [vmem:[#allocation3 + $0x88] sm:$0xff] %v448
          %481 = vst [vmem:[#allocation3 + $0x90] sm:$0xff] %v449
          %482 = vst [vmem:[#allocation3 + $0x98] sm:$0xff] %v450
          %483 = vst [vmem:[#allocation3 + $0xa0] sm:$0xff] %v451
          %484 = vst [vmem:[#allocation3 + $0xa8] sm:$0xff] %v452
          %485 = vst [vmem:[#allocation3 + $0xb0] sm:$0xff] %v453
          %486 = vst [vmem:[#allocation3 + $0xb8] sm:$0xff] %v454
          %487 = vst [vmem:[#allocation3 + $0xc0] sm:$0xff] %v455
          %488 = vst [vmem:[#allocation3 + $0xc8] sm:$0xff] %v456
          %489 = vst [vmem:[#allocation3 + $0xd0] sm:$0xff] %v457
          %490 = vst [vmem:[#allocation3 + $0xd8] sm:$0xff] %v458
          %491 = vst [vmem:[#allocation3 + $0xe0] sm:$0xff] %v459
          %492 = vst [vmem:[#allocation3 + $0xe8] sm:$0xff] %v460
          %493 = vst [vmem:[#allocation3 + $0xf0] sm:$0xff] %v461
          %494 = vst [vmem:[#allocation3 + $0xf8] sm:$0xff] %v462
        $region60: #{value_network_forward.2} parent=43 // pred_fallthru
          _
        %v495 = vld [vmem:[#allocation2] sm:$0xff]
        %v496 = vld [vmem:[#allocation2 + $0x8] sm:$0xff]
        %v497 = vld [vmem:[#allocation2 + $0x10] sm:$0xff]
        %v498 = vld [vmem:[#allocation2 + $0x18] sm:$0xff]
        %v499 = vld [vmem:[#allocation2 + $0x20] sm:$0xff]
        %v500 = vld [vmem:[#allocation2 + $0x28] sm:$0xff]
        %v501 = vld [vmem:[#allocation2 + $0x30] sm:$0xff]
        %v502 = vld [vmem:[#allocation2 + $0x38] sm:$0xff]
        %v503 = vld [vmem:[#allocation2 + $0x40] sm:$0xff]
        %v504 = vld [vmem:[#allocation2 + $0x48] sm:$0xff]
        %v505 = vld [vmem:[#allocation2 + $0x50] sm:$0xff]
        %v506 = vld [vmem:[#allocation2 + $0x58] sm:$0xff]
        %v507 = vld [vmem:[#allocation2 + $0x60] sm:$0xff]
        %v508 = vld [vmem:[#allocation2 + $0x68] sm:$0xff]
        %v509 = vld [vmem:[#allocation2 + $0x70] sm:$0xff]
        %v510 = vld [vmem:[#allocation2 + $0x78] sm:$0xff]
        %v511 = vld [vmem:[#allocation2 + $0x80] sm:$0xff]
        %v512 = vld [vmem:[#allocation2 + $0x88] sm:$0xff]
        %v513 = vld [vmem:[#allocation2 + $0x90] sm:$0xff]
        %v514 = vld [vmem:[#allocation2 + $0x98] sm:$0xff]
        %v515 = vld [vmem:[#allocation2 + $0xa0] sm:$0xff]
        %v516 = vld [vmem:[#allocation2 + $0xa8] sm:$0xff]
        %v517 = vld [vmem:[#allocation2 + $0xb0] sm:$0xff]
        %v518 = vld [vmem:[#allocation2 + $0xb8] sm:$0xff]
        %v519 = vld [vmem:[#allocation2 + $0xc0] sm:$0xff]
        %v520 = vld [vmem:[#allocation2 + $0xc8] sm:$0xff]
        %v521 = vld [vmem:[#allocation2 + $0xd0] sm:$0xff]
        %v522 = vld [vmem:[#allocation2 + $0xd8] sm:$0xff]
        %v523 = vld [vmem:[#allocation2 + $0xe0] sm:$0xff]
        %v524 = vld [vmem:[#allocation2 + $0xe8] sm:$0xff]
        %v525 = vld [vmem:[#allocation2 + $0xf0] sm:$0xff]
        %v526 = vld [vmem:[#allocation2 + $0xf8] sm:$0xff]
        %v527 = vld [vmem:[%s1] sm:$0xf]
        %v528 = vld [vmem:[%s1 + $0x4] sm:$0xf]
        %v529 = vld [vmem:[%s1 + $0x8] sm:$0xf]
        %v530 = vld [vmem:[%s1 + $0xc] sm:$0xf]
        %v531 = vld [vmem:[%s1 + $0x10] sm:$0xf]
        %v532 = vld [vmem:[%s1 + $0x14] sm:$0xf]
        %v533 = vld [vmem:[%s1 + $0x18] sm:$0xf]
        %v534 = vld [vmem:[%s1 + $0x1c] sm:$0xf]
        %v535 = vld [vmem:[%s1 + $0x20] sm:$0xf]
        %v536 = vld [vmem:[%s1 + $0x24] sm:$0xf]
        %v537 = vld [vmem:[%s1 + $0x28] sm:$0xf]
        %v538 = vld [vmem:[%s1 + $0x2c] sm:$0xf]
        %v539 = vld [vmem:[%s1 + $0x30] sm:$0xf]
        %v540 = vld [vmem:[%s1 + $0x34] sm:$0xf]
        %v541 = vld [vmem:[%s1 + $0x38] sm:$0xf]
        %v542 = vld [vmem:[%s1 + $0x3c] sm:$0xf]
        %v543 = vrot.slane %v495, 7
        %v544 = vrot.slane %v496, 7
        %v545 = vrot.slane %v497, 7
        %v546 = vrot.slane %v498, 7
        %v547 = vrot.slane %v499, 7
        %v548 = vrot.slane %v500, 7
        %v549 = vrot.slane %v501, 7
        %v550 = vrot.slane %v502, 7
        %v551 = vrot.slane %v503, 7
        %v552 = vrot.slane %v504, 7
        %v553 = vrot.slane %v505, 7
        %v554 = vrot.slane %v506, 7
        %v555 = vrot.slane %v507, 7
        %v556 = vrot.slane %v508, 7
        %v557 = vrot.slane %v509, 7
        %v558 = vrot.slane %v510, 7
        %v559 = vrot.slane %v511, 7
        %v560 = vrot.slane %v512, 7
        %v561 = vrot.slane %v513, 7
        %v562 = vrot.slane %v514, 7
        %v563 = vrot.slane %v515, 7
        %v564 = vrot.slane %v516, 7
        %v565 = vrot.slane %v517, 7
        %v566 = vrot.slane %v518, 7
        %v567 = vrot.slane %v519, 7
        %v568 = vrot.slane %v520, 7
        %v569 = vrot.slane %v521, 7
        %v570 = vrot.slane %v522, 7
        %v571 = vrot.slane %v523, 7
        %v572 = vrot.slane %v524, 7
        %v573 = vrot.slane %v525, 7
        %v574 = vrot.slane %v526, 7
        %v575 = vlaneseq
        %v576 = vshrl.u32 %v575, 7
        %vm577 = vcmp.lt.s32.totalorder %v576, 1
        %v578 = vsel %vm577, %v571, %v573
        %v579 = vsel %vm577, %v572, %v574
        %v580 = vsel %vm577, %v569, %v571
        %v581 = vsel %vm577, %v570, %v572
        %v582 = vsel %vm577, %v567, %v569
        %v583 = vsel %vm577, %v568, %v570
        %v584 = vsel %vm577, %v565, %v567
        %v585 = vsel %vm577, %v566, %v568
        %v586 = vsel %vm577, %v563, %v565
        %v587 = vsel %vm577, %v564, %v566
        %v588 = vsel %vm577, %v561, %v563
        %v589 = vsel %vm577, %v562, %v564
        %v590 = vsel %vm577, %v559, %v561
        %v591 = vsel %vm577, %v560, %v562
        %v592 = vsel %vm577, %v557, %v559
        %v593 = vsel %vm577, %v558, %v560
        %v594 = vsel %vm577, %v555, %v557
        %v595 = vsel %vm577, %v556, %v558
        %v596 = vsel %vm577, %v553, %v555
        %v597 = vsel %vm577, %v554, %v556
        %v598 = vsel %vm577, %v551, %v553
        %v599 = vsel %vm577, %v552, %v554
        %v600 = vsel %vm577, %v549, %v551
        %v601 = vsel %vm577, %v550, %v552
        %v602 = vsel %vm577, %v547, %v549
        %v603 = vsel %vm577, %v548, %v550
        %v604 = vsel %vm577, %v545, %v547
        %v605 = vsel %vm577, %v546, %v548
        %v606 = vsel %vm577, %v543, %v545
        %v607 = vsel %vm577, %v544, %v546
        %v608 = vsel %vm577, %v573, %v543
        %v609 = vsel %vm577, %v574, %v544
        %v610 = vpack.c.bf16 %v608, %v578
        %v611 = vpack.c.bf16 %v609, %v579
        %v612 = vpack.c.bf16 %v604, %v606
        %v613 = vpack.c.bf16 %v605, %v607
        %v614 = vpack.c.bf16 %v600, %v602
        %v615 = vpack.c.bf16 %v601, %v603
        %v616 = vpack.c.bf16 %v596, %v598
        %v617 = vpack.c.bf16 %v597, %v599
        %v618 = vpack.c.bf16 %v592, %v594
        %v619 = vpack.c.bf16 %v593, %v595
        %v620 = vpack.c.bf16 %v588, %v590
        %v621 = vpack.c.bf16 %v589, %v591
        %v622 = vpack.c.bf16 %v584, %v586
        %v623 = vpack.c.bf16 %v585, %v587
        %v624 = vpack.c.bf16 %v580, %v582
        %v625 = vpack.c.bf16 %v581, %v583
        %627 = vset.pattern.permute.xlu0 0
        %628 = vperm.xlu0 %627, %v527
        %v629 = vpop.permute.xlu0 %628
        %v632 = vunpack.c.l.s4 839922192
        %v633 = vunpack.c.0.s8 %v632
        %v634 = vlaneseq
        %v635 = vshrl.u32 %v634, 7
        %v636 = vsub.s32 %v633, %v635
        %v637 = vrot.slane %v629, %v636
        %639 = vset.pattern.permute.xlu0 0
        %640 = vperm.xlu0 %639, %v528
        %v641 = vpop.permute.xlu0 %640
        %v644 = vunpack.c.l.s4 839922192
        %v645 = vunpack.c.0.s8 %v644
        %v646 = vlaneseq
        %v647 = vshrl.u32 %v646, 7
        %v648 = vsub.s32 %v645, %v647
        %v649 = vrot.slane %v641, %v648
        %651 = vset.pattern.permute.xlu0 0
        %652 = vperm.xlu0 %651, %v529
        %v653 = vpop.permute.xlu0 %652
        %v656 = vunpack.c.l.s4 839922192
        %v657 = vunpack.c.0.s8 %v656
        %v658 = vlaneseq
        %v659 = vshrl.u32 %v658, 7
        %v660 = vsub.s32 %v657, %v659
        %v661 = vrot.slane %v653, %v660
        %663 = vset.pattern.permute.xlu0 0
        %664 = vperm.xlu0 %663, %v530
        %v665 = vpop.permute.xlu0 %664
        %v668 = vunpack.c.l.s4 839922192
        %v669 = vunpack.c.0.s8 %v668
        %v670 = vlaneseq
        %v671 = vshrl.u32 %v670, 7
        %v672 = vsub.s32 %v669, %v671
        %v673 = vrot.slane %v665, %v672
        %675 = vset.pattern.permute.xlu0 0
        %676 = vperm.xlu0 %675, %v531
        %v677 = vpop.permute.xlu0 %676
        %v680 = vunpack.c.l.s4 839922192
        %v681 = vunpack.c.0.s8 %v680
        %v682 = vlaneseq
        %v683 = vshrl.u32 %v682, 7
        %v684 = vsub.s32 %v681, %v683
        %v685 = vrot.slane %v677, %v684
        %687 = vset.pattern.permute.xlu0 0
        %688 = vperm.xlu0 %687, %v532
        %v689 = vpop.permute.xlu0 %688
        %v692 = vunpack.c.l.s4 839922192
        %v693 = vunpack.c.0.s8 %v692
        %v694 = vlaneseq
        %v695 = vshrl.u32 %v694, 7
        %v696 = vsub.s32 %v693, %v695
        %v697 = vrot.slane %v689, %v696
        %699 = vset.pattern.permute.xlu0 0
        %700 = vperm.xlu0 %699, %v533
        %v701 = vpop.permute.xlu0 %700
        %v704 = vunpack.c.l.s4 839922192
        %v705 = vunpack.c.0.s8 %v704
        %v706 = vlaneseq
        %v707 = vshrl.u32 %v706, 7
        %v708 = vsub.s32 %v705, %v707
        %v709 = vrot.slane %v701, %v708
        %711 = vset.pattern.permute.xlu0 0
        %712 = vperm.xlu0 %711, %v534
        %v713 = vpop.permute.xlu0 %712
        %v716 = vunpack.c.l.s4 839922192
        %v717 = vunpack.c.0.s8 %v716
        %v718 = vlaneseq
        %v719 = vshrl.u32 %v718, 7
        %v720 = vsub.s32 %v717, %v719
        %v721 = vrot.slane %v713, %v720
        %723 = vset.pattern.permute.xlu0 0
        %724 = vperm.xlu0 %723, %v535
        %v725 = vpop.permute.xlu0 %724
        %v728 = vunpack.c.l.s4 839922192
        %v729 = vunpack.c.0.s8 %v728
        %v730 = vlaneseq
        %v731 = vshrl.u32 %v730, 7
        %v732 = vsub.s32 %v729, %v731
        %v733 = vrot.slane %v725, %v732
        %735 = vset.pattern.permute.xlu0 0
        %736 = vperm.xlu0 %735, %v536
        %v737 = vpop.permute.xlu0 %736
        %v740 = vunpack.c.l.s4 839922192
        %v741 = vunpack.c.0.s8 %v740
        %v742 = vlaneseq
        %v743 = vshrl.u32 %v742, 7
        %v744 = vsub.s32 %v741, %v743
        %v745 = vrot.slane %v737, %v744
        %747 = vset.pattern.permute.xlu0 0
        %748 = vperm.xlu0 %747, %v537
        %v749 = vpop.permute.xlu0 %748
        %v752 = vunpack.c.l.s4 839922192
        %v753 = vunpack.c.0.s8 %v752
        %v754 = vlaneseq
        %v755 = vshrl.u32 %v754, 7
        %v756 = vsub.s32 %v753, %v755
        %v757 = vrot.slane %v749, %v756
        %759 = vset.pattern.permute.xlu0 0
        %760 = vperm.xlu0 %759, %v538
        %v761 = vpop.permute.xlu0 %760
        %v764 = vunpack.c.l.s4 839922192
        %v765 = vunpack.c.0.s8 %v764
        %v766 = vlaneseq
        %v767 = vshrl.u32 %v766, 7
        %v768 = vsub.s32 %v765, %v767
        %v769 = vrot.slane %v761, %v768
        %771 = vset.pattern.permute.xlu0 0
        %772 = vperm.xlu0 %771, %v539
        %v773 = vpop.permute.xlu0 %772
        %v776 = vunpack.c.l.s4 839922192
        %v777 = vunpack.c.0.s8 %v776
        %v778 = vlaneseq
        %v779 = vshrl.u32 %v778, 7
        %v780 = vsub.s32 %v777, %v779
        %v781 = vrot.slane %v773, %v780
        %783 = vset.pattern.permute.xlu0 0
        %784 = vperm.xlu0 %783, %v540
        %v785 = vpop.permute.xlu0 %784
        %v788 = vunpack.c.l.s4 839922192
        %v789 = vunpack.c.0.s8 %v788
        %v790 = vlaneseq
        %v791 = vshrl.u32 %v790, 7
        %v792 = vsub.s32 %v789, %v791
        %v793 = vrot.slane %v785, %v792
        %795 = vset.pattern.permute.xlu0 0
        %796 = vperm.xlu0 %795, %v541
        %v797 = vpop.permute.xlu0 %796
        %v800 = vunpack.c.l.s4 839922192
        %v801 = vunpack.c.0.s8 %v800
        %v802 = vlaneseq
        %v803 = vshrl.u32 %v802, 7
        %v804 = vsub.s32 %v801, %v803
        %v805 = vrot.slane %v797, %v804
        %807 = vset.pattern.permute.xlu0 0
        %808 = vperm.xlu0 %807, %v542
        %v809 = vpop.permute.xlu0 %808
        %v812 = vunpack.c.l.s4 839922192
        %v813 = vunpack.c.0.s8 %v812
        %v814 = vlaneseq
        %v815 = vshrl.u32 %v814, 7
        %v816 = vsub.s32 %v813, %v815
        %v817 = vrot.slane %v809, %v816
        %v834 = vunpack.c.l.b16 %v637
        %v835 = vunpack.c.l.b16 %v649
        %v836 = vunpack.c.l.b16 %v661
        %v837 = vunpack.c.l.b16 %v673
        %v838 = vunpack.c.l.b16 %v685
        %v839 = vunpack.c.l.b16 %v697
        %v840 = vunpack.c.l.b16 %v709
        %v841 = vunpack.c.l.b16 %v721
        %v842 = vunpack.c.l.b16 %v733
        %v843 = vunpack.c.l.b16 %v745
        %v844 = vunpack.c.l.b16 %v757
        %v845 = vunpack.c.l.b16 %v769
        %v846 = vunpack.c.l.b16 %v781
        %v847 = vunpack.c.l.b16 %v793
        %v848 = vunpack.c.l.b16 %v805
        %v849 = vunpack.c.l.b16 %v817
        %v850 = vpack.c.b16 %v835, %v834
        %v851 = vpack.c.b16 %v837, %v836
        %v852 = vpack.c.b16 %v839, %v838
        %v853 = vpack.c.b16 %v841, %v840
        %v854 = vpack.c.b16 %v843, %v842
        %v855 = vpack.c.b16 %v845, %v844
        %v856 = vpack.c.b16 %v847, %v846
        %v857 = vpack.c.b16 %v849, %v848
        %v866 = vmul.bf16 %v610, %v850
        %v867 = vmul.bf16 %v611, %v850
        %v868 = vmul.bf16 %v612, %v851
        %v869 = vmul.bf16 %v613, %v851
        %v870 = vmul.bf16 %v614, %v852
        %v871 = vmul.bf16 %v615, %v852
        %v872 = vmul.bf16 %v616, %v853
        %v873 = vmul.bf16 %v617, %v853
        %v874 = vmul.bf16 %v618, %v854
        %v875 = vmul.bf16 %v619, %v854
        %v876 = vmul.bf16 %v620, %v855
        %v877 = vmul.bf16 %v621, %v855
        %v878 = vmul.bf16 %v622, %v856
        %v879 = vmul.bf16 %v623, %v856
        %v880 = vmul.bf16 %v624, %v857
        %v881 = vmul.bf16 %v625, %v857
        %v882 = vld [vmem:[%s287] sm:$0xff]
        %v883 = vld [vmem:[%s287 + $0x8] sm:$0xff]
        %v884 = vld [vmem:[%s287 + $0x10] sm:$0xff]
        %v885 = vld [vmem:[%s287 + $0x18] sm:$0xff]
        %v886 = vld [vmem:[%s287 + $0x20] sm:$0xff]
        %v887 = vld [vmem:[%s287 + $0x28] sm:$0xff]
        %v888 = vld [vmem:[%s287 + $0x30] sm:$0xff]
        %v889 = vld [vmem:[%s287 + $0x38] sm:$0xff]
        %v890 = vld [vmem:[%s287 + $0x40] sm:$0xff]
        %v891 = vld [vmem:[%s287 + $0x48] sm:$0xff]
        %v892 = vld [vmem:[%s287 + $0x50] sm:$0xff]
        %v893 = vld [vmem:[%s287 + $0x58] sm:$0xff]
        %v894 = vld [vmem:[%s287 + $0x60] sm:$0xff]
        %v895 = vld [vmem:[%s287 + $0x68] sm:$0xff]
        %v896 = vld [vmem:[%s287 + $0x70] sm:$0xff]
        %v897 = vld [vmem:[%s287 + $0x78] sm:$0xff]
        %v898 = vld [vmem:[%s287 + $0x80] sm:$0xff]
        %v899 = vld [vmem:[%s287 + $0x88] sm:$0xff]
        %v900 = vld [vmem:[%s287 + $0x90] sm:$0xff]
        %v901 = vld [vmem:[%s287 + $0x98] sm:$0xff]
        %v902 = vld [vmem:[%s287 + $0xa0] sm:$0xff]
        %v903 = vld [vmem:[%s287 + $0xa8] sm:$0xff]
        %v904 = vld [vmem:[%s287 + $0xb0] sm:$0xff]
        %v905 = vld [vmem:[%s287 + $0xb8] sm:$0xff]
        %v906 = vld [vmem:[%s287 + $0xc0] sm:$0xff]
        %v907 = vld [vmem:[%s287 + $0xc8] sm:$0xff]
        %v908 = vld [vmem:[%s287 + $0xd0] sm:$0xff]
        %v909 = vld [vmem:[%s287 + $0xd8] sm:$0xff]
        %v910 = vld [vmem:[%s287 + $0xe0] sm:$0xff]
        %v911 = vld [vmem:[%s287 + $0xe8] sm:$0xff]
        %v912 = vld [vmem:[%s287 + $0xf0] sm:$0xff]
        %v913 = vld [vmem:[%s287 + $0xf8] sm:$0xff]
        %v914 = vpack.c.bf16 %v495, %v525
        %v915 = vpack.c.bf16 %v496, %v526
        %v916 = vpack.c.bf16 %v499, %v497
        %v917 = vpack.c.bf16 %v500, %v498
        %v918 = vpack.c.bf16 %v503, %v501
        %v919 = vpack.c.bf16 %v504, %v502
        %v920 = vpack.c.bf16 %v507, %v505
        %v921 = vpack.c.bf16 %v508, %v506
        %v922 = vpack.c.bf16 %v511, %v509
        %v923 = vpack.c.bf16 %v512, %v510
        %v924 = vpack.c.bf16 %v515, %v513
        %v925 = vpack.c.bf16 %v516, %v514
        %v926 = vpack.c.bf16 %v519, %v517
        %v927 = vpack.c.bf16 %v520, %v518
        %v928 = vpack.c.bf16 %v523, %v521
        %v929 = vpack.c.bf16 %v524, %v522
        %930 = vset.pattern.permute.xlu0 1
        %931 = vperm.xlu0 %930, %v527
        %v932 = vpop.permute.xlu0 %931
        %v935 = vunpack.c.l.s4 839922192
        %v936 = vunpack.c.0.s8 %v935
        %v937 = vlaneseq
        %v938 = vshrl.u32 %v937, 7
        %v939 = vsub.s32 %v936, %v938
        %v940 = vrot.slane %v932, %v939
        %941 = vset.pattern.permute.xlu0 1
        %942 = vperm.xlu0 %941, %v528
        %v943 = vpop.permute.xlu0 %942
        %v946 = vunpack.c.l.s4 839922192
        %v947 = vunpack.c.0.s8 %v946
        %v948 = vlaneseq
        %v949 = vshrl.u32 %v948, 7
        %v950 = vsub.s32 %v947, %v949
        %v951 = vrot.slane %v943, %v950
        %952 = vset.pattern.permute.xlu0 1
        %953 = vperm.xlu0 %952, %v529
        %v954 = vpop.permute.xlu0 %953
        %v957 = vunpack.c.l.s4 839922192
        %v958 = vunpack.c.0.s8 %v957
        %v959 = vlaneseq
        %v960 = vshrl.u32 %v959, 7
        %v961 = vsub.s32 %v958, %v960
        %v962 = vrot.slane %v954, %v961
        %963 = vset.pattern.permute.xlu0 1
        %964 = vperm.xlu0 %963, %v530
        %v965 = vpop.permute.xlu0 %964
        %v968 = vunpack.c.l.s4 839922192
        %v969 = vunpack.c.0.s8 %v968
        %v970 = vlaneseq
        %v971 = vshrl.u32 %v970, 7
        %v972 = vsub.s32 %v969, %v971
        %v973 = vrot.slane %v965, %v972
        %974 = vset.pattern.permute.xlu0 1
        %975 = vperm.xlu0 %974, %v531
        %v976 = vpop.permute.xlu0 %975
        %v979 = vunpack.c.l.s4 839922192
        %v980 = vunpack.c.0.s8 %v979
        %v981 = vlaneseq
        %v982 = vshrl.u32 %v981, 7
        %v983 = vsub.s32 %v980, %v982
        %v984 = vrot.slane %v976, %v983
        %985 = vset.pattern.permute.xlu0 1
        %986 = vperm.xlu0 %985, %v532
        %v987 = vpop.permute.xlu0 %986
        %v990 = vunpack.c.l.s4 839922192
        %v991 = vunpack.c.0.s8 %v990
        %v992 = vlaneseq
        %v993 = vshrl.u32 %v992, 7
        %v994 = vsub.s32 %v991, %v993
        %v995 = vrot.slane %v987, %v994
        %996 = vset.pattern.permute.xlu0 1
        %997 = vperm.xlu0 %996, %v533
        %v998 = vpop.permute.xlu0 %997
        %v1001 = vunpack.c.l.s4 839922192
        %v1002 = vunpack.c.0.s8 %v1001
        %v1003 = vlaneseq
        %v1004 = vshrl.u32 %v1003, 7
        %v1005 = vsub.s32 %v1002, %v1004
        %v1006 = vrot.slane %v998, %v1005
        %1007 = vset.pattern.permute.xlu0 1
        %1008 = vperm.xlu0 %1007, %v534
        %v1009 = vpop.permute.xlu0 %1008
        %v1012 = vunpack.c.l.s4 839922192
        %v1013 = vunpack.c.0.s8 %v1012
        %v1014 = vlaneseq
        %v1015 = vshrl.u32 %v1014, 7
        %v1016 = vsub.s32 %v1013, %v1015
        %v1017 = vrot.slane %v1009, %v1016
        %1018 = vset.pattern.permute.xlu0 1
        %1019 = vperm.xlu0 %1018, %v535
        %v1020 = vpop.permute.xlu0 %1019
        %v1023 = vunpack.c.l.s4 839922192
        %v1024 = vunpack.c.0.s8 %v1023
        %v1025 = vlaneseq
        %v1026 = vshrl.u32 %v1025, 7
        %v1027 = vsub.s32 %v1024, %v1026
        %v1028 = vrot.slane %v1020, %v1027
        %1029 = vset.pattern.permute.xlu0 1
        %1030 = vperm.xlu0 %1029, %v536
        %v1031 = vpop.permute.xlu0 %1030
        %v1034 = vunpack.c.l.s4 839922192
        %v1035 = vunpack.c.0.s8 %v1034
        %v1036 = vlaneseq
        %v1037 = vshrl.u32 %v1036, 7
        %v1038 = vsub.s32 %v1035, %v1037
        %v1039 = vrot.slane %v1031, %v1038
        %1040 = vset.pattern.permute.xlu0 1
        %1041 = vperm.xlu0 %1040, %v537
        %v1042 = vpop.permute.xlu0 %1041
        %v1045 = vunpack.c.l.s4 839922192
        %v1046 = vunpack.c.0.s8 %v1045
        %v1047 = vlaneseq
        %v1048 = vshrl.u32 %v1047, 7
        %v1049 = vsub.s32 %v1046, %v1048
        %v1050 = vrot.slane %v1042, %v1049
        %1051 = vset.pattern.permute.xlu0 1
        %1052 = vperm.xlu0 %1051, %v538
        %v1053 = vpop.permute.xlu0 %1052
        %v1056 = vunpack.c.l.s4 839922192
        %v1057 = vunpack.c.0.s8 %v1056
        %v1058 = vlaneseq
        %v1059 = vshrl.u32 %v1058, 7
        %v1060 = vsub.s32 %v1057, %v1059
        %v1061 = vrot.slane %v1053, %v1060
        %1062 = vset.pattern.permute.xlu0 1
        %1063 = vperm.xlu0 %1062, %v539
        %v1064 = vpop.permute.xlu0 %1063
        %v1067 = vunpack.c.l.s4 839922192
        %v1068 = vunpack.c.0.s8 %v1067
        %v1069 = vlaneseq
        %v1070 = vshrl.u32 %v1069, 7
        %v1071 = vsub.s32 %v1068, %v1070
        %v1072 = vrot.slane %v1064, %v1071
        %1073 = vset.pattern.permute.xlu0 1
        %1074 = vperm.xlu0 %1073, %v540
        %v1075 = vpop.permute.xlu0 %1074
        %v1078 = vunpack.c.l.s4 839922192
        %v1079 = vunpack.c.0.s8 %v1078
        %v1080 = vlaneseq
        %v1081 = vshrl.u32 %v1080, 7
        %v1082 = vsub.s32 %v1079, %v1081
        %v1083 = vrot.slane %v1075, %v1082
        %1084 = vset.pattern.permute.xlu0 1
        %1085 = vperm.xlu0 %1084, %v541
        %v1086 = vpop.permute.xlu0 %1085
        %v1089 = vunpack.c.l.s4 839922192
        %v1090 = vunpack.c.0.s8 %v1089
        %v1091 = vlaneseq
        %v1092 = vshrl.u32 %v1091, 7
        %v1093 = vsub.s32 %v1090, %v1092
        %v1094 = vrot.slane %v1086, %v1093
        %1095 = vset.pattern.permute.xlu0 1
        %1096 = vperm.xlu0 %1095, %v542
        %v1097 = vpop.permute.xlu0 %1096
        %v1100 = vunpack.c.l.s4 839922192
        %v1101 = vunpack.c.0.s8 %v1100
        %v1102 = vlaneseq
        %v1103 = vshrl.u32 %v1102, 7
        %v1104 = vsub.s32 %v1101, %v1103
        %v1105 = vrot.slane %v1097, %v1104
        %v1122 = vunpack.c.l.b16 %v940
        %v1123 = vunpack.c.l.b16 %v951
        %v1124 = vunpack.c.l.b16 %v962
        %v1125 = vunpack.c.l.b16 %v973
        %v1126 = vunpack.c.l.b16 %v984
        %v1127 = vunpack.c.l.b16 %v995
        %v1128 = vunpack.c.l.b16 %v1006
        %v1129 = vunpack.c.l.b16 %v1017
        %v1130 = vunpack.c.l.b16 %v1028
        %v1131 = vunpack.c.l.b16 %v1039
        %v1132 = vunpack.c.l.b16 %v1050
        %v1133 = vunpack.c.l.b16 %v1061
        %v1134 = vunpack.c.l.b16 %v1072
        %v1135 = vunpack.c.l.b16 %v1083
        %v1136 = vunpack.c.l.b16 %v1094
        %v1137 = vunpack.c.l.b16 %v1105
        %v1138 = vpack.c.b16 %v1123, %v1122
        %v1139 = vpack.c.b16 %v1125, %v1124
        %v1140 = vpack.c.b16 %v1127, %v1126
        %v1141 = vpack.c.b16 %v1129, %v1128
        %v1142 = vpack.c.b16 %v1131, %v1130
        %v1143 = vpack.c.b16 %v1133, %v1132
        %v1144 = vpack.c.b16 %v1135, %v1134
        %v1145 = vpack.c.b16 %v1137, %v1136
        %v1154 = vmul.bf16 %v914, %v1138
        %v1155 = vmul.bf16 %v915, %v1138
        %v1156 = vmul.bf16 %v916, %v1139
        %v1157 = vmul.bf16 %v917, %v1139
        %v1158 = vmul.bf16 %v918, %v1140
        %v1159 = vmul.bf16 %v919, %v1140
        %v1160 = vmul.bf16 %v920, %v1141
        %v1161 = vmul.bf16 %v921, %v1141
        %v1162 = vmul.bf16 %v922, %v1142
        %v1163 = vmul.bf16 %v923, %v1142
        %v1164 = vmul.bf16 %v924, %v1143
        %v1165 = vmul.bf16 %v925, %v1143
        %v1166 = vmul.bf16 %v926, %v1144
        %v1167 = vmul.bf16 %v927, %v1144
        %v1168 = vmul.bf16 %v928, %v1145
        %v1169 = vmul.bf16 %v929, %v1145
        %s1170 = scalar_lea.vmem %s287, 256 [#allocation5]
        %v1171 = vld [vmem:[%s1170] sm:$0xff]
        %v1172 = vld [vmem:[%s1170 + $0x8] sm:$0xff]
        %v1173 = vld [vmem:[%s1170 + $0x10] sm:$0xff]
        %v1174 = vld [vmem:[%s1170 + $0x18] sm:$0xff]
        %v1175 = vld [vmem:[%s1170 + $0x20] sm:$0xff]
        %v1176 = vld [vmem:[%s1170 + $0x28] sm:$0xff]
        %v1177 = vld [vmem:[%s1170 + $0x30] sm:$0xff]
        %v1178 = vld [vmem:[%s1170 + $0x38] sm:$0xff]
        %v1179 = vld [vmem:[%s1170 + $0x40] sm:$0xff]
        %v1180 = vld [vmem:[%s1170 + $0x48] sm:$0xff]
        %v1181 = vld [vmem:[%s1170 + $0x50] sm:$0xff]
        %v1182 = vld [vmem:[%s1170 + $0x58] sm:$0xff]
        %v1183 = vld [vmem:[%s1170 + $0x60] sm:$0xff]
        %v1184 = vld [vmem:[%s1170 + $0x68] sm:$0xff]
        %v1185 = vld [vmem:[%s1170 + $0x70] sm:$0xff]
        %v1186 = vld [vmem:[%s1170 + $0x78] sm:$0xff]
        %v1187 = vld [vmem:[%s1170 + $0x80] sm:$0xff]
        %v1188 = vld [vmem:[%s1170 + $0x88] sm:$0xff]
        %v1189 = vld [vmem:[%s1170 + $0x90] sm:$0xff]
        %v1190 = vld [vmem:[%s1170 + $0x98] sm:$0xff]
        %v1191 = vld [vmem:[%s1170 + $0xa0] sm:$0xff]
        %v1192 = vld [vmem:[%s1170 + $0xa8] sm:$0xff]
        %v1193 = vld [vmem:[%s1170 + $0xb0] sm:$0xff]
        %v1194 = vld [vmem:[%s1170 + $0xb8] sm:$0xff]
        %v1195 = vld [vmem:[%s1170 + $0xc0] sm:$0xff]
        %v1196 = vld [vmem:[%s1170 + $0xc8] sm:$0xff]
        %v1197 = vld [vmem:[%s1170 + $0xd0] sm:$0xff]
        %v1198 = vld [vmem:[%s1170 + $0xd8] sm:$0xff]
        %v1199 = vld [vmem:[%s1170 + $0xe0] sm:$0xff]
        %v1200 = vld [vmem:[%s1170 + $0xe8] sm:$0xff]
        %v1201 = vld [vmem:[%s1170 + $0xf0] sm:$0xff]
        %v1202 = vld [vmem:[%s1170 + $0xf8] sm:$0xff]
        %v1235 = vunpack.c.l.b16 %v1171
        %v1236 = vunpack.c.h.b16 %v1171
        %v1237 = vunpack.c.l.b16 %v1172
        %v1238 = vunpack.c.h.b16 %v1172
        %v1239 = vunpack.c.l.b16 %v1173
        %v1240 = vunpack.c.h.b16 %v1173
        %v1241 = vunpack.c.l.b16 %v1174
        %v1242 = vunpack.c.h.b16 %v1174
        %v1243 = vunpack.c.l.b16 %v1175
        %v1244 = vunpack.c.h.b16 %v1175
        %v1245 = vunpack.c.l.b16 %v1176
        %v1246 = vunpack.c.h.b16 %v1176
        %v1247 = vunpack.c.l.b16 %v1177
        %v1248 = vunpack.c.h.b16 %v1177
        %v1249 = vunpack.c.l.b16 %v1178
        %v1250 = vunpack.c.h.b16 %v1178
        %v1251 = vunpack.c.l.b16 %v1179
        %v1252 = vunpack.c.h.b16 %v1179
        %v1253 = vunpack.c.l.b16 %v1180
        %v1254 = vunpack.c.h.b16 %v1180
        %v1255 = vunpack.c.l.b16 %v1181
        %v1256 = vunpack.c.h.b16 %v1181
        %v1257 = vunpack.c.l.b16 %v1182
        %v1258 = vunpack.c.h.b16 %v1182
        %v1259 = vunpack.c.l.b16 %v1183
        %v1260 = vunpack.c.h.b16 %v1183
        %v1261 = vunpack.c.l.b16 %v1184
        %v1262 = vunpack.c.h.b16 %v1184
        %v1263 = vunpack.c.l.b16 %v1185
        %v1264 = vunpack.c.h.b16 %v1185
        %v1265 = vunpack.c.l.b16 %v1186
        %v1266 = vunpack.c.h.b16 %v1186
        %v1267 = vunpack.c.l.b16 %v1187
        %v1268 = vunpack.c.h.b16 %v1187
        %v1269 = vunpack.c.l.b16 %v1188
        %v1270 = vunpack.c.h.b16 %v1188
        %v1271 = vunpack.c.l.b16 %v1189
        %v1272 = vunpack.c.h.b16 %v1189
        %v1273 = vunpack.c.l.b16 %v1190
        %v1274 = vunpack.c.h.b16 %v1190
        %v1275 = vunpack.c.l.b16 %v1191
        %v1276 = vunpack.c.h.b16 %v1191
        %v1277 = vunpack.c.l.b16 %v1192
        %v1278 = vunpack.c.h.b16 %v1192
        %v1279 = vunpack.c.l.b16 %v1193
        %v1280 = vunpack.c.h.b16 %v1193
        %v1281 = vunpack.c.l.b16 %v1194
        %v1282 = vunpack.c.h.b16 %v1194
        %v1283 = vunpack.c.l.b16 %v1195
        %v1284 = vunpack.c.h.b16 %v1195
        %v1285 = vunpack.c.l.b16 %v1196
        %v1286 = vunpack.c.h.b16 %v1196
        %v1287 = vunpack.c.l.b16 %v1197
        %v1288 = vunpack.c.h.b16 %v1197
        %v1289 = vunpack.c.l.b16 %v1198
        %v1290 = vunpack.c.h.b16 %v1198
        %v1291 = vunpack.c.l.b16 %v1199
        %v1292 = vunpack.c.h.b16 %v1199
        %v1293 = vunpack.c.l.b16 %v1200
        %v1294 = vunpack.c.h.b16 %v1200
        %v1295 = vunpack.c.l.b16 %v1201
        %v1296 = vunpack.c.h.b16 %v1201
        %v1297 = vunpack.c.l.b16 %v1202
        %v1298 = vunpack.c.h.b16 %v1202
        %v1299 = vpack.c.b16 %v1237, %v1235
        %v1300 = vpack.c.b16 %v1238, %v1236
        %v1301 = vpack.c.b16 %v1241, %v1239
        %v1302 = vpack.c.b16 %v1242, %v1240
        %v1303 = vpack.c.b16 %v1245, %v1243
        %v1304 = vpack.c.b16 %v1246, %v1244
        %v1305 = vpack.c.b16 %v1249, %v1247
        %v1306 = vpack.c.b16 %v1250, %v1248
        %v1307 = vpack.c.b16 %v1253, %v1251
        %v1308 = vpack.c.b16 %v1254, %v1252
        %v1309 = vpack.c.b16 %v1257, %v1255
        %v1310 = vpack.c.b16 %v1258, %v1256
        %v1311 = vpack.c.b16 %v1261, %v1259
        %v1312 = vpack.c.b16 %v1262, %v1260
        %v1313 = vpack.c.b16 %v1265, %v1263
        %v1314 = vpack.c.b16 %v1266, %v1264
        %v1315 = vpack.c.b16 %v1269, %v1267
        %v1316 = vpack.c.b16 %v1270, %v1268
        %v1317 = vpack.c.b16 %v1273, %v1271
        %v1318 = vpack.c.b16 %v1274, %v1272
        %v1319 = vpack.c.b16 %v1277, %v1275
        %v1320 = vpack.c.b16 %v1278, %v1276
        %v1321 = vpack.c.b16 %v1281, %v1279
        %v1322 = vpack.c.b16 %v1282, %v1280
        %v1323 = vpack.c.b16 %v1285, %v1283
        %v1324 = vpack.c.b16 %v1286, %v1284
        %v1325 = vpack.c.b16 %v1289, %v1287
        %v1326 = vpack.c.b16 %v1290, %v1288
        %v1327 = vpack.c.b16 %v1293, %v1291
        %v1328 = vpack.c.b16 %v1294, %v1292
        %v1329 = vpack.c.b16 %v1297, %v1295
        %v1330 = vpack.c.b16 %v1298, %v1296
        %1363 = vmatprep.subr.bf16.mxu0 %v1300
        %1364 = vmatpush1.bf16.msra.mxu0 %v1299
        %1365 = vmatprep.subr.bf16.mxu0 %v1302
        %1366 = vmatpush1.bf16.msra.mxu0 %v1301
        %1367 = vmatprep.subr.bf16.mxu0 %v1304
        %1368 = vmatpush1.bf16.msra.mxu0 %v1303
        %1369 = vmatprep.subr.bf16.mxu0 %v1306
        %1370 = vmatpush1.bf16.msra.mxu0 %v1305
        %1371 = vmatprep.subr.bf16.mxu0 %v1308
        %1372 = vmatpush1.bf16.msra.mxu0 %v1307
        %1373 = vmatprep.subr.bf16.mxu0 %v1310
        %1374 = vmatpush1.bf16.msra.mxu0 %v1309
        %1375 = vmatprep.subr.bf16.mxu0 %v1312
        %1376 = vmatpush1.bf16.msra.mxu0 %v1311
        %1377 = vmatprep.subr.bf16.mxu0 %v1314
        %1378 = vmatpush1.bf16.msra.mxu0 %v1313
        %1379 = vmatprep.subr.bf16.mxu0 %v1316
        %1380 = vmatpush1.bf16.msra.mxu0 %v1315
        %1381 = vmatprep.subr.bf16.mxu0 %v1318
        %1382 = vmatpush1.bf16.msra.mxu0 %v1317
        %1383 = vmatprep.subr.bf16.mxu0 %v1320
        %1384 = vmatpush1.bf16.msra.mxu0 %v1319
        %1385 = vmatprep.subr.bf16.mxu0 %v1322
        %1386 = vmatpush1.bf16.msra.mxu0 %v1321
        %1387 = vmatprep.subr.bf16.mxu0 %v1324
        %1388 = vmatpush1.bf16.msra.mxu0 %v1323
        %1389 = vmatprep.subr.bf16.mxu0 %v1326
        %1390 = vmatpush1.bf16.msra.mxu0 %v1325
        %1391 = vmatprep.subr.bf16.mxu0 %v1328
        %1392 = vmatpush1.bf16.msra.mxu0 %v1327
        %1393 = vmatprep.subr.bf16.mxu0 %v1330
        %1394 = vmatpush1.bf16.msra.mxu0 %v1329
        %1395 = vmatprep.mubr.bf16.mxu0 %v1155
        %1396 = vmatmul.mubr.bf16.gmra.mrb[0].mxu0 %v1154
        %v1397 = vpop.f32.mrb[0].mxu0
        %v1398 = vadd.f32 0.0, %v1397
        %v1399 = vpop.f32.mrb[0].mxu0
        %v1400 = vadd.f32 0.0, %v1399
        %v1401 = vpop.f32.mrb[0].mxu0
        %v1402 = vadd.f32 0.0, %v1401
        %v1403 = vpop.f32.mrb[0].mxu0
        %v1404 = vadd.f32 0.0, %v1403
        %1405 = vmatprep.mubr.bf16.mxu0 %v1157
        %1406 = vmatmul.mubr.bf16.gmra.mrb[0].mxu0 %v1156
        %v1407 = vpop.f32.mrb[0].mxu0
        %v1408 = vadd.f32 0.0, %v1407
        %v1409 = vpop.f32.mrb[0].mxu0
        %v1410 = vadd.f32 0.0, %v1409
        %v1411 = vpop.f32.mrb[0].mxu0
        %v1412 = vadd.f32 0.0, %v1411
        %v1413 = vpop.f32.mrb[0].mxu0
        %v1414 = vadd.f32 0.0, %v1413
        %1415 = vmatprep.mubr.bf16.mxu0 %v1159
        %1416 = vmatmul.mubr.bf16.gmra.mrb[0].mxu0 %v1158
        %v1417 = vpop.f32.mrb[0].mxu0
        %v1418 = vadd.f32 0.0, %v1417
        %v1419 = vpop.f32.mrb[0].mxu0
        %v1420 = vadd.f32 0.0, %v1419
        %v1421 = vpop.f32.mrb[0].mxu0
        %v1422 = vadd.f32 0.0, %v1421
        %v1423 = vpop.f32.mrb[0].mxu0
        %v1424 = vadd.f32 0.0, %v1423
        %1425 = vmatprep.mubr.bf16.mxu0 %v1161
        %1426 = vmatmul.mubr.bf16.gmra.mrb[0].mxu0 %v1160
        %v1427 = vpop.f32.mrb[0].mxu0
        %v1428 = vadd.f32 0.0, %v1427
        %v1429 = vpop.f32.mrb[0].mxu0
        %v1430 = vadd.f32 0.0, %v1429
        %v1431 = vpop.f32.mrb[0].mxu0
        %v1432 = vadd.f32 0.0, %v1431
        %v1433 = vpop.f32.mrb[0].mxu0
        %v1434 = vadd.f32 0.0, %v1433
        %1435 = vmatprep.mubr.bf16.mxu0 %v1163
        %1436 = vmatmul.mubr.bf16.gmra.mrb[0].mxu0 %v1162
        %v1437 = vpop.f32.mrb[0].mxu0
        %v1438 = vadd.f32 0.0, %v1437
        %v1439 = vpop.f32.mrb[0].mxu0
        %v1440 = vadd.f32 0.0, %v1439
        %v1441 = vpop.f32.mrb[0].mxu0
        %v1442 = vadd.f32 0.0, %v1441
        %v1443 = vpop.f32.mrb[0].mxu0
        %v1444 = vadd.f32 0.0, %v1443
        %1445 = vmatprep.mubr.bf16.mxu0 %v1165
        %1446 = vmatmul.mubr.bf16.gmra.mrb[0].mxu0 %v1164
        %v1447 = vpop.f32.mrb[0].mxu0
        %v1448 = vadd.f32 0.0, %v1447
        %v1449 = vpop.f32.mrb[0].mxu0
        %v1450 = vadd.f32 0.0, %v1449
        %v1451 = vpop.f32.mrb[0].mxu0
        %v1452 = vadd.f32 0.0, %v1451
        %v1453 = vpop.f32.mrb[0].mxu0
        %v1454 = vadd.f32 0.0, %v1453
        %1455 = vmatprep.mubr.bf16.mxu0 %v1167
        %1456 = vmatmul.mubr.bf16.gmra.mrb[0].mxu0 %v1166
        %v1457 = vpop.f32.mrb[0].mxu0
        %v1458 = vadd.f32 0.0, %v1457
        %v1459 = vpop.f32.mrb[0].mxu0
        %v1460 = vadd.f32 0.0, %v1459
        %v1461 = vpop.f32.mrb[0].mxu0
        %v1462 = vadd.f32 0.0, %v1461
        %v1463 = vpop.f32.mrb[0].mxu0
        %v1464 = vadd.f32 0.0, %v1463
        %1465 = vmatprep.mubr.bf16.mxu0 %v1169
        %1466 = vmatmul.mubr.bf16.gmra.mrb[0].mxu0 %v1168
        %v1467 = vpop.f32.mrb[0].mxu0
        %v1468 = vadd.f32 0.0, %v1467
        %v1469 = vpop.f32.mrb[0].mxu0
        %v1470 = vadd.f32 0.0, %v1469
        %v1471 = vpop.f32.mrb[0].mxu0
        %v1472 = vadd.f32 0.0, %v1471
        %v1473 = vpop.f32.mrb[0].mxu0
        %v1474 = vadd.f32 0.0, %v1473
        %1475 = vdwg.mxu0
        %v1508 = vunpack.c.l.b16 %v882
        %v1509 = vunpack.c.h.b16 %v882
        %v1510 = vunpack.c.l.b16 %v883
        %v1511 = vunpack.c.h.b16 %v883
        %v1512 = vunpack.c.l.b16 %v884
        %v1513 = vunpack.c.h.b16 %v884
        %v1514 = vunpack.c.l.b16 %v885
        %v1515 = vunpack.c.h.b16 %v885
        %v1516 = vunpack.c.l.b16 %v886
        %v1517 = vunpack.c.h.b16 %v886
        %v1518 = vunpack.c.l.b16 %v887
        %v1519 = vunpack.c.h.b16 %v887
        %v1520 = vunpack.c.l.b16 %v888
        %v1521 = vunpack.c.h.b16 %v888
        %v1522 = vunpack.c.l.b16 %v889
        %v1523 = vunpack.c.h.b16 %v889
        %v1524 = vunpack.c.l.b16 %v890
        %v1525 = vunpack.c.h.b16 %v890
        %v1526 = vunpack.c.l.b16 %v891
        %v1527 = vunpack.c.h.b16 %v891
        %v1528 = vunpack.c.l.b16 %v892
        %v1529 = vunpack.c.h.b16 %v892
        %v1530 = vunpack.c.l.b16 %v893
        %v1531 = vunpack.c.h.b16 %v893
        %v1532 = vunpack.c.l.b16 %v894
        %v1533 = vunpack.c.h.b16 %v894
        %v1534 = vunpack.c.l.b16 %v895
        %v1535 = vunpack.c.h.b16 %v895
        %v1536 = vunpack.c.l.b16 %v896
        %v1537 = vunpack.c.h.b16 %v896
        %v1538 = vunpack.c.l.b16 %v897
        %v1539 = vunpack.c.h.b16 %v897
        %v1540 = vunpack.c.l.b16 %v898
        %v1541 = vunpack.c.h.b16 %v898
        %v1542 = vunpack.c.l.b16 %v899
        %v1543 = vunpack.c.h.b16 %v899
        %v1544 = vunpack.c.l.b16 %v900
        %v1545 = vunpack.c.h.b16 %v900
        %v1546 = vunpack.c.l.b16 %v901
        %v1547 = vunpack.c.h.b16 %v901
        %v1548 = vunpack.c.l.b16 %v902
        %v1549 = vunpack.c.h.b16 %v902
        %v1550 = vunpack.c.l.b16 %v903
        %v1551 = vunpack.c.h.b16 %v903
        %v1552 = vunpack.c.l.b16 %v904
        %v1553 = vunpack.c.h.b16 %v904
        %v1554 = vunpack.c.l.b16 %v905
        %v1555 = vunpack.c.h.b16 %v905
        %v1556 = vunpack.c.l.b16 %v906
        %v1557 = vunpack.c.h.b16 %v906
        %v1558 = vunpack.c.l.b16 %v907
        %v1559 = vunpack.c.h.b16 %v907
        %v1560 = vunpack.c.l.b16 %v908
        %v1561 = vunpack.c.h.b16 %v908
        %v1562 = vunpack.c.l.b16 %v909
        %v1563 = vunpack.c.h.b16 %v909
        %v1564 = vunpack.c.l.b16 %v910
        %v1565 = vunpack.c.h.b16 %v910
        %v1566 = vunpack.c.l.b16 %v911
        %v1567 = vunpack.c.h.b16 %v911
        %v1568 = vunpack.c.l.b16 %v912
        %v1569 = vunpack.c.h.b16 %v912
        %v1570 = vunpack.c.l.b16 %v913
        %v1571 = vunpack.c.h.b16 %v913
        %v1572 = vpack.c.b16 %v1510, %v1508
        %v1573 = vpack.c.b16 %v1511, %v1509
        %v1574 = vpack.c.b16 %v1514, %v1512
        %v1575 = vpack.c.b16 %v1515, %v1513
        %v1576 = vpack.c.b16 %v1518, %v1516
        %v1577 = vpack.c.b16 %v1519, %v1517
        %v1578 = vpack.c.b16 %v1522, %v1520
        %v1579 = vpack.c.b16 %v1523, %v1521
        %v1580 = vpack.c.b16 %v1526, %v1524
        %v1581 = vpack.c.b16 %v1527, %v1525
        %v1582 = vpack.c.b16 %v1530, %v1528
        %v1583 = vpack.c.b16 %v1531, %v1529
        %v1584 = vpack.c.b16 %v1534, %v1532
        %v1585 = vpack.c.b16 %v1535, %v1533
        %v1586 = vpack.c.b16 %v1538, %v1536
        %v1587 = vpack.c.b16 %v1539, %v1537
        %v1588 = vpack.c.b16 %v1542, %v1540
        %v1589 = vpack.c.b16 %v1543, %v1541
        %v1590 = vpack.c.b16 %v1546, %v1544
        %v1591 = vpack.c.b16 %v1547, %v1545
        %v1592 = vpack.c.b16 %v1550, %v1548
        %v1593 = vpack.c.b16 %v1551, %v1549
        %v1594 = vpack.c.b16 %v1554, %v1552
        %v1595 = vpack.c.b16 %v1555, %v1553
        %v1596 = vpack.c.b16 %v1558, %v1556
        %v1597 = vpack.c.b16 %v1559, %v1557
        %v1598 = vpack.c.b16 %v1562, %v1560
        %v1599 = vpack.c.b16 %v1563, %v1561
        %v1600 = vpack.c.b16 %v1566, %v1564
        %v1601 = vpack.c.b16 %v1567, %v1565
        %v1602 = vpack.c.b16 %v1570, %v1568
        %v1603 = vpack.c.b16 %v1571, %v1569
        %1636 = vmatprep.subr.bf16.mxu0 %v1573
        %1637 = vmatpush1.bf16.msra.mxu0 %v1572
        %1638 = vmatprep.subr.bf16.mxu0 %v1575
        %1639 = vmatpush1.bf16.msra.mxu0 %v1574
        %1640 = vmatprep.subr.bf16.mxu0 %v1577
        %1641 = vmatpush1.bf16.msra.mxu0 %v1576
        %1642 = vmatprep.subr.bf16.mxu0 %v1579
        %1643 = vmatpush1.bf16.msra.mxu0 %v1578
        %1644 = vmatprep.subr.bf16.mxu0 %v1581
        %1645 = vmatpush1.bf16.msra.mxu0 %v1580
        %1646 = vmatprep.subr.bf16.mxu0 %v1583
        %1647 = vmatpush1.bf16.msra.mxu0 %v1582
        %1648 = vmatprep.subr.bf16.mxu0 %v1585
        %1649 = vmatpush1.bf16.msra.mxu0 %v1584
        %1650 = vmatprep.subr.bf16.mxu0 %v1587
        %1651 = vmatpush1.bf16.msra.mxu0 %v1586
        %1652 = vmatprep.subr.bf16.mxu0 %v1589
        %1653 = vmatpush1.bf16.msra.mxu0 %v1588
        %1654 = vmatprep.subr.bf16.mxu0 %v1591
        %1655 = vmatpush1.bf16.msra.mxu0 %v1590
        %1656 = vmatprep.subr.bf16.mxu0 %v1593
        %1657 = vmatpush1.bf16.msra.mxu0 %v1592
        %1658 = vmatprep.subr.bf16.mxu0 %v1595
        %1659 = vmatpush1.bf16.msra.mxu0 %v1594
        %1660 = vmatprep.subr.bf16.mxu0 %v1597
        %1661 = vmatpush1.bf16.msra.mxu0 %v1596
        %1662 = vmatprep.subr.bf16.mxu0 %v1599
        %1663 = vmatpush1.bf16.msra.mxu0 %v1598
        %1664 = vmatprep.subr.bf16.mxu0 %v1601
        %1665 = vmatpush1.bf16.msra.mxu0 %v1600
        %1666 = vmatprep.subr.bf16.mxu0 %v1603
        %1667 = vmatpush1.bf16.msra.mxu0 %v1602
        %1668 = vmatprep.mubr.bf16.mxu0 %v867
        %1669 = vmatmul.mubr.bf16.gmra.mrb[0].mxu0 %v866
        %v1670 = vpop.f32.mrb[0].mxu0
        %v1671 = vadd.f32 %v1398, %v1670
        %v1672 = vpop.f32.mrb[0].mxu0
        %v1673 = vadd.f32 %v1400, %v1672
        %v1674 = vpop.f32.mrb[0].mxu0
        %v1675 = vadd.f32 %v1402, %v1674
        %v1676 = vpop.f32.mrb[0].mxu0
        %v1677 = vadd.f32 %v1404, %v1676
        %1678 = vmatprep.mubr.bf16.mxu0 %v869
        %1679 = vmatmul.mubr.bf16.gmra.mrb[0].mxu0 %v868
        %v1680 = vpop.f32.mrb[0].mxu0
        %v1681 = vadd.f32 %v1408, %v1680
        %v1682 = vpop.f32.mrb[0].mxu0
        %v1683 = vadd.f32 %v1410, %v1682
        %v1684 = vpop.f32.mrb[0].mxu0
        %v1685 = vadd.f32 %v1412, %v1684
        %v1686 = vpop.f32.mrb[0].mxu0
        %v1687 = vadd.f32 %v1414, %v1686
        %1688 = vmatprep.mubr.bf16.mxu0 %v871
        %1689 = vmatmul.mubr.bf16.gmra.mrb[0].mxu0 %v870
        %v1690 = vpop.f32.mrb[0].mxu0
        %v1691 = vadd.f32 %v1418, %v1690
        %v1692 = vpop.f32.mrb[0].mxu0
        %v1693 = vadd.f32 %v1420, %v1692
        %v1694 = vpop.f32.mrb[0].mxu0
        %v1695 = vadd.f32 %v1422, %v1694
        %v1696 = vpop.f32.mrb[0].mxu0
        %v1697 = vadd.f32 %v1424, %v1696
        %1698 = vmatprep.mubr.bf16.mxu0 %v873
        %1699 = vmatmul.mubr.bf16.gmra.mrb[0].mxu0 %v872
        %v1700 = vpop.f32.mrb[0].mxu0
        %v1701 = vadd.f32 %v1428, %v1700
        %v1702 = vpop.f32.mrb[0].mxu0
        %v1703 = vadd.f32 %v1430, %v1702
        %v1704 = vpop.f32.mrb[0].mxu0
        %v1705 = vadd.f32 %v1432, %v1704
        %v1706 = vpop.f32.mrb[0].mxu0
        %v1707 = vadd.f32 %v1434, %v1706
        %1708 = vmatprep.mubr.bf16.mxu0 %v875
        %1709 = vmatmul.mubr.bf16.gmra.mrb[0].mxu0 %v874
        %v1710 = vpop.f32.mrb[0].mxu0
        %v1711 = vadd.f32 %v1438, %v1710
        %v1712 = vpop.f32.mrb[0].mxu0
        %v1713 = vadd.f32 %v1440, %v1712
        %v1714 = vpop.f32.mrb[0].mxu0
        %v1715 = vadd.f32 %v1442, %v1714
        %v1716 = vpop.f32.mrb[0].mxu0
        %v1717 = vadd.f32 %v1444, %v1716
        %1718 = vmatprep.mubr.bf16.mxu0 %v877
        %1719 = vmatmul.mubr.bf16.gmra.mrb[0].mxu0 %v876
        %v1720 = vpop.f32.mrb[0].mxu0
        %v1721 = vadd.f32 %v1448, %v1720
        %v1722 = vpop.f32.mrb[0].mxu0
        %v1723 = vadd.f32 %v1450, %v1722
        %v1724 = vpop.f32.mrb[0].mxu0
        %v1725 = vadd.f32 %v1452, %v1724
        %v1726 = vpop.f32.mrb[0].mxu0
        %v1727 = vadd.f32 %v1454, %v1726
        %1728 = vmatprep.mubr.bf16.mxu0 %v879
        %1729 = vmatmul.mubr.bf16.gmra.mrb[0].mxu0 %v878
        %v1730 = vpop.f32.mrb[0].mxu0
        %v1731 = vadd.f32 %v1458, %v1730
        %v1732 = vpop.f32.mrb[0].mxu0
        %v1733 = vadd.f32 %v1460, %v1732
        %v1734 = vpop.f32.mrb[0].mxu0
        %v1735 = vadd.f32 %v1462, %v1734
        %v1736 = vpop.f32.mrb[0].mxu0
        %v1737 = vadd.f32 %v1464, %v1736
        %1738 = vmatprep.mubr.bf16.mxu0 %v881
        %1739 = vmatmul.mubr.bf16.gmra.mrb[0].mxu0 %v880
        %v1740 = vpop.f32.mrb[0].mxu0
        %v1741 = vadd.f32 %v1468, %v1740
        %v1742 = vpop.f32.mrb[0].mxu0
        %v1743 = vadd.f32 %v1470, %v1742
        %v1744 = vpop.f32.mrb[0].mxu0
        %v1745 = vadd.f32 %v1472, %v1744
        %v1746 = vpop.f32.mrb[0].mxu0
        %v1747 = vadd.f32 %v1474, %v1746
        %1748 = vdwg.mxu0
        %v1749 = vrot.slane %v495, 1
        %v1750 = vrot.slane %v496, 1
        %v1751 = vrot.slane %v497, 1
        %v1752 = vrot.slane %v498, 1
        %v1753 = vrot.slane %v499, 1
        %v1754 = vrot.slane %v500, 1
        %v1755 = vrot.slane %v501, 1
        %v1756 = vrot.slane %v502, 1
        %v1757 = vrot.slane %v503, 1
        %v1758 = vrot.slane %v504, 1
        %v1759 = vrot.slane %v505, 1
        %v1760 = vrot.slane %v506, 1
        %v1761 = vrot.slane %v507, 1
        %v1762 = vrot.slane %v508, 1
        %v1763 = vrot.slane %v509, 1
        %v1764 = vrot.slane %v510, 1
        %v1765 = vrot.slane %v511, 1
        %v1766 = vrot.slane %v512, 1
        %v1767 = vrot.slane %v513, 1
        %v1768 = vrot.slane %v514, 1
        %v1769 = vrot.slane %v515, 1
        %v1770 = vrot.slane %v516, 1
        %v1771 = vrot.slane %v517, 1
        %v1772 = vrot.slane %v518, 1
        %v1773 = vrot.slane %v519, 1
        %v1774 = vrot.slane %v520, 1
        %v1775 = vrot.slane %v521, 1
        %v1776 = vrot.slane %v522, 1
        %v1777 = vrot.slane %v523, 1
        %v1778 = vrot.slane %v524, 1
        %v1779 = vrot.slane %v525, 1
        %v1780 = vrot.slane %v526, 1
        %vm1781 = vcmp.lt.s32.totalorder %v576, 7
        %v1782 = vsel %vm1781, %v1777, %v1779
        %v1783 = vsel %vm1781, %v1778, %v1780
        %v1784 = vsel %vm1781, %v1775, %v1777
        %v1785 = vsel %vm1781, %v1776, %v1778
        %v1786 = vsel %vm1781, %v1773, %v1775
        %v1787 = vsel %vm1781, %v1774, %v1776
        %v1788 = vsel %vm1781, %v1771, %v1773
        %v1789 = vsel %vm1781, %v1772, %v1774
        %v1790 = vsel %vm1781, %v1769, %v1771
        %v1791 = vsel %vm1781, %v1770, %v1772
        %v1792 = vsel %vm1781, %v1767, %v1769
        %v1793 = vsel %vm1781, %v1768, %v1770
        %v1794 = vsel %vm1781, %v1765, %v1767
        %v1795 = vsel %vm1781, %v1766, %v1768
        %v1796 = vsel %vm1781, %v1763, %v1765
        %v1797 = vsel %vm1781, %v1764, %v1766
        %v1798 = vsel %vm1781, %v1761, %v1763
        %v1799 = vsel %vm1781, %v1762, %v1764
        %v1800 = vsel %vm1781, %v1759, %v1761
        %v1801 = vsel %vm1781, %v1760, %v1762
        %v1802 = vsel %vm1781, %v1757, %v1759
        %v1803 = vsel %vm1781, %v1758, %v1760
        %v1804 = vsel %vm1781, %v1755, %v1757
        %v1805 = vsel %vm1781, %v1756, %v1758
        %v1806 = vsel %vm1781, %v1753, %v1755
        %v1807 = vsel %vm1781, %v1754, %v1756
        %v1808 = vsel %vm1781, %v1751, %v1753
        %v1809 = vsel %vm1781, %v1752, %v1754
        %v1810 = vsel %vm1781, %v1749, %v1751
        %v1811 = vsel %vm1781, %v1750, %v1752
        %v1812 = vsel %vm1781, %v1779, %v1749
        %v1813 = vsel %vm1781, %v1780, %v1750
        %v1814 = vpack.c.bf16 %v1810, %v1812
        %v1815 = vpack.c.bf16 %v1811, %v1813
        %v1816 = vpack.c.bf16 %v1806, %v1808
        %v1817 = vpack.c.bf16 %v1807, %v1809
        %v1818 = vpack.c.bf16 %v1802, %v1804
        %v1819 = vpack.c.bf16 %v1803, %v1805
        %v1820 = vpack.c.bf16 %v1798, %v1800
        %v1821 = vpack.c.bf16 %v1799, %v1801
        %v1822 = vpack.c.bf16 %v1794, %v1796
        %v1823 = vpack.c.bf16 %v1795, %v1797
        %v1824 = vpack.c.bf16 %v1790, %v1792
        %v1825 = vpack.c.bf16 %v1791, %v1793
        %v1826 = vpack.c.bf16 %v1786, %v1788
        %v1827 = vpack.c.bf16 %v1787, %v1789
        %v1828 = vpack.c.bf16 %v1782, %v1784
        %v1829 = vpack.c.bf16 %v1783, %v1785
        %1830 = vset.pattern.permute.xlu0 2
        %1831 = vperm.xlu0 %1830, %v527
        %v1832 = vpop.permute.xlu0 %1831
        %v1835 = vunpack.c.l.s4 839922192
        %v1836 = vunpack.c.0.s8 %v1835
        %v1837 = vlaneseq
        %v1838 = vshrl.u32 %v1837, 7
        %v1839 = vsub.s32 %v1836, %v1838
        %v1840 = vrot.slane %v1832, %v1839
        %1841 = vset.pattern.permute.xlu0 2
        %1842 = vperm.xlu0 %1841, %v528
        %v1843 = vpop.permute.xlu0 %1842
        %v1846 = vunpack.c.l.s4 839922192
        %v1847 = vunpack.c.0.s8 %v1846
        %v1848 = vlaneseq
        %v1849 = vshrl.u32 %v1848, 7
        %v1850 = vsub.s32 %v1847, %v1849
        %v1851 = vrot.slane %v1843, %v1850
        %1852 = vset.pattern.permute.xlu0 2
        %1853 = vperm.xlu0 %1852, %v529
        %v1854 = vpop.permute.xlu0 %1853
        %v1857 = vunpack.c.l.s4 839922192
        %v1858 = vunpack.c.0.s8 %v1857
        %v1859 = vlaneseq
        %v1860 = vshrl.u32 %v1859, 7
        %v1861 = vsub.s32 %v1858, %v1860
        %v1862 = vrot.slane %v1854, %v1861
        %1863 = vset.pattern.permute.xlu0 2
        %1864 = vperm.xlu0 %1863, %v530
        %v1865 = vpop.permute.xlu0 %1864
        %v1868 = vunpack.c.l.s4 839922192
        %v1869 = vunpack.c.0.s8 %v1868
        %v1870 = vlaneseq
        %v1871 = vshrl.u32 %v1870, 7
        %v1872 = vsub.s32 %v1869, %v1871
        %v1873 = vrot.slane %v1865, %v1872
        %1874 = vset.pattern.permute.xlu0 2
        %1875 = vperm.xlu0 %1874, %v531
        %v1876 = vpop.permute.xlu0 %1875
        %v1879 = vunpack.c.l.s4 839922192
        %v1880 = vunpack.c.0.s8 %v1879
        %v1881 = vlaneseq
        %v1882 = vshrl.u32 %v1881, 7
        %v1883 = vsub.s32 %v1880, %v1882
        %v1884 = vrot.slane %v1876, %v1883
        %1885 = vset.pattern.permute.xlu0 2
        %1886 = vperm.xlu0 %1885, %v532
        %v1887 = vpop.permute.xlu0 %1886
        %v1890 = vunpack.c.l.s4 839922192
        %v1891 = vunpack.c.0.s8 %v1890
        %v1892 = vlaneseq
        %v1893 = vshrl.u32 %v1892, 7
        %v1894 = vsub.s32 %v1891, %v1893
        %v1895 = vrot.slane %v1887, %v1894
        %1896 = vset.pattern.permute.xlu0 2
        %1897 = vperm.xlu0 %1896, %v533
        %v1898 = vpop.permute.xlu0 %1897
        %v1901 = vunpack.c.l.s4 839922192
        %v1902 = vunpack.c.0.s8 %v1901
        %v1903 = vlaneseq
        %v1904 = vshrl.u32 %v1903, 7
        %v1905 = vsub.s32 %v1902, %v1904
        %v1906 = vrot.slane %v1898, %v1905
        %1907 = vset.pattern.permute.xlu0 2
        %1908 = vperm.xlu0 %1907, %v534
        %v1909 = vpop.permute.xlu0 %1908
        %v1912 = vunpack.c.l.s4 839922192
        %v1913 = vunpack.c.0.s8 %v1912
        %v1914 = vlaneseq
        %v1915 = vshrl.u32 %v1914, 7
        %v1916 = vsub.s32 %v1913, %v1915
        %v1917 = vrot.slane %v1909, %v1916
        %1918 = vset.pattern.permute.xlu0 2
        %1919 = vperm.xlu0 %1918, %v535
        %v1920 = vpop.permute.xlu0 %1919
        %v1923 = vunpack.c.l.s4 839922192
        %v1924 = vunpack.c.0.s8 %v1923
        %v1925 = vlaneseq
        %v1926 = vshrl.u32 %v1925, 7
        %v1927 = vsub.s32 %v1924, %v1926
        %v1928 = vrot.slane %v1920, %v1927
        %1929 = vset.pattern.permute.xlu0 2
        %1930 = vperm.xlu0 %1929, %v536
        %v1931 = vpop.permute.xlu0 %1930
        %v1934 = vunpack.c.l.s4 839922192
        %v1935 = vunpack.c.0.s8 %v1934
        %v1936 = vlaneseq
        %v1937 = vshrl.u32 %v1936, 7
        %v1938 = vsub.s32 %v1935, %v1937
        %v1939 = vrot.slane %v1931, %v1938
        %1940 = vset.pattern.permute.xlu0 2
        %1941 = vperm.xlu0 %1940, %v537
        %v1942 = vpop.permute.xlu0 %1941
        %v1945 = vunpack.c.l.s4 839922192
        %v1946 = vunpack.c.0.s8 %v1945
        %v1947 = vlaneseq
        %v1948 = vshrl.u32 %v1947, 7
        %v1949 = vsub.s32 %v1946, %v1948
        %v1950 = vrot.slane %v1942, %v1949
        %1951 = vset.pattern.permute.xlu0 2
        %1952 = vperm.xlu0 %1951, %v538
        %v1953 = vpop.permute.xlu0 %1952
        %v1956 = vunpack.c.l.s4 839922192
        %v1957 = vunpack.c.0.s8 %v1956
        %v1958 = vlaneseq
        %v1959 = vshrl.u32 %v1958, 7
        %v1960 = vsub.s32 %v1957, %v1959
        %v1961 = vrot.slane %v1953, %v1960
        %1962 = vset.pattern.permute.xlu0 2
        %1963 = vperm.xlu0 %1962, %v539
        %v1964 = vpop.permute.xlu0 %1963
        %v1967 = vunpack.c.l.s4 839922192
        %v1968 = vunpack.c.0.s8 %v1967
        %v1969 = vlaneseq
        %v1970 = vshrl.u32 %v1969, 7
        %v1971 = vsub.s32 %v1968, %v1970
        %v1972 = vrot.slane %v1964, %v1971
        %1973 = vset.pattern.permute.xlu0 2
        %1974 = vperm.xlu0 %1973, %v540
        %v1975 = vpop.permute.xlu0 %1974
        %v1978 = vunpack.c.l.s4 839922192
        %v1979 = vunpack.c.0.s8 %v1978
        %v1980 = vlaneseq
        %v1981 = vshrl.u32 %v1980, 7
        %v1982 = vsub.s32 %v1979, %v1981
        %v1983 = vrot.slane %v1975, %v1982
        %1984 = vset.pattern.permute.xlu0 2
        %1985 = vperm.xlu0 %1984, %v541
        %v1986 = vpop.permute.xlu0 %1985
        %v1989 = vunpack.c.l.s4 839922192
        %v1990 = vunpack.c.0.s8 %v1989
        %v1991 = vlaneseq
        %v1992 = vshrl.u32 %v1991, 7
        %v1993 = vsub.s32 %v1990, %v1992
        %v1994 = vrot.slane %v1986, %v1993
        %1995 = vset.pattern.permute.xlu0 2
        %1996 = vperm.xlu0 %1995, %v542
        %v1997 = vpop.permute.xlu0 %1996
        %v2000 = vunpack.c.l.s4 839922192
        %v2001 = vunpack.c.0.s8 %v2000
        %v2002 = vlaneseq
        %v2003 = vshrl.u32 %v2002, 7
        %v2004 = vsub.s32 %v2001, %v2003
        %v2005 = vrot.slane %v1997, %v2004
        %v2022 = vunpack.c.l.b16 %v1840
        %v2023 = vunpack.c.l.b16 %v1851
        %v2024 = vunpack.c.l.b16 %v1862
        %v2025 = vunpack.c.l.b16 %v1873
        %v2026 = vunpack.c.l.b16 %v1884
        %v2027 = vunpack.c.l.b16 %v1895
        %v2028 = vunpack.c.l.b16 %v1906
        %v2029 = vunpack.c.l.b16 %v1917
        %v2030 = vunpack.c.l.b16 %v1928
        %v2031 = vunpack.c.l.b16 %v1939
        %v2032 = vunpack.c.l.b16 %v1950
        %v2033 = vunpack.c.l.b16 %v1961
        %v2034 = vunpack.c.l.b16 %v1972
        %v2035 = vunpack.c.l.b16 %v1983
        %v2036 = vunpack.c.l.b16 %v1994
        %v2037 = vunpack.c.l.b16 %v2005
        %v2038 = vpack.c.b16 %v2023, %v2022
        %v2039 = vpack.c.b16 %v2025, %v2024
        %v2040 = vpack.c.b16 %v2027, %v2026
        %v2041 = vpack.c.b16 %v2029, %v2028
        %v2042 = vpack.c.b16 %v2031, %v2030
        %v2043 = vpack.c.b16 %v2033, %v2032
        %v2044 = vpack.c.b16 %v2035, %v2034
        %v2045 = vpack.c.b16 %v2037, %v2036
        %v2054 = vmul.bf16 %v1814, %v2038
        %v2055 = vmul.bf16 %v1815, %v2038
        %v2056 = vmul.bf16 %v1816, %v2039
        %v2057 = vmul.bf16 %v1817, %v2039
        %v2058 = vmul.bf16 %v1818, %v2040
        %v2059 = vmul.bf16 %v1819, %v2040
        %v2060 = vmul.bf16 %v1820, %v2041
        %v2061 = vmul.bf16 %v1821, %v2041
        %v2062 = vmul.bf16 %v1822, %v2042
        %v2063 = vmul.bf16 %v1823, %v2042
        %v2064 = vmul.bf16 %v1824, %v2043
        %v2065 = vmul.bf16 %v1825, %v2043
        %v2066 = vmul.bf16 %v1826, %v2044
        %v2067 = vmul.bf16 %v1827, %v2044
        %v2068 = vmul.bf16 %v1828, %v2045
        %v2069 = vmul.bf16 %v1829, %v2045
        %s2070 = scalar_lea.vmem %s287, 512 [#allocation5]
        %v2071 = vld [vmem:[%s2070] sm:$0xff]
        %v2072 = vld [vmem:[%s2070 + $0x8] sm:$0xff]
        %v2073 = vld [vmem:[%s2070 + $0x10] sm:$0xff]
        %v2074 = vld [vmem:[%s2070 + $0x18] sm:$0xff]
        %v2075 = vld [vmem:[%s2070 + $0x20] sm:$0xff]
        %v2076 = vld [vmem:[%s2070 + $0x28] sm:$0xff]
        %v2077 = vld [vmem:[%s2070 + $0x30] sm:$0xff]
        %v2078 = vld [vmem:[%s2070 + $0x38] sm:$0xff]
        %v2079 = vld [vmem:[%s2070 + $0x40] sm:$0xff]
        %v2080 = vld [vmem:[%s2070 + $0x48] sm:$0xff]
        %v2081 = vld [vmem:[%s2070 + $0x50] sm:$0xff]
        %v2082 = vld [vmem:[%s2070 + $0x58] sm:$0xff]
        %v2083 = vld [vmem:[%s2070 + $0x60] sm:$0xff]
        %v2084 = vld [vmem:[%s2070 + $0x68] sm:$0xff]
        %v2085 = vld [vmem:[%s2070 + $0x70] sm:$0xff]
        %v2086 = vld [vmem:[%s2070 + $0x78] sm:$0xff]
        %v2087 = vld [vmem:[%s2070 + $0x80] sm:$0xff]
        %v2088 = vld [vmem:[%s2070 + $0x88] sm:$0xff]
        %v2089 = vld [vmem:[%s2070 + $0x90] sm:$0xff]
        %v2090 = vld [vmem:[%s2070 + $0x98] sm:$0xff]
        %v2091 = vld [vmem:[%s2070 + $0xa0] sm:$0xff]
        %v2092 = vld [vmem:[%s2070 + $0xa8] sm:$0xff]
        %v2093 = vld [vmem:[%s2070 + $0xb0] sm:$0xff]
        %v2094 = vld [vmem:[%s2070 + $0xb8] sm:$0xff]
        %v2095 = vld [vmem:[%s2070 + $0xc0] sm:$0xff]
        %v2096 = vld [vmem:[%s2070 + $0xc8] sm:$0xff]
        %v2097 = vld [vmem:[%s2070 + $0xd0] sm:$0xff]
        %v2098 = vld [vmem:[%s2070 + $0xd8] sm:$0xff]
        %v2099 = vld [vmem:[%s2070 + $0xe0] sm:$0xff]
        %v2100 = vld [vmem:[%s2070 + $0xe8] sm:$0xff]
        %v2101 = vld [vmem:[%s2070 + $0xf0] sm:$0xff]
        %v2102 = vld [vmem:[%s2070 + $0xf8] sm:$0xff]
        %v2135 = vunpack.c.l.b16 %v2071
        %v2136 = vunpack.c.h.b16 %v2071
        %v2137 = vunpack.c.l.b16 %v2072
        %v2138 = vunpack.c.h.b16 %v2072
        %v2139 = vunpack.c.l.b16 %v2073
        %v2140 = vunpack.c.h.b16 %v2073
        %v2141 = vunpack.c.l.b16 %v2074
        %v2142 = vunpack.c.h.b16 %v2074
        %v2143 = vunpack.c.l.b16 %v2075
        %v2144 = vunpack.c.h.b16 %v2075
        %v2145 = vunpack.c.l.b16 %v2076
        %v2146 = vunpack.c.h.b16 %v2076
        %v2147 = vunpack.c.l.b16 %v2077
        %v2148 = vunpack.c.h.b16 %v2077
        %v2149 = vunpack.c.l.b16 %v2078
        %v2150 = vunpack.c.h.b16 %v2078
        %v2151 = vunpack.c.l.b16 %v2079
        %v2152 = vunpack.c.h.b16 %v2079
        %v2153 = vunpack.c.l.b16 %v2080
        %v2154 = vunpack.c.h.b16 %v2080
        %v2155 = vunpack.c.l.b16 %v2081
        %v2156 = vunpack.c.h.b16 %v2081
        %v2157 = vunpack.c.l.b16 %v2082
        %v2158 = vunpack.c.h.b16 %v2082
        %v2159 = vunpack.c.l.b16 %v2083
        %v2160 = vunpack.c.h.b16 %v2083
        %v2161 = vunpack.c.l.b16 %v2084
        %v2162 = vunpack.c.h.b16 %v2084
        %v2163 = vunpack.c.l.b16 %v2085
        %v2164 = vunpack.c.h.b16 %v2085
        %v2165 = vunpack.c.l.b16 %v2086
        %v2166 = vunpack.c.h.b16 %v2086
        %v2167 = vunpack.c.l.b16 %v2087
        %v2168 = vunpack.c.h.b16 %v2087
        %v2169 = vunpack.c.l.b16 %v2088
        %v2170 = vunpack.c.h.b16 %v2088
        %v2171 = vunpack.c.l.b16 %v2089
        %v2172 = vunpack.c.h.b16 %v2089
        %v2173 = vunpack.c.l.b16 %v2090
        %v2174 = vunpack.c.h.b16 %v2090
        %v2175 = vunpack.c.l.b16 %v2091
        %v2176 = vunpack.c.h.b16 %v2091
        %v2177 = vunpack.c.l.b16 %v2092
        %v2178 = vunpack.c.h.b16 %v2092
        %v2179 = vunpack.c.l.b16 %v2093
        %v2180 = vunpack.c.h.b16 %v2093
        %v2181 = vunpack.c.l.b16 %v2094
        %v2182 = vunpack.c.h.b16 %v2094
        %v2183 = vunpack.c.l.b16 %v2095
        %v2184 = vunpack.c.h.b16 %v2095
        %v2185 = vunpack.c.l.b16 %v2096
        %v2186 = vunpack.c.h.b16 %v2096
        %v2187 = vunpack.c.l.b16 %v2097
        %v2188 = vunpack.c.h.b16 %v2097
        %v2189 = vunpack.c.l.b16 %v2098
        %v2190 = vunpack.c.h.b16 %v2098
        %v2191 = vunpack.c.l.b16 %v2099
        %v2192 = vunpack.c.h.b16 %v2099
        %v2193 = vunpack.c.l.b16 %v2100
        %v2194 = vunpack.c.h.b16 %v2100
        %v2195 = vunpack.c.l.b16 %v2101
        %v2196 = vunpack.c.h.b16 %v2101
        %v2197 = vunpack.c.l.b16 %v2102
        %v2198 = vunpack.c.h.b16 %v2102
        %v2199 = vpack.c.b16 %v2137, %v2135
        %v2200 = vpack.c.b16 %v2138, %v2136
        %v2201 = vpack.c.b16 %v2141, %v2139
        %v2202 = vpack.c.b16 %v2142, %v2140
        %v2203 = vpack.c.b16 %v2145, %v2143
        %v2204 = vpack.c.b16 %v2146, %v2144
        %v2205 = vpack.c.b16 %v2149, %v2147
        %v2206 = vpack.c.b16 %v2150, %v2148
        %v2207 = vpack.c.b16 %v2153, %v2151
        %v2208 = vpack.c.b16 %v2154, %v2152
        %v2209 = vpack.c.b16 %v2157, %v2155
        %v2210 = vpack.c.b16 %v2158, %v2156
        %v2211 = vpack.c.b16 %v2161, %v2159
        %v2212 = vpack.c.b16 %v2162, %v2160
        %v2213 = vpack.c.b16 %v2165, %v2163
        %v2214 = vpack.c.b16 %v2166, %v2164
        %v2215 = vpack.c.b16 %v2169, %v2167
        %v2216 = vpack.c.b16 %v2170, %v2168
        %v2217 = vpack.c.b16 %v2173, %v2171
        %v2218 = vpack.c.b16 %v2174, %v2172
        %v2219 = vpack.c.b16 %v2177, %v2175
        %v2220 = vpack.c.b16 %v2178, %v2176
        %v2221 = vpack.c.b16 %v2181, %v2179
        %v2222 = vpack.c.b16 %v2182, %v2180
        %v2223 = vpack.c.b16 %v2185, %v2183
        %v2224 = vpack.c.b16 %v2186, %v2184
        %v2225 = vpack.c.b16 %v2189, %v2187
        %v2226 = vpack.c.b16 %v2190, %v2188
        %v2227 = vpack.c.b16 %v2193, %v2191
        %v2228 = vpack.c.b16 %v2194, %v2192
        %v2229 = vpack.c.b16 %v2197, %v2195
        %v2230 = vpack.c.b16 %v2198, %v2196
        %2263 = vmatprep.subr.bf16.mxu0 %v2200
        %2264 = vmatpush1.bf16.msra.mxu0 %v2199
        %2265 = vmatprep.subr.bf16.mxu0 %v2202
        %2266 = vmatpush1.bf16.msra.mxu0 %v2201
        %2267 = vmatprep.subr.bf16.mxu0 %v2204
        %2268 = vmatpush1.bf16.msra.mxu0 %v2203
        %2269 = vmatprep.subr.bf16.mxu0 %v2206
        %2270 = vmatpush1.bf16.msra.mxu0 %v2205
        %2271 = vmatprep.subr.bf16.mxu0 %v2208
        %2272 = vmatpush1.bf16.msra.mxu0 %v2207
        %2273 = vmatprep.subr.bf16.mxu0 %v2210
        %2274 = vmatpush1.bf16.msra.mxu0 %v2209
        %2275 = vmatprep.subr.bf16.mxu0 %v2212
        %2276 = vmatpush1.bf16.msra.mxu0 %v2211
        %2277 = vmatprep.subr.bf16.mxu0 %v2214
        %2278 = vmatpush1.bf16.msra.mxu0 %v2213
        %2279 = vmatprep.subr.bf16.mxu0 %v2216
        %2280 = vmatpush1.bf16.msra.mxu0 %v2215
        %2281 = vmatprep.subr.bf16.mxu0 %v2218
        %2282 = vmatpush1.bf16.msra.mxu0 %v2217
        %2283 = vmatprep.subr.bf16.mxu0 %v2220
        %2284 = vmatpush1.bf16.msra.mxu0 %v2219
        %2285 = vmatprep.subr.bf16.mxu0 %v2222
        %2286 = vmatpush1.bf16.msra.mxu0 %v2221
        %2287 = vmatprep.subr.bf16.mxu0 %v2224
        %2288 = vmatpush1.bf16.msra.mxu0 %v2223
        %2289 = vmatprep.subr.bf16.mxu0 %v2226
        %2290 = vmatpush1.bf16.msra.mxu0 %v2225
        %2291 = vmatprep.subr.bf16.mxu0 %v2228
        %2292 = vmatpush1.bf16.msra.mxu0 %v2227
        %2293 = vmatprep.subr.bf16.mxu0 %v2230
        %2294 = vmatpush1.bf16.msra.mxu0 %v2229
        %2295 = vmatprep.mubr.bf16.mxu0 %v2055
        %2296 = vmatmul.mubr.bf16.gmra.mrb[0].mxu0 %v2054
        %v2297 = vpop.f32.mrb[0].mxu0
        %v2298 = vadd.f32 0.0, %v2297
        %v2299 = vpop.f32.mrb[0].mxu0
        %v2300 = vadd.f32 0.0, %v2299
        %v2301 = vpop.f32.mrb[0].mxu0
        %v2302 = vadd.f32 0.0, %v2301
        %v2303 = vpop.f32.mrb[0].mxu0
        %v2304 = vadd.f32 0.0, %v2303
        %2305 = vmatprep.mubr.bf16.mxu0 %v2057
        %2306 = vmatmul.mubr.bf16.gmra.mrb[0].mxu0 %v2056
        %v2307 = vpop.f32.mrb[0].mxu0
        %v2308 = vadd.f32 0.0, %v2307
        %v2309 = vpop.f32.mrb[0].mxu0
        %v2310 = vadd.f32 0.0, %v2309
        %v2311 = vpop.f32.mrb[0].mxu0
        %v2312 = vadd.f32 0.0, %v2311
        %v2313 = vpop.f32.mrb[0].mxu0
        %v2314 = vadd.f32 0.0, %v2313
        %2315 = vmatprep.mubr.bf16.mxu0 %v2059
        %2316 = vmatmul.mubr.bf16.gmra.mrb[0].mxu0 %v2058
        %v2317 = vpop.f32.mrb[0].mxu0
        %v2318 = vadd.f32 0.0, %v2317
        %v2319 = vpop.f32.mrb[0].mxu0
        %v2320 = vadd.f32 0.0, %v2319
        %v2321 = vpop.f32.mrb[0].mxu0
        %v2322 = vadd.f32 0.0, %v2321
        %v2323 = vpop.f32.mrb[0].mxu0
        %v2324 = vadd.f32 0.0, %v2323
        %2325 = vmatprep.mubr.bf16.mxu0 %v2061
        %2326 = vmatmul.mubr.bf16.gmra.mrb[0].mxu0 %v2060
        %v2327 = vpop.f32.mrb[0].mxu0
        %v2328 = vadd.f32 0.0, %v2327
        %v2329 = vpop.f32.mrb[0].mxu0
        %v2330 = vadd.f32 0.0, %v2329
        %v2331 = vpop.f32.mrb[0].mxu0
        %v2332 = vadd.f32 0.0, %v2331
        %v2333 = vpop.f32.mrb[0].mxu0
        %v2334 = vadd.f32 0.0, %v2333
        %2335 = vmatprep.mubr.bf16.mxu0 %v2063
        %2336 = vmatmul.mubr.bf16.gmra.mrb[0].mxu0 %v2062
        %v2337 = vpop.f32.mrb[0].mxu0
        %v2338 = vadd.f32 0.0, %v2337
        %v2339 = vpop.f32.mrb[0].mxu0
        %v2340 = vadd.f32 0.0, %v2339
        %v2341 = vpop.f32.mrb[0].mxu0
        %v2342 = vadd.f32 0.0, %v2341
        %v2343 = vpop.f32.mrb[0].mxu0
        %v2344 = vadd.f32 0.0, %v2343
        %2345 = vmatprep.mubr.bf16.mxu0 %v2065
        %2346 = vmatmul.mubr.bf16.gmra.mrb[0].mxu0 %v2064
        %v2347 = vpop.f32.mrb[0].mxu0
        %v2348 = vadd.f32 0.0, %v2347
        %v2349 = vpop.f32.mrb[0].mxu0
        %v2350 = vadd.f32 0.0, %v2349
        %v2351 = vpop.f32.mrb[0].mxu0
        %v2352 = vadd.f32 0.0, %v2351
        %v2353 = vpop.f32.mrb[0].mxu0
        %v2354 = vadd.f32 0.0, %v2353
        %2355 = vmatprep.mubr.bf16.mxu0 %v2067
        %2356 = vmatmul.mubr.bf16.gmra.mrb[0].mxu0 %v2066
        %v2357 = vpop.f32.mrb[0].mxu0
        %v2358 = vadd.f32 0.0, %v2357
        %v2359 = vpop.f32.mrb[0].mxu0
        %v2360 = vadd.f32 0.0, %v2359
        %v2361 = vpop.f32.mrb[0].mxu0
        %v2362 = vadd.f32 0.0, %v2361
        %v2363 = vpop.f32.mrb[0].mxu0
        %v2364 = vadd.f32 0.0, %v2363
        %2365 = vmatprep.mubr.bf16.mxu0 %v2069
        %2366 = vmatmul.mubr.bf16.gmra.mrb[0].mxu0 %v2068
        %v2367 = vpop.f32.mrb[0].mxu0
        %v2368 = vadd.f32 0.0, %v2367
        %v2369 = vpop.f32.mrb[0].mxu0
        %v2370 = vadd.f32 0.0, %v2369
        %v2371 = vpop.f32.mrb[0].mxu0
        %v2372 = vadd.f32 0.0, %v2371
        %v2373 = vpop.f32.mrb[0].mxu0
        %v2374 = vadd.f32 0.0, %v2373
        %2375 = vdwg.mxu0
        %v2376 = vadd.f32 %v1671, %v2298
        %v2377 = vadd.f32 %v1673, %v2300
        %v2378 = vadd.f32 %v1675, %v2302
        %v2379 = vadd.f32 %v1677, %v2304
        %v2380 = vadd.f32 %v1681, %v2308
        %v2381 = vadd.f32 %v1683, %v2310
        %v2382 = vadd.f32 %v1685, %v2312
        %v2383 = vadd.f32 %v1687, %v2314
        %v2384 = vadd.f32 %v1691, %v2318
        %v2385 = vadd.f32 %v1693, %v2320
        %v2386 = vadd.f32 %v1695, %v2322
        %v2387 = vadd.f32 %v1697, %v2324
        %v2388 = vadd.f32 %v1701, %v2328
        %v2389 = vadd.f32 %v1703, %v2330
        %v2390 = vadd.f32 %v1705, %v2332
        %v2391 = vadd.f32 %v1707, %v2334
        %v2392 = vadd.f32 %v1711, %v2338
        %v2393 = vadd.f32 %v1713, %v2340
        %v2394 = vadd.f32 %v1715, %v2342
        %v2395 = vadd.f32 %v1717, %v2344
        %v2396 = vadd.f32 %v1721, %v2348
        %v2397 = vadd.f32 %v1723, %v2350
        %v2398 = vadd.f32 %v1725, %v2352
        %v2399 = vadd.f32 %v1727, %v2354
        %v2400 = vadd.f32 %v1731, %v2358
        %v2401 = vadd.f32 %v1733, %v2360
        %v2402 = vadd.f32 %v1735, %v2362
        %v2403 = vadd.f32 %v1737, %v2364
        %v2404 = vadd.f32 %v1741, %v2368
        %v2405 = vadd.f32 %v1743, %v2370
        %v2406 = vadd.f32 %v1745, %v2372
        %v2407 = vadd.f32 %v1747, %v2374
        %v2408 = vpack.c.bf16 %v606, %v608
        %v2409 = vpack.c.bf16 %v607, %v609
        %v2410 = vpack.c.bf16 %v602, %v604
        %v2411 = vpack.c.bf16 %v603, %v605
        %v2412 = vpack.c.bf16 %v598, %v600
        %v2413 = vpack.c.bf16 %v599, %v601
        %v2414 = vpack.c.bf16 %v594, %v596
        %v2415 = vpack.c.bf16 %v595, %v597
        %v2416 = vpack.c.bf16 %v590, %v592
        %v2417 = vpack.c.bf16 %v591, %v593
        %v2418 = vpack.c.bf16 %v586, %v588
        %v2419 = vpack.c.bf16 %v587, %v589
        %v2420 = vpack.c.bf16 %v582, %v584
        %v2421 = vpack.c.bf16 %v583, %v585
        %v2422 = vpack.c.bf16 %v578, %v580
        %v2423 = vpack.c.bf16 %v579, %v581
        %2424 = vset.pattern.permute.xlu0 3
        %2425 = vperm.xlu0 %2424, %v527
        %v2426 = vpop.permute.xlu0 %2425
        %v2429 = vunpack.c.l.s4 839922192
        %v2430 = vunpack.c.0.s8 %v2429
        %v2431 = vlaneseq
        %v2432 = vshrl.u32 %v2431, 7
        %v2433 = vsub.s32 %v2430, %v2432
        %v2434 = vrot.slane %v2426, %v2433
        %2435 = vset.pattern.permute.xlu0 3
        %2436 = vperm.xlu0 %2435, %v528
        %v2437 = vpop.permute.xlu0 %2436
        %v2440 = vunpack.c.l.s4 839922192
        %v2441 = vunpack.c.0.s8 %v2440
        %v2442 = vlaneseq
        %v2443 = vshrl.u32 %v2442, 7
        %v2444 = vsub.s32 %v2441, %v2443
        %v2445 = vrot.slane %v2437, %v2444
        %2446 = vset.pattern.permute.xlu0 3
        %2447 = vperm.xlu0 %2446, %v529
        %v2448 = vpop.permute.xlu0 %2447
        %v2451 = vunpack.c.l.s4 839922192
        %v2452 = vunpack.c.0.s8 %v2451
        %v2453 = vlaneseq
        %v2454 = vshrl.u32 %v2453, 7
        %v2455 = vsub.s32 %v2452, %v2454
        %v2456 = vrot.slane %v2448, %v2455
        %2457 = vset.pattern.permute.xlu0 3
        %2458 = vperm.xlu0 %2457, %v530
        %v2459 = vpop.permute.xlu0 %2458
        %v2462 = vunpack.c.l.s4 839922192
        %v2463 = vunpack.c.0.s8 %v2462
        %v2464 = vlaneseq
        %v2465 = vshrl.u32 %v2464, 7
        %v2466 = vsub.s32 %v2463, %v2465
        %v2467 = vrot.slane %v2459, %v2466
        %2468 = vset.pattern.permute.xlu0 3
        %2469 = vperm.xlu0 %2468, %v531
        %v2470 = vpop.permute.xlu0 %2469
        %v2473 = vunpack.c.l.s4 839922192
        %v2474 = vunpack.c.0.s8 %v2473
        %v2475 = vlaneseq
        %v2476 = vshrl.u32 %v2475, 7
        %v2477 = vsub.s32 %v2474, %v2476
        %v2478 = vrot.slane %v2470, %v2477
        %2479 = vset.pattern.permute.xlu0 3
        %2480 = vperm.xlu0 %2479, %v532
        %v2481 = vpop.permute.xlu0 %2480
        %v2484 = vunpack.c.l.s4 839922192
        %v2485 = vunpack.c.0.s8 %v2484
        %v2486 = vlaneseq
        %v2487 = vshrl.u32 %v2486, 7
        %v2488 = vsub.s32 %v2485, %v2487
        %v2489 = vrot.slane %v2481, %v2488
        %2490 = vset.pattern.permute.xlu0 3
        %2491 = vperm.xlu0 %2490, %v533
        %v2492 = vpop.permute.xlu0 %2491
        %v2495 = vunpack.c.l.s4 839922192
        %v2496 = vunpack.c.0.s8 %v2495
        %v2497 = vlaneseq
        %v2498 = vshrl.u32 %v2497, 7
        %v2499 = vsub.s32 %v2496, %v2498
        %v2500 = vrot.slane %v2492, %v2499
        %2501 = vset.pattern.permute.xlu0 3
        %2502 = vperm.xlu0 %2501, %v534
        %v2503 = vpop.permute.xlu0 %2502
        %v2506 = vunpack.c.l.s4 839922192
        %v2507 = vunpack.c.0.s8 %v2506
        %v2508 = vlaneseq
        %v2509 = vshrl.u32 %v2508, 7
        %v2510 = vsub.s32 %v2507, %v2509
        %v2511 = vrot.slane %v2503, %v2510
        %2512 = vset.pattern.permute.xlu0 3
        %2513 = vperm.xlu0 %2512, %v535
        %v2514 = vpop.permute.xlu0 %2513
        %v2517 = vunpack.c.l.s4 839922192
        %v2518 = vunpack.c.0.s8 %v2517
        %v2519 = vlaneseq
        %v2520 = vshrl.u32 %v2519, 7
        %v2521 = vsub.s32 %v2518, %v2520
        %v2522 = vrot.slane %v2514, %v2521
        %2523 = vset.pattern.permute.xlu0 3
        %2524 = vperm.xlu0 %2523, %v536
        %v2525 = vpop.permute.xlu0 %2524
        %v2528 = vunpack.c.l.s4 839922192
        %v2529 = vunpack.c.0.s8 %v2528
        %v2530 = vlaneseq
        %v2531 = vshrl.u32 %v2530, 7
        %v2532 = vsub.s32 %v2529, %v2531
        %v2533 = vrot.slane %v2525, %v2532
        %2534 = vset.pattern.permute.xlu0 3
        %2535 = vperm.xlu0 %2534, %v537
        %v2536 = vpop.permute.xlu0 %2535
        %v2539 = vunpack.c.l.s4 839922192
        %v2540 = vunpack.c.0.s8 %v2539
        %v2541 = vlaneseq
        %v2542 = vshrl.u32 %v2541, 7
        %v2543 = vsub.s32 %v2540, %v2542
        %v2544 = vrot.slane %v2536, %v2543
        %2545 = vset.pattern.permute.xlu0 3
        %2546 = vperm.xlu0 %2545, %v538
        %v2547 = vpop.permute.xlu0 %2546
        %v2550 = vunpack.c.l.s4 839922192
        %v2551 = vunpack.c.0.s8 %v2550
        %v2552 = vlaneseq
        %v2553 = vshrl.u32 %v2552, 7
        %v2554 = vsub.s32 %v2551, %v2553
        %v2555 = vrot.slane %v2547, %v2554
        %2556 = vset.pattern.permute.xlu0 3
        %2557 = vperm.xlu0 %2556, %v539
        %v2558 = vpop.permute.xlu0 %2557
        %v2561 = vunpack.c.l.s4 839922192
        %v2562 = vunpack.c.0.s8 %v2561
        %v2563 = vlaneseq
        %v2564 = vshrl.u32 %v2563, 7
        %v2565 = vsub.s32 %v2562, %v2564
        %v2566 = vrot.slane %v2558, %v2565
        %2567 = vset.pattern.permute.xlu0 3
        %2568 = vperm.xlu0 %2567, %v540
        %v2569 = vpop.permute.xlu0 %2568
        %v2572 = vunpack.c.l.s4 839922192
        %v2573 = vunpack.c.0.s8 %v2572
        %v2574 = vlaneseq
        %v2575 = vshrl.u32 %v2574, 7
        %v2576 = vsub.s32 %v2573, %v2575
        %v2577 = vrot.slane %v2569, %v2576
        %2578 = vset.pattern.permute.xlu0 3
        %2579 = vperm.xlu0 %2578, %v541
        %v2580 = vpop.permute.xlu0 %2579
        %v2583 = vunpack.c.l.s4 839922192
        %v2584 = vunpack.c.0.s8 %v2583
        %v2585 = vlaneseq
        %v2586 = vshrl.u32 %v2585, 7
        %v2587 = vsub.s32 %v2584, %v2586
        %v2588 = vrot.slane %v2580, %v2587
        %2589 = vset.pattern.permute.xlu0 3
        %2590 = vperm.xlu0 %2589, %v542
        %v2591 = vpop.permute.xlu0 %2590
        %v2594 = vunpack.c.l.s4 839922192
        %v2595 = vunpack.c.0.s8 %v2594
        %v2596 = vlaneseq
        %v2597 = vshrl.u32 %v2596, 7
        %v2598 = vsub.s32 %v2595, %v2597
        %v2599 = vrot.slane %v2591, %v2598
        %v2616 = vunpack.c.l.b16 %v2434
        %v2617 = vunpack.c.l.b16 %v2445
        %v2618 = vunpack.c.l.b16 %v2456
        %v2619 = vunpack.c.l.b16 %v2467
        %v2620 = vunpack.c.l.b16 %v2478
        %v2621 = vunpack.c.l.b16 %v2489
        %v2622 = vunpack.c.l.b16 %v2500
        %v2623 = vunpack.c.l.b16 %v2511
        %v2624 = vunpack.c.l.b16 %v2522
        %v2625 = vunpack.c.l.b16 %v2533
        %v2626 = vunpack.c.l.b16 %v2544
        %v2627 = vunpack.c.l.b16 %v2555
        %v2628 = vunpack.c.l.b16 %v2566
        %v2629 = vunpack.c.l.b16 %v2577
        %v2630 = vunpack.c.l.b16 %v2588
        %v2631 = vunpack.c.l.b16 %v2599
        %v2632 = vpack.c.b16 %v2617, %v2616
        %v2633 = vpack.c.b16 %v2619, %v2618
        %v2634 = vpack.c.b16 %v2621, %v2620
        %v2635 = vpack.c.b16 %v2623, %v2622
        %v2636 = vpack.c.b16 %v2625, %v2624
        %v2637 = vpack.c.b16 %v2627, %v2626
        %v2638 = vpack.c.b16 %v2629, %v2628
        %v2639 = vpack.c.b16 %v2631, %v2630
        %v2648 = vmul.bf16 %v2408, %v2632
        %v2649 = vmul.bf16 %v2409, %v2632
        %v2650 = vmul.bf16 %v2410, %v2633
        %v2651 = vmul.bf16 %v2411, %v2633
        %v2652 = vmul.bf16 %v2412, %v2634
        %v2653 = vmul.bf16 %v2413, %v2634
        %v2654 = vmul.bf16 %v2414, %v2635
        %v2655 = vmul.bf16 %v2415, %v2635
        %v2656 = vmul.bf16 %v2416, %v2636
        %v2657 = vmul.bf16 %v2417, %v2636
        %v2658 = vmul.bf16 %v2418, %v2637
        %v2659 = vmul.bf16 %v2419, %v2637
        %v2660 = vmul.bf16 %v2420, %v2638
        %v2661 = vmul.bf16 %v2421, %v2638
        %v2662 = vmul.bf16 %v2422, %v2639
        %v2663 = vmul.bf16 %v2423, %v2639
        %s2664 = scalar_lea.vmem %s287, 768 [#allocation5]
        %v2665 = vld [vmem:[%s2664] sm:$0xff]
        %v2666 = vld [vmem:[%s2664 + $0x8] sm:$0xff]
        %v2667 = vld [vmem:[%s2664 + $0x10] sm:$0xff]
        %v2668 = vld [vmem:[%s2664 + $0x18] sm:$0xff]
        %v2669 = vld [vmem:[%s2664 + $0x20] sm:$0xff]
        %v2670 = vld [vmem:[%s2664 + $0x28] sm:$0xff]
        %v2671 = vld [vmem:[%s2664 + $0x30] sm:$0xff]
        %v2672 = vld [vmem:[%s2664 + $0x38] sm:$0xff]
        %v2673 = vld [vmem:[%s2664 + $0x40] sm:$0xff]
        %v2674 = vld [vmem:[%s2664 + $0x48] sm:$0xff]
        %v2675 = vld [vmem:[%s2664 + $0x50] sm:$0xff]
        %v2676 = vld [vmem:[%s2664 + $0x58] sm:$0xff]
        %v2677 = vld [vmem:[%s2664 + $0x60] sm:$0xff]
        %v2678 = vld [vmem:[%s2664 + $0x68] sm:$0xff]
        %v2679 = vld [vmem:[%s2664 + $0x70] sm:$0xff]
        %v2680 = vld [vmem:[%s2664 + $0x78] sm:$0xff]
        %v2681 = vld [vmem:[%s2664 + $0x80] sm:$0xff]
        %v2682 = vld [vmem:[%s2664 + $0x88] sm:$0xff]
        %v2683 = vld [vmem:[%s2664 + $0x90] sm:$0xff]
        %v2684 = vld [vmem:[%s2664 + $0x98] sm:$0xff]
        %v2685 = vld [vmem:[%s2664 + $0xa0] sm:$0xff]
        %v2686 = vld [vmem:[%s2664 + $0xa8] sm:$0xff]
        %v2687 = vld [vmem:[%s2664 + $0xb0] sm:$0xff]
        %v2688 = vld [vmem:[%s2664 + $0xb8] sm:$0xff]
        %v2689 = vld [vmem:[%s2664 + $0xc0] sm:$0xff]
        %v2690 = vld [vmem:[%s2664 + $0xc8] sm:$0xff]
        %v2691 = vld [vmem:[%s2664 + $0xd0] sm:$0xff]
        %v2692 = vld [vmem:[%s2664 + $0xd8] sm:$0xff]
        %v2693 = vld [vmem:[%s2664 + $0xe0] sm:$0xff]
        %v2694 = vld [vmem:[%s2664 + $0xe8] sm:$0xff]
        %v2695 = vld [vmem:[%s2664 + $0xf0] sm:$0xff]
        %v2696 = vld [vmem:[%s2664 + $0xf8] sm:$0xff]
        %v2729 = vunpack.c.l.b16 %v2665
        %v2730 = vunpack.c.h.b16 %v2665
        %v2731 = vunpack.c.l.b16 %v2666
        %v2732 = vunpack.c.h.b16 %v2666
        %v2733 = vunpack.c.l.b16 %v2667
        %v2734 = vunpack.c.h.b16 %v2667
        %v2735 = vunpack.c.l.b16 %v2668
        %v2736 = vunpack.c.h.b16 %v2668
        %v2737 = vunpack.c.l.b16 %v2669
        %v2738 = vunpack.c.h.b16 %v2669
        %v2739 = vunpack.c.l.b16 %v2670
        %v2740 = vunpack.c.h.b16 %v2670
        %v2741 = vunpack.c.l.b16 %v2671
        %v2742 = vunpack.c.h.b16 %v2671
        %v2743 = vunpack.c.l.b16 %v2672
        %v2744 = vunpack.c.h.b16 %v2672
        %v2745 = vunpack.c.l.b16 %v2673
        %v2746 = vunpack.c.h.b16 %v2673
        %v2747 = vunpack.c.l.b16 %v2674
        %v2748 = vunpack.c.h.b16 %v2674
        %v2749 = vunpack.c.l.b16 %v2675
        %v2750 = vunpack.c.h.b16 %v2675
        %v2751 = vunpack.c.l.b16 %v2676
        %v2752 = vunpack.c.h.b16 %v2676
        %v2753 = vunpack.c.l.b16 %v2677
        %v2754 = vunpack.c.h.b16 %v2677
        %v2755 = vunpack.c.l.b16 %v2678
        %v2756 = vunpack.c.h.b16 %v2678
        %v2757 = vunpack.c.l.b16 %v2679
        %v2758 = vunpack.c.h.b16 %v2679
        %v2759 = vunpack.c.l.b16 %v2680
        %v2760 = vunpack.c.h.b16 %v2680
        %v2761 = vunpack.c.l.b16 %v2681
        %v2762 = vunpack.c.h.b16 %v2681
        %v2763 = vunpack.c.l.b16 %v2682
        %v2764 = vunpack.c.h.b16 %v2682
        %v2765 = vunpack.c.l.b16 %v2683
        %v2766 = vunpack.c.h.b16 %v2683
        %v2767 = vunpack.c.l.b16 %v2684
        %v2768 = vunpack.c.h.b16 %v2684
        %v2769 = vunpack.c.l.b16 %v2685
        %v2770 = vunpack.c.h.b16 %v2685
        %v2771 = vunpack.c.l.b16 %v2686
        %v2772 = vunpack.c.h.b16 %v2686
        %v2773 = vunpack.c.l.b16 %v2687
        %v2774 = vunpack.c.h.b16 %v2687
        %v2775 = vunpack.c.l.b16 %v2688
        %v2776 = vunpack.c.h.b16 %v2688
        %v2777 = vunpack.c.l.b16 %v2689
        %v2778 = vunpack.c.h.b16 %v2689
        %v2779 = vunpack.c.l.b16 %v2690
        %v2780 = vunpack.c.h.b16 %v2690
        %v2781 = vunpack.c.l.b16 %v2691
        %v2782 = vunpack.c.h.b16 %v2691
        %v2783 = vunpack.c.l.b16 %v2692
        %v2784 = vunpack.c.h.b16 %v2692
        %v2785 = vunpack.c.l.b16 %v2693
        %v2786 = vunpack.c.h.b16 %v2693
        %v2787 = vunpack.c.l.b16 %v2694
        %v2788 = vunpack.c.h.b16 %v2694
        %v2789 = vunpack.c.l.b16 %v2695
        %v2790 = vunpack.c.h.b16 %v2695
        %v2791 = vunpack.c.l.b16 %v2696
        %v2792 = vunpack.c.h.b16 %v2696
        %v2793 = vpack.c.b16 %v2731, %v2729
        %v2794 = vpack.c.b16 %v2732, %v2730
        %v2795 = vpack.c.b16 %v2735, %v2733
        %v2796 = vpack.c.b16 %v2736, %v2734
        %v2797 = vpack.c.b16 %v2739, %v2737
        %v2798 = vpack.c.b16 %v2740, %v2738
        %v2799 = vpack.c.b16 %v2743, %v2741
        %v2800 = vpack.c.b16 %v2744, %v2742
        %v2801 = vpack.c.b16 %v2747, %v2745
        %v2802 = vpack.c.b16 %v2748, %v2746
        %v2803 = vpack.c.b16 %v2751, %v2749
        %v2804 = vpack.c.b16 %v2752, %v2750
        %v2805 = vpack.c.b16 %v2755, %v2753
        %v2806 = vpack.c.b16 %v2756, %v2754
        %v2807 = vpack.c.b16 %v2759, %v2757
        %v2808 = vpack.c.b16 %v2760, %v2758
        %v2809 = vpack.c.b16 %v2763, %v2761
        %v2810 = vpack.c.b16 %v2764, %v2762
        %v2811 = vpack.c.b16 %v2767, %v2765
        %v2812 = vpack.c.b16 %v2768, %v2766
        %v2813 = vpack.c.b16 %v2771, %v2769
        %v2814 = vpack.c.b16 %v2772, %v2770
        %v2815 = vpack.c.b16 %v2775, %v2773
        %v2816 = vpack.c.b16 %v2776, %v2774
        %v2817 = vpack.c.b16 %v2779, %v2777
        %v2818 = vpack.c.b16 %v2780, %v2778
        %v2819 = vpack.c.b16 %v2783, %v2781
        %v2820 = vpack.c.b16 %v2784, %v2782
        %v2821 = vpack.c.b16 %v2787, %v2785
        %v2822 = vpack.c.b16 %v2788, %v2786
        %v2823 = vpack.c.b16 %v2791, %v2789
        %v2824 = vpack.c.b16 %v2792, %v2790
        %2857 = vmatprep.subr.bf16.mxu0 %v2794
        %2858 = vmatpush1.bf16.msra.mxu0 %v2793
        %2859 = vmatprep.subr.bf16.mxu0 %v2796
        %2860 = vmatpush1.bf16.msra.mxu0 %v2795
        %2861 = vmatprep.subr.bf16.mxu0 %v2798
        %2862 = vmatpush1.bf16.msra.mxu0 %v2797
        %2863 = vmatprep.subr.bf16.mxu0 %v2800
        %2864 = vmatpush1.bf16.msra.mxu0 %v2799
        %2865 = vmatprep.subr.bf16.mxu0 %v2802
        %2866 = vmatpush1.bf16.msra.mxu0 %v2801
        %2867 = vmatprep.subr.bf16.mxu0 %v2804
        %2868 = vmatpush1.bf16.msra.mxu0 %v2803
        %2869 = vmatprep.subr.bf16.mxu0 %v2806
        %2870 = vmatpush1.bf16.msra.mxu0 %v2805
        %2871 = vmatprep.subr.bf16.mxu0 %v2808
        %2872 = vmatpush1.bf16.msra.mxu0 %v2807
        %2873 = vmatprep.subr.bf16.mxu0 %v2810
        %2874 = vmatpush1.bf16.msra.mxu0 %v2809
        %2875 = vmatprep.subr.bf16.mxu0 %v2812
        %2876 = vmatpush1.bf16.msra.mxu0 %v2811
        %2877 = vmatprep.subr.bf16.mxu0 %v2814
        %2878 = vmatpush1.bf16.msra.mxu0 %v2813
        %2879 = vmatprep.subr.bf16.mxu0 %v2816
        %2880 = vmatpush1.bf16.msra.mxu0 %v2815
        %2881 = vmatprep.subr.bf16.mxu0 %v2818
        %2882 = vmatpush1.bf16.msra.mxu0 %v2817
        %2883 = vmatprep.subr.bf16.mxu0 %v2820
        %2884 = vmatpush1.bf16.msra.mxu0 %v2819
        %2885 = vmatprep.subr.bf16.mxu0 %v2822
        %2886 = vmatpush1.bf16.msra.mxu0 %v2821
        %2887 = vmatprep.subr.bf16.mxu0 %v2824
        %2888 = vmatpush1.bf16.msra.mxu0 %v2823
        %2889 = vmatprep.mubr.bf16.mxu0 %v2649
        %2890 = vmatmul.mubr.bf16.gmra.mrb[0].mxu0 %v2648
        %v2891 = vpop.f32.mrb[0].mxu0
        %v2892 = vadd.f32 0.0, %v2891
        %v2893 = vpop.f32.mrb[0].mxu0
        %v2894 = vadd.f32 0.0, %v2893
        %v2895 = vpop.f32.mrb[0].mxu0
        %v2896 = vadd.f32 0.0, %v2895
        %v2897 = vpop.f32.mrb[0].mxu0
        %v2898 = vadd.f32 0.0, %v2897
        %2899 = vmatprep.mubr.bf16.mxu0 %v2651
        %2900 = vmatmul.mubr.bf16.gmra.mrb[0].mxu0 %v2650
        %v2901 = vpop.f32.mrb[0].mxu0
        %v2902 = vadd.f32 0.0, %v2901
        %v2903 = vpop.f32.mrb[0].mxu0
        %v2904 = vadd.f32 0.0, %v2903
        %v2905 = vpop.f32.mrb[0].mxu0
        %v2906 = vadd.f32 0.0, %v2905
        %v2907 = vpop.f32.mrb[0].mxu0
        %v2908 = vadd.f32 0.0, %v2907
        %2909 = vmatprep.mubr.bf16.mxu0 %v2653
        %2910 = vmatmul.mubr.bf16.gmra.mrb[0].mxu0 %v2652
        %v2911 = vpop.f32.mrb[0].mxu0
        %v2912 = vadd.f32 0.0, %v2911
        %v2913 = vpop.f32.mrb[0].mxu0
        %v2914 = vadd.f32 0.0, %v2913
        %v2915 = vpop.f32.mrb[0].mxu0
        %v2916 = vadd.f32 0.0, %v2915
        %v2917 = vpop.f32.mrb[0].mxu0
        %v2918 = vadd.f32 0.0, %v2917
        %2919 = vmatprep.mubr.bf16.mxu0 %v2655
        %2920 = vmatmul.mubr.bf16.gmra.mrb[0].mxu0 %v2654
        %v2921 = vpop.f32.mrb[0].mxu0
        %v2922 = vadd.f32 0.0, %v2921
        %v2923 = vpop.f32.mrb[0].mxu0
        %v2924 = vadd.f32 0.0, %v2923
        %v2925 = vpop.f32.mrb[0].mxu0
        %v2926 = vadd.f32 0.0, %v2925
        %v2927 = vpop.f32.mrb[0].mxu0
        %v2928 = vadd.f32 0.0, %v2927
        %2929 = vmatprep.mubr.bf16.mxu0 %v2657
        %2930 = vmatmul.mubr.bf16.gmra.mrb[0].mxu0 %v2656
        %v2931 = vpop.f32.mrb[0].mxu0
        %v2932 = vadd.f32 0.0, %v2931
        %v2933 = vpop.f32.mrb[0].mxu0
        %v2934 = vadd.f32 0.0, %v2933
        %v2935 = vpop.f32.mrb[0].mxu0
        %v2936 = vadd.f32 0.0, %v2935
        %v2937 = vpop.f32.mrb[0].mxu0
        %v2938 = vadd.f32 0.0, %v2937
        %2939 = vmatprep.mubr.bf16.mxu0 %v2659
        %2940 = vmatmul.mubr.bf16.gmra.mrb[0].mxu0 %v2658
        %v2941 = vpop.f32.mrb[0].mxu0
        %v2942 = vadd.f32 0.0, %v2941
        %v2943 = vpop.f32.mrb[0].mxu0
        %v2944 = vadd.f32 0.0, %v2943
        %v2945 = vpop.f32.mrb[0].mxu0
        %v2946 = vadd.f32 0.0, %v2945
        %v2947 = vpop.f32.mrb[0].mxu0
        %v2948 = vadd.f32 0.0, %v2947
        %2949 = vmatprep.mubr.bf16.mxu0 %v2661
        %2950 = vmatmul.mubr.bf16.gmra.mrb[0].mxu0 %v2660
        %v2951 = vpop.f32.mrb[0].mxu0
        %v2952 = vadd.f32 0.0, %v2951
        %v2953 = vpop.f32.mrb[0].mxu0
        %v2954 = vadd.f32 0.0, %v2953
        %v2955 = vpop.f32.mrb[0].mxu0
        %v2956 = vadd.f32 0.0, %v2955
        %v2957 = vpop.f32.mrb[0].mxu0
        %v2958 = vadd.f32 0.0, %v2957
        %2959 = vmatprep.mubr.bf16.mxu0 %v2663
        %2960 = vmatmul.mubr.bf16.gmra.mrb[0].mxu0 %v2662
        %v2961 = vpop.f32.mrb[0].mxu0
        %v2962 = vadd.f32 0.0, %v2961
        %v2963 = vpop.f32.mrb[0].mxu0
        %v2964 = vadd.f32 0.0, %v2963
        %v2965 = vpop.f32.mrb[0].mxu0
        %v2966 = vadd.f32 0.0, %v2965
        %v2967 = vpop.f32.mrb[0].mxu0
        %v2968 = vadd.f32 0.0, %v2967
        %2969 = vdwg.mxu0
        %v2970 = vadd.f32 %v2376, %v2892
        %v2971 = vadd.f32 %v2377, %v2894
        %v2972 = vadd.f32 %v2378, %v2896
        %v2973 = vadd.f32 %v2379, %v2898
        %v2974 = vadd.f32 %v2380, %v2902
        %v2975 = vadd.f32 %v2381, %v2904
        %v2976 = vadd.f32 %v2382, %v2906
        %v2977 = vadd.f32 %v2383, %v2908
        %v2978 = vadd.f32 %v2384, %v2912
        %v2979 = vadd.f32 %v2385, %v2914
        %v2980 = vadd.f32 %v2386, %v2916
        %v2981 = vadd.f32 %v2387, %v2918
        %v2982 = vadd.f32 %v2388, %v2922
        %v2983 = vadd.f32 %v2389, %v2924
        %v2984 = vadd.f32 %v2390, %v2926
        %v2985 = vadd.f32 %v2391, %v2928
        %v2986 = vadd.f32 %v2392, %v2932
        %v2987 = vadd.f32 %v2393, %v2934
        %v2988 = vadd.f32 %v2394, %v2936
        %v2989 = vadd.f32 %v2395, %v2938
        %v2990 = vadd.f32 %v2396, %v2942
        %v2991 = vadd.f32 %v2397, %v2944
        %v2992 = vadd.f32 %v2398, %v2946
        %v2993 = vadd.f32 %v2399, %v2948
        %v2994 = vadd.f32 %v2400, %v2952
        %v2995 = vadd.f32 %v2401, %v2954
        %v2996 = vadd.f32 %v2402, %v2956
        %v2997 = vadd.f32 %v2403, %v2958
        %v2998 = vadd.f32 %v2404, %v2962
        %v2999 = vadd.f32 %v2405, %v2964
        %v3000 = vadd.f32 %v2406, %v2966
        %v3001 = vadd.f32 %v2407, %v2968
        %v3002 = vpack.c.bf16 %v497, %v495
        %v3003 = vpack.c.bf16 %v498, %v496
        %v3004 = vpack.c.bf16 %v501, %v499
        %v3005 = vpack.c.bf16 %v502, %v500
        %v3006 = vpack.c.bf16 %v505, %v503
        %v3007 = vpack.c.bf16 %v506, %v504
        %v3008 = vpack.c.bf16 %v509, %v507
        %v3009 = vpack.c.bf16 %v510, %v508
        %v3010 = vpack.c.bf16 %v513, %v511
        %v3011 = vpack.c.bf16 %v514, %v512
        %v3012 = vpack.c.bf16 %v517, %v515
        %v3013 = vpack.c.bf16 %v518, %v516
        %v3014 = vpack.c.bf16 %v521, %v519
        %v3015 = vpack.c.bf16 %v522, %v520
        %v3016 = vpack.c.bf16 %v525, %v523
        %v3017 = vpack.c.bf16 %v526, %v524
        %3018 = vset.pattern.permute.xlu0 4
        %3019 = vperm.xlu0 %3018, %v527
        %v3020 = vpop.permute.xlu0 %3019
        %v3023 = vunpack.c.l.s4 839922192
        %v3024 = vunpack.c.0.s8 %v3023
        %v3025 = vlaneseq
        %v3026 = vshrl.u32 %v3025, 7
        %v3027 = vsub.s32 %v3024, %v3026
        %v3028 = vrot.slane %v3020, %v3027
        %3029 = vset.pattern.permute.xlu0 4
        %3030 = vperm.xlu0 %3029, %v528
        %v3031 = vpop.permute.xlu0 %3030
        %v3034 = vunpack.c.l.s4 839922192
        %v3035 = vunpack.c.0.s8 %v3034
        %v3036 = vlaneseq
        %v3037 = vshrl.u32 %v3036, 7
        %v3038 = vsub.s32 %v3035, %v3037
        %v3039 = vrot.slane %v3031, %v3038
        %3040 = vset.pattern.permute.xlu0 4
        %3041 = vperm.xlu0 %3040, %v529
        %v3042 = vpop.permute.xlu0 %3041
        %v3045 = vunpack.c.l.s4 839922192
        %v3046 = vunpack.c.0.s8 %v3045
        %v3047 = vlaneseq
        %v3048 = vshrl.u32 %v3047, 7
        %v3049 = vsub.s32 %v3046, %v3048
        %v3050 = vrot.slane %v3042, %v3049
        %3051 = vset.pattern.permute.xlu0 4
        %3052 = vperm.xlu0 %3051, %v530
        %v3053 = vpop.permute.xlu0 %3052
        %v3056 = vunpack.c.l.s4 839922192
        %v3057 = vunpack.c.0.s8 %v3056
        %v3058 = vlaneseq
        %v3059 = vshrl.u32 %v3058, 7
        %v3060 = vsub.s32 %v3057, %v3059
        %v3061 = vrot.slane %v3053, %v3060
        %3062 = vset.pattern.permute.xlu0 4
        %3063 = vperm.xlu0 %3062, %v531
        %v3064 = vpop.permute.xlu0 %3063
        %v3067 = vunpack.c.l.s4 839922192
        %v3068 = vunpack.c.0.s8 %v3067
        %v3069 = vlaneseq
        %v3070 = vshrl.u32 %v3069, 7
        %v3071 = vsub.s32 %v3068, %v3070
        %v3072 = vrot.slane %v3064, %v3071
        %3073 = vset.pattern.permute.xlu0 4
        %3074 = vperm.xlu0 %3073, %v532
        %v3075 = vpop.permute.xlu0 %3074
        %v3078 = vunpack.c.l.s4 839922192
        %v3079 = vunpack.c.0.s8 %v3078
        %v3080 = vlaneseq
        %v3081 = vshrl.u32 %v3080, 7
        %v3082 = vsub.s32 %v3079, %v3081
        %v3083 = vrot.slane %v3075, %v3082
        %3084 = vset.pattern.permute.xlu0 4
        %3085 = vperm.xlu0 %3084, %v533
        %v3086 = vpop.permute.xlu0 %3085
        %v3089 = vunpack.c.l.s4 839922192
        %v3090 = vunpack.c.0.s8 %v3089
        %v3091 = vlaneseq
        %v3092 = vshrl.u32 %v3091, 7
        %v3093 = vsub.s32 %v3090, %v3092
        %v3094 = vrot.slane %v3086, %v3093
        %3095 = vset.pattern.permute.xlu0 4
        %3096 = vperm.xlu0 %3095, %v534
        %v3097 = vpop.permute.xlu0 %3096
        %v3100 = vunpack.c.l.s4 839922192
        %v3101 = vunpack.c.0.s8 %v3100
        %v3102 = vlaneseq
        %v3103 = vshrl.u32 %v3102, 7
        %v3104 = vsub.s32 %v3101, %v3103
        %v3105 = vrot.slane %v3097, %v3104
        %3106 = vset.pattern.permute.xlu0 4
        %3107 = vperm.xlu0 %3106, %v535
        %v3108 = vpop.permute.xlu0 %3107
        %v3111 = vunpack.c.l.s4 839922192
        %v3112 = vunpack.c.0.s8 %v3111
        %v3113 = vlaneseq
        %v3114 = vshrl.u32 %v3113, 7
        %v3115 = vsub.s32 %v3112, %v3114
        %v3116 = vrot.slane %v3108, %v3115
        %3117 = vset.pattern.permute.xlu0 4
        %3118 = vperm.xlu0 %3117, %v536
        %v3119 = vpop.permute.xlu0 %3118
        %v3122 = vunpack.c.l.s4 839922192
        %v3123 = vunpack.c.0.s8 %v3122
        %v3124 = vlaneseq
        %v3125 = vshrl.u32 %v3124, 7
        %v3126 = vsub.s32 %v3123, %v3125
        %v3127 = vrot.slane %v3119, %v3126
        %3128 = vset.pattern.permute.xlu0 4
        %3129 = vperm.xlu0 %3128, %v537
        %v3130 = vpop.permute.xlu0 %3129
        %v3133 = vunpack.c.l.s4 839922192
        %v3134 = vunpack.c.0.s8 %v3133
        %v3135 = vlaneseq
        %v3136 = vshrl.u32 %v3135, 7
        %v3137 = vsub.s32 %v3134, %v3136
        %v3138 = vrot.slane %v3130, %v3137
        %3139 = vset.pattern.permute.xlu0 4
        %3140 = vperm.xlu0 %3139, %v538
        %v3141 = vpop.permute.xlu0 %3140
        %v3144 = vunpack.c.l.s4 839922192
        %v3145 = vunpack.c.0.s8 %v3144
        %v3146 = vlaneseq
        %v3147 = vshrl.u32 %v3146, 7
        %v3148 = vsub.s32 %v3145, %v3147
        %v3149 = vrot.slane %v3141, %v3148
        %3150 = vset.pattern.permute.xlu0 4
        %3151 = vperm.xlu0 %3150, %v539
        %v3152 = vpop.permute.xlu0 %3151
        %v3155 = vunpack.c.l.s4 839922192
        %v3156 = vunpack.c.0.s8 %v3155
        %v3157 = vlaneseq
        %v3158 = vshrl.u32 %v3157, 7
        %v3159 = vsub.s32 %v3156, %v3158
        %v3160 = vrot.slane %v3152, %v3159
        %3161 = vset.pattern.permute.xlu0 4
        %3162 = vperm.xlu0 %3161, %v540
        %v3163 = vpop.permute.xlu0 %3162
        %v3166 = vunpack.c.l.s4 839922192
        %v3167 = vunpack.c.0.s8 %v3166
        %v3168 = vlaneseq
        %v3169 = vshrl.u32 %v3168, 7
        %v3170 = vsub.s32 %v3167, %v3169
        %v3171 = vrot.slane %v3163, %v3170
        %3172 = vset.pattern.permute.xlu0 4
        %3173 = vperm.xlu0 %3172, %v541
        %v3174 = vpop.permute.xlu0 %3173
        %v3177 = vunpack.c.l.s4 839922192
        %v3178 = vunpack.c.0.s8 %v3177
        %v3179 = vlaneseq
        %v3180 = vshrl.u32 %v3179, 7
        %v3181 = vsub.s32 %v3178, %v3180
        %v3182 = vrot.slane %v3174, %v3181
        %3183 = vset.pattern.permute.xlu0 4
        %3184 = vperm.xlu0 %3183, %v542
        %v3185 = vpop.permute.xlu0 %3184
        %v3188 = vunpack.c.l.s4 839922192
        %v3189 = vunpack.c.0.s8 %v3188
        %v3190 = vlaneseq
        %v3191 = vshrl.u32 %v3190, 7
        %v3192 = vsub.s32 %v3189, %v3191
        %v3193 = vrot.slane %v3185, %v3192
        %v3210 = vunpack.c.l.b16 %v3028
        %v3211 = vunpack.c.l.b16 %v3039
        %v3212 = vunpack.c.l.b16 %v3050
        %v3213 = vunpack.c.l.b16 %v3061
        %v3214 = vunpack.c.l.b16 %v3072
        %v3215 = vunpack.c.l.b16 %v3083
        %v3216 = vunpack.c.l.b16 %v3094
        %v3217 = vunpack.c.l.b16 %v3105
        %v3218 = vunpack.c.l.b16 %v3116
        %v3219 = vunpack.c.l.b16 %v3127
        %v3220 = vunpack.c.l.b16 %v3138
        %v3221 = vunpack.c.l.b16 %v3149
        %v3222 = vunpack.c.l.b16 %v3160
        %v3223 = vunpack.c.l.b16 %v3171
        %v3224 = vunpack.c.l.b16 %v3182
        %v3225 = vunpack.c.l.b16 %v3193
        %v3226 = vpack.c.b16 %v3211, %v3210
        %v3227 = vpack.c.b16 %v3213, %v3212
        %v3228 = vpack.c.b16 %v3215, %v3214
        %v3229 = vpack.c.b16 %v3217, %v3216
        %v3230 = vpack.c.b16 %v3219, %v3218
        %v3231 = vpack.c.b16 %v3221, %v3220
        %v3232 = vpack.c.b16 %v3223, %v3222
        %v3233 = vpack.c.b16 %v3225, %v3224
        %v3242 = vmul.bf16 %v3002, %v3226
        %v3243 = vmul.bf16 %v3003, %v3226
        %v3244 = vmul.bf16 %v3004, %v3227
        %v3245 = vmul.bf16 %v3005, %v3227
        %v3246 = vmul.bf16 %v3006, %v3228
        %v3247 = vmul.bf16 %v3007, %v3228
        %v3248 = vmul.bf16 %v3008, %v3229
        %v3249 = vmul.bf16 %v3009, %v3229
        %v3250 = vmul.bf16 %v3010, %v3230
        %v3251 = vmul.bf16 %v3011, %v3230
        %v3252 = vmul.bf16 %v3012, %v3231
        %v3253 = vmul.bf16 %v3013, %v3231
        %v3254 = vmul.bf16 %v3014, %v3232
        %v3255 = vmul.bf16 %v3015, %v3232
        %v3256 = vmul.bf16 %v3016, %v3233
        %v3257 = vmul.bf16 %v3017, %v3233
        %s3258 = scalar_lea.vmem %s287, 1024 [#allocation5]
        %v3259 = vld [vmem:[%s3258] sm:$0xff]
        %v3260 = vld [vmem:[%s3258 + $0x8] sm:$0xff]
        %v3261 = vld [vmem:[%s3258 + $0x10] sm:$0xff]
        %v3262 = vld [vmem:[%s3258 + $0x18] sm:$0xff]
        %v3263 = vld [vmem:[%s3258 + $0x20] sm:$0xff]
        %v3264 = vld [vmem:[%s3258 + $0x28] sm:$0xff]
        %v3265 = vld [vmem:[%s3258 + $0x30] sm:$0xff]
        %v3266 = vld [vmem:[%s3258 + $0x38] sm:$0xff]
        %v3267 = vld [vmem:[%s3258 + $0x40] sm:$0xff]
        %v3268 = vld [vmem:[%s3258 + $0x48] sm:$0xff]
        %v3269 = vld [vmem:[%s3258 + $0x50] sm:$0xff]
        %v3270 = vld [vmem:[%s3258 + $0x58] sm:$0xff]
        %v3271 = vld [vmem:[%s3258 + $0x60] sm:$0xff]
        %v3272 = vld [vmem:[%s3258 + $0x68] sm:$0xff]
        %v3273 = vld [vmem:[%s3258 + $0x70] sm:$0xff]
        %v3274 = vld [vmem:[%s3258 + $0x78] sm:$0xff]
        %v3275 = vld [vmem:[%s3258 + $0x80] sm:$0xff]
        %v3276 = vld [vmem:[%s3258 + $0x88] sm:$0xff]
        %v3277 = vld [vmem:[%s3258 + $0x90] sm:$0xff]
        %v3278 = vld [vmem:[%s3258 + $0x98] sm:$0xff]
        %v3279 = vld [vmem:[%s3258 + $0xa0] sm:$0xff]
        %v3280 = vld [vmem:[%s3258 + $0xa8] sm:$0xff]
        %v3281 = vld [vmem:[%s3258 + $0xb0] sm:$0xff]
        %v3282 = vld [vmem:[%s3258 + $0xb8] sm:$0xff]
        %v3283 = vld [vmem:[%s3258 + $0xc0] sm:$0xff]
        %v3284 = vld [vmem:[%s3258 + $0xc8] sm:$0xff]
        %v3285 = vld [vmem:[%s3258 + $0xd0] sm:$0xff]
        %v3286 = vld [vmem:[%s3258 + $0xd8] sm:$0xff]
        %v3287 = vld [vmem:[%s3258 + $0xe0] sm:$0xff]
        %v3288 = vld [vmem:[%s3258 + $0xe8] sm:$0xff]
        %v3289 = vld [vmem:[%s3258 + $0xf0] sm:$0xff]
        %v3290 = vld [vmem:[%s3258 + $0xf8] sm:$0xff]
        %v3323 = vunpack.c.l.b16 %v3259
        %v3324 = vunpack.c.h.b16 %v3259
        %v3325 = vunpack.c.l.b16 %v3260
        %v3326 = vunpack.c.h.b16 %v3260
        %v3327 = vunpack.c.l.b16 %v3261
        %v3328 = vunpack.c.h.b16 %v3261
        %v3329 = vunpack.c.l.b16 %v3262
        %v3330 = vunpack.c.h.b16 %v3262
        %v3331 = vunpack.c.l.b16 %v3263
        %v3332 = vunpack.c.h.b16 %v3263
        %v3333 = vunpack.c.l.b16 %v3264
        %v3334 = vunpack.c.h.b16 %v3264
        %v3335 = vunpack.c.l.b16 %v3265
        %v3336 = vunpack.c.h.b16 %v3265
        %v3337 = vunpack.c.l.b16 %v3266
        %v3338 = vunpack.c.h.b16 %v3266
        %v3339 = vunpack.c.l.b16 %v3267
        %v3340 = vunpack.c.h.b16 %v3267
        %v3341 = vunpack.c.l.b16 %v3268
        %v3342 = vunpack.c.h.b16 %v3268
        %v3343 = vunpack.c.l.b16 %v3269
        %v3344 = vunpack.c.h.b16 %v3269
        %v3345 = vunpack.c.l.b16 %v3270
        %v3346 = vunpack.c.h.b16 %v3270
        %v3347 = vunpack.c.l.b16 %v3271
        %v3348 = vunpack.c.h.b16 %v3271
        %v3349 = vunpack.c.l.b16 %v3272
        %v3350 = vunpack.c.h.b16 %v3272
        %v3351 = vunpack.c.l.b16 %v3273
        %v3352 = vunpack.c.h.b16 %v3273
        %v3353 = vunpack.c.l.b16 %v3274
        %v3354 = vunpack.c.h.b16 %v3274
        %v3355 = vunpack.c.l.b16 %v3275
        %v3356 = vunpack.c.h.b16 %v3275
        %v3357 = vunpack.c.l.b16 %v3276
        %v3358 = vunpack.c.h.b16 %v3276
        %v3359 = vunpack.c.l.b16 %v3277
        %v3360 = vunpack.c.h.b16 %v3277
        %v3361 = vunpack.c.l.b16 %v3278
        %v3362 = vunpack.c.h.b16 %v3278
        %v3363 = vunpack.c.l.b16 %v3279
        %v3364 = vunpack.c.h.b16 %v3279
        %v3365 = vunpack.c.l.b16 %v3280
        %v3366 = vunpack.c.h.b16 %v3280
        %v3367 = vunpack.c.l.b16 %v3281
        %v3368 = vunpack.c.h.b16 %v3281
        %v3369 = vunpack.c.l.b16 %v3282
        %v3370 = vunpack.c.h.b16 %v3282
        %v3371 = vunpack.c.l.b16 %v3283
        %v3372 = vunpack.c.h.b16 %v3283
        %v3373 = vunpack.c.l.b16 %v3284
        %v3374 = vunpack.c.h.b16 %v3284
        %v3375 = vunpack.c.l.b16 %v3285
        %v3376 = vunpack.c.h.b16 %v3285
        %v3377 = vunpack.c.l.b16 %v3286
        %v3378 = vunpack.c.h.b16 %v3286
        %v3379 = vunpack.c.l.b16 %v3287
        %v3380 = vunpack.c.h.b16 %v3287
        %v3381 = vunpack.c.l.b16 %v3288
        %v3382 = vunpack.c.h.b16 %v3288
        %v3383 = vunpack.c.l.b16 %v3289
        %v3384 = vunpack.c.h.b16 %v3289
        %v3385 = vunpack.c.l.b16 %v3290
        %v3386 = vunpack.c.h.b16 %v3290
        %v3387 = vpack.c.b16 %v3325, %v3323
        %v3388 = vpack.c.b16 %v3326, %v3324
        %v3389 = vpack.c.b16 %v3329, %v3327
        %v3390 = vpack.c.b16 %v3330, %v3328
        %v3391 = vpack.c.b16 %v3333, %v3331
        %v3392 = vpack.c.b16 %v3334, %v3332
        %v3393 = vpack.c.b16 %v3337, %v3335
        %v3394 = vpack.c.b16 %v3338, %v3336
        %v3395 = vpack.c.b16 %v3341, %v3339
        %v3396 = vpack.c.b16 %v3342, %v3340
        %v3397 = vpack.c.b16 %v3345, %v3343
        %v3398 = vpack.c.b16 %v3346, %v3344
        %v3399 = vpack.c.b16 %v3349, %v3347
        %v3400 = vpack.c.b16 %v3350, %v3348
        %v3401 = vpack.c.b16 %v3353, %v3351
        %v3402 = vpack.c.b16 %v3354, %v3352
        %v3403 = vpack.c.b16 %v3357, %v3355
        %v3404 = vpack.c.b16 %v3358, %v3356
        %v3405 = vpack.c.b16 %v3361, %v3359
        %v3406 = vpack.c.b16 %v3362, %v3360
        %v3407 = vpack.c.b16 %v3365, %v3363
        %v3408 = vpack.c.b16 %v3366, %v3364
        %v3409 = vpack.c.b16 %v3369, %v3367
        %v3410 = vpack.c.b16 %v3370, %v3368
        %v3411 = vpack.c.b16 %v3373, %v3371
        %v3412 = vpack.c.b16 %v3374, %v3372
        %v3413 = vpack.c.b16 %v3377, %v3375
        %v3414 = vpack.c.b16 %v3378, %v3376
        %v3415 = vpack.c.b16 %v3381, %v3379
        %v3416 = vpack.c.b16 %v3382, %v3380
        %v3417 = vpack.c.b16 %v3385, %v3383
        %v3418 = vpack.c.b16 %v3386, %v3384
        %3451 = vmatprep.subr.bf16.mxu0 %v3388
        %3452 = vmatpush1.bf16.msra.mxu0 %v3387
        %3453 = vmatprep.subr.bf16.mxu0 %v3390
        %3454 = vmatpush1.bf16.msra.mxu0 %v3389
        %3455 = vmatprep.subr.bf16.mxu0 %v3392
        %3456 = vmatpush1.bf16.msra.mxu0 %v3391
        %3457 = vmatprep.subr.bf16.mxu0 %v3394
        %3458 = vmatpush1.bf16.msra.mxu0 %v3393
        %3459 = vmatprep.subr.bf16.mxu0 %v3396
        %3460 = vmatpush1.bf16.msra.mxu0 %v3395
        %3461 = vmatprep.subr.bf16.mxu0 %v3398
        %3462 = vmatpush1.bf16.msra.mxu0 %v3397
        %3463 = vmatprep.subr.bf16.mxu0 %v3400
        %3464 = vmatpush1.bf16.msra.mxu0 %v3399
        %3465 = vmatprep.subr.bf16.mxu0 %v3402
        %3466 = vmatpush1.bf16.msra.mxu0 %v3401
        %3467 = vmatprep.subr.bf16.mxu0 %v3404
        %3468 = vmatpush1.bf16.msra.mxu0 %v3403
        %3469 = vmatprep.subr.bf16.mxu0 %v3406
        %3470 = vmatpush1.bf16.msra.mxu0 %v3405
        %3471 = vmatprep.subr.bf16.mxu0 %v3408
        %3472 = vmatpush1.bf16.msra.mxu0 %v3407
        %3473 = vmatprep.subr.bf16.mxu0 %v3410
        %3474 = vmatpush1.bf16.msra.mxu0 %v3409
        %3475 = vmatprep.subr.bf16.mxu0 %v3412
        %3476 = vmatpush1.bf16.msra.mxu0 %v3411
        %3477 = vmatprep.subr.bf16.mxu0 %v3414
        %3478 = vmatpush1.bf16.msra.mxu0 %v3413
        %3479 = vmatprep.subr.bf16.mxu0 %v3416
        %3480 = vmatpush1.bf16.msra.mxu0 %v3415
        %3481 = vmatprep.subr.bf16.mxu0 %v3418
        %3482 = vmatpush1.bf16.msra.mxu0 %v3417
        %3483 = vmatprep.mubr.bf16.mxu0 %v3243
        %3484 = vmatmul.mubr.bf16.gmra.mrb[0].mxu0 %v3242
        %v3485 = vpop.f32.mrb[0].mxu0
        %v3486 = vadd.f32 0.0, %v3485
        %v3487 = vpop.f32.mrb[0].mxu0
        %v3488 = vadd.f32 0.0, %v3487
        %v3489 = vpop.f32.mrb[0].mxu0
        %v3490 = vadd.f32 0.0, %v3489
        %v3491 = vpop.f32.mrb[0].mxu0
        %v3492 = vadd.f32 0.0, %v3491
        %3493 = vmatprep.mubr.bf16.mxu0 %v3245
        %3494 = vmatmul.mubr.bf16.gmra.mrb[0].mxu0 %v3244
        %v3495 = vpop.f32.mrb[0].mxu0
        %v3496 = vadd.f32 0.0, %v3495
        %v3497 = vpop.f32.mrb[0].mxu0
        %v3498 = vadd.f32 0.0, %v3497
        %v3499 = vpop.f32.mrb[0].mxu0
        %v3500 = vadd.f32 0.0, %v3499
        %v3501 = vpop.f32.mrb[0].mxu0
        %v3502 = vadd.f32 0.0, %v3501
        %3503 = vmatprep.mubr.bf16.mxu0 %v3247
        %3504 = vmatmul.mubr.bf16.gmra.mrb[0].mxu0 %v3246
        %v3505 = vpop.f32.mrb[0].mxu0
        %v3506 = vadd.f32 0.0, %v3505
        %v3507 = vpop.f32.mrb[0].mxu0
        %v3508 = vadd.f32 0.0, %v3507
        %v3509 = vpop.f32.mrb[0].mxu0
        %v3510 = vadd.f32 0.0, %v3509
        %v3511 = vpop.f32.mrb[0].mxu0
        %v3512 = vadd.f32 0.0, %v3511
        %3513 = vmatprep.mubr.bf16.mxu0 %v3249
        %3514 = vmatmul.mubr.bf16.gmra.mrb[0].mxu0 %v3248
        %v3515 = vpop.f32.mrb[0].mxu0
        %v3516 = vadd.f32 0.0, %v3515
        %v3517 = vpop.f32.mrb[0].mxu0
        %v3518 = vadd.f32 0.0, %v3517
        %v3519 = vpop.f32.mrb[0].mxu0
        %v3520 = vadd.f32 0.0, %v3519
        %v3521 = vpop.f32.mrb[0].mxu0
        %v3522 = vadd.f32 0.0, %v3521
        %3523 = vmatprep.mubr.bf16.mxu0 %v3251
        %3524 = vmatmul.mubr.bf16.gmra.mrb[0].mxu0 %v3250
        %v3525 = vpop.f32.mrb[0].mxu0
        %v3526 = vadd.f32 0.0, %v3525
        %v3527 = vpop.f32.mrb[0].mxu0
        %v3528 = vadd.f32 0.0, %v3527
        %v3529 = vpop.f32.mrb[0].mxu0
        %v3530 = vadd.f32 0.0, %v3529
        %v3531 = vpop.f32.mrb[0].mxu0
        %v3532 = vadd.f32 0.0, %v3531
        %3533 = vmatprep.mubr.bf16.mxu0 %v3253
        %3534 = vmatmul.mubr.bf16.gmra.mrb[0].mxu0 %v3252
        %v3535 = vpop.f32.mrb[0].mxu0
        %v3536 = vadd.f32 0.0, %v3535
        %v3537 = vpop.f32.mrb[0].mxu0
        %v3538 = vadd.f32 0.0, %v3537
        %v3539 = vpop.f32.mrb[0].mxu0
        %v3540 = vadd.f32 0.0, %v3539
        %v3541 = vpop.f32.mrb[0].mxu0
        %v3542 = vadd.f32 0.0, %v3541
        %3543 = vmatprep.mubr.bf16.mxu0 %v3255
        %3544 = vmatmul.mubr.bf16.gmra.mrb[0].mxu0 %v3254
        %v3545 = vpop.f32.mrb[0].mxu0
        %v3546 = vadd.f32 0.0, %v3545
        %v3547 = vpop.f32.mrb[0].mxu0
        %v3548 = vadd.f32 0.0, %v3547
        %v3549 = vpop.f32.mrb[0].mxu0
        %v3550 = vadd.f32 0.0, %v3549
        %v3551 = vpop.f32.mrb[0].mxu0
        %v3552 = vadd.f32 0.0, %v3551
        %3553 = vmatprep.mubr.bf16.mxu0 %v3257
        %3554 = vmatmul.mubr.bf16.gmra.mrb[0].mxu0 %v3256
        %v3555 = vpop.f32.mrb[0].mxu0
        %v3556 = vadd.f32 0.0, %v3555
        %v3557 = vpop.f32.mrb[0].mxu0
        %v3558 = vadd.f32 0.0, %v3557
        %v3559 = vpop.f32.mrb[0].mxu0
        %v3560 = vadd.f32 0.0, %v3559
        %v3561 = vpop.f32.mrb[0].mxu0
        %v3562 = vadd.f32 0.0, %v3561
        %3563 = vdwg.mxu0
        %v3564 = vadd.f32 %v2970, %v3486
        %v3565 = vadd.f32 %v2971, %v3488
        %v3566 = vadd.f32 %v2972, %v3490
        %v3567 = vadd.f32 %v2973, %v3492
        %v3568 = vadd.f32 %v2974, %v3496
        %v3569 = vadd.f32 %v2975, %v3498
        %v3570 = vadd.f32 %v2976, %v3500
        %v3571 = vadd.f32 %v2977, %v3502
        %v3572 = vadd.f32 %v2978, %v3506
        %v3573 = vadd.f32 %v2979, %v3508
        %v3574 = vadd.f32 %v2980, %v3510
        %v3575 = vadd.f32 %v2981, %v3512
        %v3576 = vadd.f32 %v2982, %v3516
        %v3577 = vadd.f32 %v2983, %v3518
        %v3578 = vadd.f32 %v2984, %v3520
        %v3579 = vadd.f32 %v2985, %v3522
        %v3580 = vadd.f32 %v2986, %v3526
        %v3581 = vadd.f32 %v2987, %v3528
        %v3582 = vadd.f32 %v2988, %v3530
        %v3583 = vadd.f32 %v2989, %v3532
        %v3584 = vadd.f32 %v2990, %v3536
        %v3585 = vadd.f32 %v2991, %v3538
        %v3586 = vadd.f32 %v2992, %v3540
        %v3587 = vadd.f32 %v2993, %v3542
        %v3588 = vadd.f32 %v2994, %v3546
        %v3589 = vadd.f32 %v2995, %v3548
        %v3590 = vadd.f32 %v2996, %v3550
        %v3591 = vadd.f32 %v2997, %v3552
        %v3592 = vadd.f32 %v2998, %v3556
        %v3593 = vadd.f32 %v2999, %v3558
        %v3594 = vadd.f32 %v3000, %v3560
        %v3595 = vadd.f32 %v3001, %v3562
        %v3596 = vpack.c.bf16 %v1808, %v1810
        %v3597 = vpack.c.bf16 %v1809, %v1811
        %v3598 = vpack.c.bf16 %v1804, %v1806
        %v3599 = vpack.c.bf16 %v1805, %v1807
        %v3600 = vpack.c.bf16 %v1800, %v1802
        %v3601 = vpack.c.bf16 %v1801, %v1803
        %v3602 = vpack.c.bf16 %v1796, %v1798
        %v3603 = vpack.c.bf16 %v1797, %v1799
        %v3604 = vpack.c.bf16 %v1792, %v1794
        %v3605 = vpack.c.bf16 %v1793, %v1795
        %v3606 = vpack.c.bf16 %v1788, %v1790
        %v3607 = vpack.c.bf16 %v1789, %v1791
        %v3608 = vpack.c.bf16 %v1784, %v1786
        %v3609 = vpack.c.bf16 %v1785, %v1787
        %v3610 = vpack.c.bf16 %v1812, %v1782
        %v3611 = vpack.c.bf16 %v1813, %v1783
        %3612 = vset.pattern.permute.xlu0 5
        %3613 = vperm.xlu0 %3612, %v527
        %v3614 = vpop.permute.xlu0 %3613
        %v3617 = vunpack.c.l.s4 839922192
        %v3618 = vunpack.c.0.s8 %v3617
        %v3619 = vlaneseq
        %v3620 = vshrl.u32 %v3619, 7
        %v3621 = vsub.s32 %v3618, %v3620
        %v3622 = vrot.slane %v3614, %v3621
        %3623 = vset.pattern.permute.xlu0 5
        %3624 = vperm.xlu0 %3623, %v528
        %v3625 = vpop.permute.xlu0 %3624
        %v3628 = vunpack.c.l.s4 839922192
        %v3629 = vunpack.c.0.s8 %v3628
        %v3630 = vlaneseq
        %v3631 = vshrl.u32 %v3630, 7
        %v3632 = vsub.s32 %v3629, %v3631
        %v3633 = vrot.slane %v3625, %v3632
        %3634 = vset.pattern.permute.xlu0 5
        %3635 = vperm.xlu0 %3634, %v529
        %v3636 = vpop.permute.xlu0 %3635
        %v3639 = vunpack.c.l.s4 839922192
        %v3640 = vunpack.c.0.s8 %v3639
        %v3641 = vlaneseq
        %v3642 = vshrl.u32 %v3641, 7
        %v3643 = vsub.s32 %v3640, %v3642
        %v3644 = vrot.slane %v3636, %v3643
        %3645 = vset.pattern.permute.xlu0 5
        %3646 = vperm.xlu0 %3645, %v530
        %v3647 = vpop.permute.xlu0 %3646
        %v3650 = vunpack.c.l.s4 839922192
        %v3651 = vunpack.c.0.s8 %v3650
        %v3652 = vlaneseq
        %v3653 = vshrl.u32 %v3652, 7
        %v3654 = vsub.s32 %v3651, %v3653
        %v3655 = vrot.slane %v3647, %v3654
        %3656 = vset.pattern.permute.xlu0 5
        %3657 = vperm.xlu0 %3656, %v531
        %v3658 = vpop.permute.xlu0 %3657
        %v3661 = vunpack.c.l.s4 839922192
        %v3662 = vunpack.c.0.s8 %v3661
        %v3663 = vlaneseq
        %v3664 = vshrl.u32 %v3663, 7
        %v3665 = vsub.s32 %v3662, %v3664
        %v3666 = vrot.slane %v3658, %v3665
        %3667 = vset.pattern.permute.xlu0 5
        %3668 = vperm.xlu0 %3667, %v532
        %v3669 = vpop.permute.xlu0 %3668
        %v3672 = vunpack.c.l.s4 839922192
        %v3673 = vunpack.c.0.s8 %v3672
        %v3674 = vlaneseq
        %v3675 = vshrl.u32 %v3674, 7
        %v3676 = vsub.s32 %v3673, %v3675
        %v3677 = vrot.slane %v3669, %v3676
        %3678 = vset.pattern.permute.xlu0 5
        %3679 = vperm.xlu0 %3678, %v533
        %v3680 = vpop.permute.xlu0 %3679
        %v3683 = vunpack.c.l.s4 839922192
        %v3684 = vunpack.c.0.s8 %v3683
        %v3685 = vlaneseq
        %v3686 = vshrl.u32 %v3685, 7
        %v3687 = vsub.s32 %v3684, %v3686
        %v3688 = vrot.slane %v3680, %v3687
        %3689 = vset.pattern.permute.xlu0 5
        %3690 = vperm.xlu0 %3689, %v534
        %v3691 = vpop.permute.xlu0 %3690
        %v3694 = vunpack.c.l.s4 839922192
        %v3695 = vunpack.c.0.s8 %v3694
        %v3696 = vlaneseq
        %v3697 = vshrl.u32 %v3696, 7
        %v3698 = vsub.s32 %v3695, %v3697
        %v3699 = vrot.slane %v3691, %v3698
        %3700 = vset.pattern.permute.xlu0 5
        %3701 = vperm.xlu0 %3700, %v535
        %v3702 = vpop.permute.xlu0 %3701
        %v3705 = vunpack.c.l.s4 839922192
        %v3706 = vunpack.c.0.s8 %v3705
        %v3707 = vlaneseq
        %v3708 = vshrl.u32 %v3707, 7
        %v3709 = vsub.s32 %v3706, %v3708
        %v3710 = vrot.slane %v3702, %v3709
        %3711 = vset.pattern.permute.xlu0 5
        %3712 = vperm.xlu0 %3711, %v536
        %v3713 = vpop.permute.xlu0 %3712
        %v3716 = vunpack.c.l.s4 839922192
        %v3717 = vunpack.c.0.s8 %v3716
        %v3718 = vlaneseq
        %v3719 = vshrl.u32 %v3718, 7
        %v3720 = vsub.s32 %v3717, %v3719
        %v3721 = vrot.slane %v3713, %v3720
        %3722 = vset.pattern.permute.xlu0 5
        %3723 = vperm.xlu0 %3722, %v537
        %v3724 = vpop.permute.xlu0 %3723
        %v3727 = vunpack.c.l.s4 839922192
        %v3728 = vunpack.c.0.s8 %v3727
        %v3729 = vlaneseq
        %v3730 = vshrl.u32 %v3729, 7
        %v3731 = vsub.s32 %v3728, %v3730
        %v3732 = vrot.slane %v3724, %v3731
        %3733 = vset.pattern.permute.xlu0 5
        %3734 = vperm.xlu0 %3733, %v538
        %v3735 = vpop.permute.xlu0 %3734
        %v3738 = vunpack.c.l.s4 839922192
        %v3739 = vunpack.c.0.s8 %v3738
        %v3740 = vlaneseq
        %v3741 = vshrl.u32 %v3740, 7
        %v3742 = vsub.s32 %v3739, %v3741
        %v3743 = vrot.slane %v3735, %v3742
        %3744 = vset.pattern.permute.xlu0 5
        %3745 = vperm.xlu0 %3744, %v539
        %v3746 = vpop.permute.xlu0 %3745
        %v3749 = vunpack.c.l.s4 839922192
        %v3750 = vunpack.c.0.s8 %v3749
        %v3751 = vlaneseq
        %v3752 = vshrl.u32 %v3751, 7
        %v3753 = vsub.s32 %v3750, %v3752
        %v3754 = vrot.slane %v3746, %v3753
        %3755 = vset.pattern.permute.xlu0 5
        %3756 = vperm.xlu0 %3755, %v540
        %v3757 = vpop.permute.xlu0 %3756
        %v3760 = vunpack.c.l.s4 839922192
        %v3761 = vunpack.c.0.s8 %v3760
        %v3762 = vlaneseq
        %v3763 = vshrl.u32 %v3762, 7
        %v3764 = vsub.s32 %v3761, %v3763
        %v3765 = vrot.slane %v3757, %v3764
        %3766 = vset.pattern.permute.xlu0 5
        %3767 = vperm.xlu0 %3766, %v541
        %v3768 = vpop.permute.xlu0 %3767
        %v3771 = vunpack.c.l.s4 839922192
        %v3772 = vunpack.c.0.s8 %v3771
        %v3773 = vlaneseq
        %v3774 = vshrl.u32 %v3773, 7
        %v3775 = vsub.s32 %v3772, %v3774
        %v3776 = vrot.slane %v3768, %v3775
        %3777 = vset.pattern.permute.xlu0 5
        %3778 = vperm.xlu0 %3777, %v542
        %v3779 = vpop.permute.xlu0 %3778
        %v3782 = vunpack.c.l.s4 839922192
        %v3783 = vunpack.c.0.s8 %v3782
        %v3784 = vlaneseq
        %v3785 = vshrl.u32 %v3784, 7
        %v3786 = vsub.s32 %v3783, %v3785
        %v3787 = vrot.slane %v3779, %v3786
        %v3804 = vunpack.c.l.b16 %v3622
        %v3805 = vunpack.c.l.b16 %v3633
        %v3806 = vunpack.c.l.b16 %v3644
        %v3807 = vunpack.c.l.b16 %v3655
        %v3808 = vunpack.c.l.b16 %v3666
        %v3809 = vunpack.c.l.b16 %v3677
        %v3810 = vunpack.c.l.b16 %v3688
        %v3811 = vunpack.c.l.b16 %v3699
        %v3812 = vunpack.c.l.b16 %v3710
        %v3813 = vunpack.c.l.b16 %v3721
        %v3814 = vunpack.c.l.b16 %v3732
        %v3815 = vunpack.c.l.b16 %v3743
        %v3816 = vunpack.c.l.b16 %v3754
        %v3817 = vunpack.c.l.b16 %v3765
        %v3818 = vunpack.c.l.b16 %v3776
        %v3819 = vunpack.c.l.b16 %v3787
        %v3820 = vpack.c.b16 %v3805, %v3804
        %v3821 = vpack.c.b16 %v3807, %v3806
        %v3822 = vpack.c.b16 %v3809, %v3808
        %v3823 = vpack.c.b16 %v3811, %v3810
        %v3824 = vpack.c.b16 %v3813, %v3812
        %v3825 = vpack.c.b16 %v3815, %v3814
        %v3826 = vpack.c.b16 %v3817, %v3816
        %v3827 = vpack.c.b16 %v3819, %v3818
        %v3836 = vmul.bf16 %v3596, %v3820
        %v3837 = vmul.bf16 %v3597, %v3820
        %v3838 = vmul.bf16 %v3598, %v3821
        %v3839 = vmul.bf16 %v3599, %v3821
        %v3840 = vmul.bf16 %v3600, %v3822
        %v3841 = vmul.bf16 %v3601, %v3822
        %v3842 = vmul.bf16 %v3602, %v3823
        %v3843 = vmul.bf16 %v3603, %v3823
        %v3844 = vmul.bf16 %v3604, %v3824
        %v3845 = vmul.bf16 %v3605, %v3824
        %v3846 = vmul.bf16 %v3606, %v3825
        %v3847 = vmul.bf16 %v3607, %v3825
        %v3848 = vmul.bf16 %v3608, %v3826
        %v3849 = vmul.bf16 %v3609, %v3826
        %v3850 = vmul.bf16 %v3610, %v3827
        %v3851 = vmul.bf16 %v3611, %v3827
        %s3852 = scalar_lea.vmem %s287, 1280 [#allocation5]
        %v3853 = vld [vmem:[%s3852] sm:$0xff]
        %v3854 = vld [vmem:[%s3852 + $0x8] sm:$0xff]
        %v3855 = vld [vmem:[%s3852 + $0x10] sm:$0xff]
        %v3856 = vld [vmem:[%s3852 + $0x18] sm:$0xff]
        %v3857 = vld [vmem:[%s3852 + $0x20] sm:$0xff]
        %v3858 = vld [vmem:[%s3852 + $0x28] sm:$0xff]
        %v3859 = vld [vmem:[%s3852 + $0x30] sm:$0xff]
        %v3860 = vld [vmem:[%s3852 + $0x38] sm:$0xff]
        %v3861 = vld [vmem:[%s3852 + $0x40] sm:$0xff]
        %v3862 = vld [vmem:[%s3852 + $0x48] sm:$0xff]
        %v3863 = vld [vmem:[%s3852 + $0x50] sm:$0xff]
        %v3864 = vld [vmem:[%s3852 + $0x58] sm:$0xff]
        %v3865 = vld [vmem:[%s3852 + $0x60] sm:$0xff]
        %v3866 = vld [vmem:[%s3852 + $0x68] sm:$0xff]
        %v3867 = vld [vmem:[%s3852 + $0x70] sm:$0xff]
        %v3868 = vld [vmem:[%s3852 + $0x78] sm:$0xff]
        %v3869 = vld [vmem:[%s3852 + $0x80] sm:$0xff]
        %v3870 = vld [vmem:[%s3852 + $0x88] sm:$0xff]
        %v3871 = vld [vmem:[%s3852 + $0x90] sm:$0xff]
        %v3872 = vld [vmem:[%s3852 + $0x98] sm:$0xff]
        %v3873 = vld [vmem:[%s3852 + $0xa0] sm:$0xff]
        %v3874 = vld [vmem:[%s3852 + $0xa8] sm:$0xff]
        %v3875 = vld [vmem:[%s3852 + $0xb0] sm:$0xff]
        %v3876 = vld [vmem:[%s3852 + $0xb8] sm:$0xff]
        %v3877 = vld [vmem:[%s3852 + $0xc0] sm:$0xff]
        %v3878 = vld [vmem:[%s3852 + $0xc8] sm:$0xff]
        %v3879 = vld [vmem:[%s3852 + $0xd0] sm:$0xff]
        %v3880 = vld [vmem:[%s3852 + $0xd8] sm:$0xff]
        %v3881 = vld [vmem:[%s3852 + $0xe0] sm:$0xff]
        %v3882 = vld [vmem:[%s3852 + $0xe8] sm:$0xff]
        %v3883 = vld [vmem:[%s3852 + $0xf0] sm:$0xff]
        %v3884 = vld [vmem:[%s3852 + $0xf8] sm:$0xff]
        %v3917 = vunpack.c.l.b16 %v3853
        %v3918 = vunpack.c.h.b16 %v3853
        %v3919 = vunpack.c.l.b16 %v3854
        %v3920 = vunpack.c.h.b16 %v3854
        %v3921 = vunpack.c.l.b16 %v3855
        %v3922 = vunpack.c.h.b16 %v3855
        %v3923 = vunpack.c.l.b16 %v3856
        %v3924 = vunpack.c.h.b16 %v3856
        %v3925 = vunpack.c.l.b16 %v3857
        %v3926 = vunpack.c.h.b16 %v3857
        %v3927 = vunpack.c.l.b16 %v3858
        %v3928 = vunpack.c.h.b16 %v3858
        %v3929 = vunpack.c.l.b16 %v3859
        %v3930 = vunpack.c.h.b16 %v3859
        %v3931 = vunpack.c.l.b16 %v3860
        %v3932 = vunpack.c.h.b16 %v3860
        %v3933 = vunpack.c.l.b16 %v3861
        %v3934 = vunpack.c.h.b16 %v3861
        %v3935 = vunpack.c.l.b16 %v3862
        %v3936 = vunpack.c.h.b16 %v3862
        %v3937 = vunpack.c.l.b16 %v3863
        %v3938 = vunpack.c.h.b16 %v3863
        %v3939 = vunpack.c.l.b16 %v3864
        %v3940 = vunpack.c.h.b16 %v3864
        %v3941 = vunpack.c.l.b16 %v3865
        %v3942 = vunpack.c.h.b16 %v3865
        %v3943 = vunpack.c.l.b16 %v3866
        %v3944 = vunpack.c.h.b16 %v3866
        %v3945 = vunpack.c.l.b16 %v3867
        %v3946 = vunpack.c.h.b16 %v3867
        %v3947 = vunpack.c.l.b16 %v3868
        %v3948 = vunpack.c.h.b16 %v3868
        %v3949 = vunpack.c.l.b16 %v3869
        %v3950 = vunpack.c.h.b16 %v3869
        %v3951 = vunpack.c.l.b16 %v3870
        %v3952 = vunpack.c.h.b16 %v3870
        %v3953 = vunpack.c.l.b16 %v3871
        %v3954 = vunpack.c.h.b16 %v3871
        %v3955 = vunpack.c.l.b16 %v3872
        %v3956 = vunpack.c.h.b16 %v3872
        %v3957 = vunpack.c.l.b16 %v3873
        %v3958 = vunpack.c.h.b16 %v3873
        %v3959 = vunpack.c.l.b16 %v3874
        %v3960 = vunpack.c.h.b16 %v3874
        %v3961 = vunpack.c.l.b16 %v3875
        %v3962 = vunpack.c.h.b16 %v3875
        %v3963 = vunpack.c.l.b16 %v3876
        %v3964 = vunpack.c.h.b16 %v3876
        %v3965 = vunpack.c.l.b16 %v3877
        %v3966 = vunpack.c.h.b16 %v3877
        %v3967 = vunpack.c.l.b16 %v3878
        %v3968 = vunpack.c.h.b16 %v3878
        %v3969 = vunpack.c.l.b16 %v3879
        %v3970 = vunpack.c.h.b16 %v3879
        %v3971 = vunpack.c.l.b16 %v3880
        %v3972 = vunpack.c.h.b16 %v3880
        %v3973 = vunpack.c.l.b16 %v3881
        %v3974 = vunpack.c.h.b16 %v3881
        %v3975 = vunpack.c.l.b16 %v3882
        %v3976 = vunpack.c.h.b16 %v3882
        %v3977 = vunpack.c.l.b16 %v3883
        %v3978 = vunpack.c.h.b16 %v3883
        %v3979 = vunpack.c.l.b16 %v3884
        %v3980 = vunpack.c.h.b16 %v3884
        %v3981 = vpack.c.b16 %v3919, %v3917
        %v3982 = vpack.c.b16 %v3920, %v3918
        %v3983 = vpack.c.b16 %v3923, %v3921
        %v3984 = vpack.c.b16 %v3924, %v3922
        %v3985 = vpack.c.b16 %v3927, %v3925
        %v3986 = vpack.c.b16 %v3928, %v3926
        %v3987 = vpack.c.b16 %v3931, %v3929
        %v3988 = vpack.c.b16 %v3932, %v3930
        %v3989 = vpack.c.b16 %v3935, %v3933
        %v3990 = vpack.c.b16 %v3936, %v3934
        %v3991 = vpack.c.b16 %v3939, %v3937
        %v3992 = vpack.c.b16 %v3940, %v3938
        %v3993 = vpack.c.b16 %v3943, %v3941
        %v3994 = vpack.c.b16 %v3944, %v3942
        %v3995 = vpack.c.b16 %v3947, %v3945
        %v3996 = vpack.c.b16 %v3948, %v3946
        %v3997 = vpack.c.b16 %v3951, %v3949
        %v3998 = vpack.c.b16 %v3952, %v3950
        %v3999 = vpack.c.b16 %v3955, %v3953
        %v4000 = vpack.c.b16 %v3956, %v3954
        %v4001 = vpack.c.b16 %v3959, %v3957
        %v4002 = vpack.c.b16 %v3960, %v3958
        %v4003 = vpack.c.b16 %v3963, %v3961
        %v4004 = vpack.c.b16 %v3964, %v3962
        %v4005 = vpack.c.b16 %v3967, %v3965
        %v4006 = vpack.c.b16 %v3968, %v3966
        %v4007 = vpack.c.b16 %v3971, %v3969
        %v4008 = vpack.c.b16 %v3972, %v3970
        %v4009 = vpack.c.b16 %v3975, %v3973
        %v4010 = vpack.c.b16 %v3976, %v3974
        %v4011 = vpack.c.b16 %v3979, %v3977
        %v4012 = vpack.c.b16 %v3980, %v3978
        %4045 = vmatprep.subr.bf16.mxu0 %v3982
        %4046 = vmatpush1.bf16.msra.mxu0 %v3981
        %4047 = vmatprep.subr.bf16.mxu0 %v3984
        %4048 = vmatpush1.bf16.msra.mxu0 %v3983
        %4049 = vmatprep.subr.bf16.mxu0 %v3986
        %4050 = vmatpush1.bf16.msra.mxu0 %v3985
        %4051 = vmatprep.subr.bf16.mxu0 %v3988
        %4052 = vmatpush1.bf16.msra.mxu0 %v3987
        %4053 = vmatprep.subr.bf16.mxu0 %v3990
        %4054 = vmatpush1.bf16.msra.mxu0 %v3989
        %4055 = vmatprep.subr.bf16.mxu0 %v3992
        %4056 = vmatpush1.bf16.msra.mxu0 %v3991
        %4057 = vmatprep.subr.bf16.mxu0 %v3994
        %4058 = vmatpush1.bf16.msra.mxu0 %v3993
        %4059 = vmatprep.subr.bf16.mxu0 %v3996
        %4060 = vmatpush1.bf16.msra.mxu0 %v3995
        %4061 = vmatprep.subr.bf16.mxu0 %v3998
        %4062 = vmatpush1.bf16.msra.mxu0 %v3997
        %4063 = vmatprep.subr.bf16.mxu0 %v4000
        %4064 = vmatpush1.bf16.msra.mxu0 %v3999
        %4065 = vmatprep.subr.bf16.mxu0 %v4002
        %4066 = vmatpush1.bf16.msra.mxu0 %v4001
        %4067 = vmatprep.subr.bf16.mxu0 %v4004
        %4068 = vmatpush1.bf16.msra.mxu0 %v4003
        %4069 = vmatprep.subr.bf16.mxu0 %v4006
        %4070 = vmatpush1.bf16.msra.mxu0 %v4005
        %4071 = vmatprep.subr.bf16.mxu0 %v4008
        %4072 = vmatpush1.bf16.msra.mxu0 %v4007
        %4073 = vmatprep.subr.bf16.mxu0 %v4010
        %4074 = vmatpush1.bf16.msra.mxu0 %v4009
        %4075 = vmatprep.subr.bf16.mxu0 %v4012
        %4076 = vmatpush1.bf16.msra.mxu0 %v4011
        %4077 = vmatprep.mubr.bf16.mxu0 %v3837
        %4078 = vmatmul.mubr.bf16.gmra.mrb[0].mxu0 %v3836
        %v4079 = vpop.f32.mrb[0].mxu0
        %v4080 = vadd.f32 0.0, %v4079
        %v4081 = vpop.f32.mrb[0].mxu0
        %v4082 = vadd.f32 0.0, %v4081
        %v4083 = vpop.f32.mrb[0].mxu0
        %v4084 = vadd.f32 0.0, %v4083
        %v4085 = vpop.f32.mrb[0].mxu0
        %v4086 = vadd.f32 0.0, %v4085
        %4087 = vmatprep.mubr.bf16.mxu0 %v3839
        %4088 = vmatmul.mubr.bf16.gmra.mrb[0].mxu0 %v3838
        %v4089 = vpop.f32.mrb[0].mxu0
        %v4090 = vadd.f32 0.0, %v4089
        %v4091 = vpop.f32.mrb[0].mxu0
        %v4092 = vadd.f32 0.0, %v4091
        %v4093 = vpop.f32.mrb[0].mxu0
        %v4094 = vadd.f32 0.0, %v4093
        %v4095 = vpop.f32.mrb[0].mxu0
        %v4096 = vadd.f32 0.0, %v4095
        %4097 = vmatprep.mubr.bf16.mxu0 %v3841
        %4098 = vmatmul.mubr.bf16.gmra.mrb[0].mxu0 %v3840
        %v4099 = vpop.f32.mrb[0].mxu0
        %v4100 = vadd.f32 0.0, %v4099
        %v4101 = vpop.f32.mrb[0].mxu0
        %v4102 = vadd.f32 0.0, %v4101
        %v4103 = vpop.f32.mrb[0].mxu0
        %v4104 = vadd.f32 0.0, %v4103
        %v4105 = vpop.f32.mrb[0].mxu0
        %v4106 = vadd.f32 0.0, %v4105
        %4107 = vmatprep.mubr.bf16.mxu0 %v3843
        %4108 = vmatmul.mubr.bf16.gmra.mrb[0].mxu0 %v3842
        %v4109 = vpop.f32.mrb[0].mxu0
        %v4110 = vadd.f32 0.0, %v4109
        %v4111 = vpop.f32.mrb[0].mxu0
        %v4112 = vadd.f32 0.0, %v4111
        %v4113 = vpop.f32.mrb[0].mxu0
        %v4114 = vadd.f32 0.0, %v4113
        %v4115 = vpop.f32.mrb[0].mxu0
        %v4116 = vadd.f32 0.0, %v4115
        %4117 = vmatprep.mubr.bf16.mxu0 %v3845
        %4118 = vmatmul.mubr.bf16.gmra.mrb[0].mxu0 %v3844
        %v4119 = vpop.f32.mrb[0].mxu0
        %v4120 = vadd.f32 0.0, %v4119
        %v4121 = vpop.f32.mrb[0].mxu0
        %v4122 = vadd.f32 0.0, %v4121
        %v4123 = vpop.f32.mrb[0].mxu0
        %v4124 = vadd.f32 0.0, %v4123
        %v4125 = vpop.f32.mrb[0].mxu0
        %v4126 = vadd.f32 0.0, %v4125
        %4127 = vmatprep.mubr.bf16.mxu0 %v3847
        %4128 = vmatmul.mubr.bf16.gmra.mrb[0].mxu0 %v3846
        %v4129 = vpop.f32.mrb[0].mxu0
        %v4130 = vadd.f32 0.0, %v4129
        %v4131 = vpop.f32.mrb[0].mxu0
        %v4132 = vadd.f32 0.0, %v4131
        %v4133 = vpop.f32.mrb[0].mxu0
        %v4134 = vadd.f32 0.0, %v4133
        %v4135 = vpop.f32.mrb[0].mxu0
        %v4136 = vadd.f32 0.0, %v4135
        %4137 = vmatprep.mubr.bf16.mxu0 %v3849
        %4138 = vmatmul.mubr.bf16.gmra.mrb[0].mxu0 %v3848
        %v4139 = vpop.f32.mrb[0].mxu0
        %v4140 = vadd.f32 0.0, %v4139
        %v4141 = vpop.f32.mrb[0].mxu0
        %v4142 = vadd.f32 0.0, %v4141
        %v4143 = vpop.f32.mrb[0].mxu0
        %v4144 = vadd.f32 0.0, %v4143
        %v4145 = vpop.f32.mrb[0].mxu0
        %v4146 = vadd.f32 0.0, %v4145
        %4147 = vmatprep.mubr.bf16.mxu0 %v3851
        %4148 = vmatmul.mubr.bf16.gmra.mrb[0].mxu0 %v3850
        %v4149 = vpop.f32.mrb[0].mxu0
        %v4150 = vadd.f32 0.0, %v4149
        %v4151 = vpop.f32.mrb[0].mxu0
        %v4152 = vadd.f32 0.0, %v4151
        %v4153 = vpop.f32.mrb[0].mxu0
        %v4154 = vadd.f32 0.0, %v4153
        %v4155 = vpop.f32.mrb[0].mxu0
        %v4156 = vadd.f32 0.0, %v4155
        %4157 = vdwg.mxu0
        %v4158 = vadd.f32 %v3564, %v4080
        %v4159 = vadd.f32 %v3565, %v4082
        %v4160 = vadd.f32 %v3566, %v4084
        %v4161 = vadd.f32 %v3567, %v4086
        %v4162 = vadd.f32 %v3568, %v4090
        %v4163 = vadd.f32 %v3569, %v4092
        %v4164 = vadd.f32 %v3570, %v4094
        %v4165 = vadd.f32 %v3571, %v4096
        %v4166 = vadd.f32 %v3572, %v4100
        %v4167 = vadd.f32 %v3573, %v4102
        %v4168 = vadd.f32 %v3574, %v4104
        %v4169 = vadd.f32 %v3575, %v4106
        %v4170 = vadd.f32 %v3576, %v4110
        %v4171 = vadd.f32 %v3577, %v4112
        %v4172 = vadd.f32 %v3578, %v4114
        %v4173 = vadd.f32 %v3579, %v4116
        %v4174 = vadd.f32 %v3580, %v4120
        %v4175 = vadd.f32 %v3581, %v4122
        %v4176 = vadd.f32 %v3582, %v4124
        %v4177 = vadd.f32 %v3583, %v4126
        %v4178 = vadd.f32 %v3584, %v4130
        %v4179 = vadd.f32 %v3585, %v4132
        %v4180 = vadd.f32 %v3586, %v4134
        %v4181 = vadd.f32 %v3587, %v4136
        %v4182 = vadd.f32 %v3588, %v4140
        %v4183 = vadd.f32 %v3589, %v4142
        %v4184 = vadd.f32 %v3590, %v4144
        %v4185 = vadd.f32 %v3591, %v4146
        %v4186 = vadd.f32 %v3592, %v4150
        %v4187 = vadd.f32 %v3593, %v4152
        %v4188 = vadd.f32 %v3594, %v4154
        %v4189 = vadd.f32 %v3595, %v4156
        %4190 = vset.pattern.permute.xlu0 6
        %4191 = vperm.xlu0 %4190, %v527
        %v4192 = vpop.permute.xlu0 %4191
        %v4195 = vunpack.c.l.s4 839922192
        %v4196 = vunpack.c.0.s8 %v4195
        %v4197 = vlaneseq
        %v4198 = vshrl.u32 %v4197, 7
        %v4199 = vsub.s32 %v4196, %v4198
        %v4200 = vrot.slane %v4192, %v4199
        %4201 = vset.pattern.permute.xlu0 6
        %4202 = vperm.xlu0 %4201, %v528
        %v4203 = vpop.permute.xlu0 %4202
        %v4206 = vunpack.c.l.s4 839922192
        %v4207 = vunpack.c.0.s8 %v4206
        %v4208 = vlaneseq
        %v4209 = vshrl.u32 %v4208, 7
        %v4210 = vsub.s32 %v4207, %v4209
        %v4211 = vrot.slane %v4203, %v4210
        %4212 = vset.pattern.permute.xlu0 6
        %4213 = vperm.xlu0 %4212, %v529
        %v4214 = vpop.permute.xlu0 %4213
        %v4217 = vunpack.c.l.s4 839922192
        %v4218 = vunpack.c.0.s8 %v4217
        %v4219 = vlaneseq
        %v4220 = vshrl.u32 %v4219, 7
        %v4221 = vsub.s32 %v4218, %v4220
        %v4222 = vrot.slane %v4214, %v4221
        %4223 = vset.pattern.permute.xlu0 6
        %4224 = vperm.xlu0 %4223, %v530
        %v4225 = vpop.permute.xlu0 %4224
        %v4228 = vunpack.c.l.s4 839922192
        %v4229 = vunpack.c.0.s8 %v4228
        %v4230 = vlaneseq
        %v4231 = vshrl.u32 %v4230, 7
        %v4232 = vsub.s32 %v4229, %v4231
        %v4233 = vrot.slane %v4225, %v4232
        %4234 = vset.pattern.permute.xlu0 6
        %4235 = vperm.xlu0 %4234, %v531
        %v4236 = vpop.permute.xlu0 %4235
        %v4239 = vunpack.c.l.s4 839922192
        %v4240 = vunpack.c.0.s8 %v4239
        %v4241 = vlaneseq
        %v4242 = vshrl.u32 %v4241, 7
        %v4243 = vsub.s32 %v4240, %v4242
        %v4244 = vrot.slane %v4236, %v4243
        %4245 = vset.pattern.permute.xlu0 6
        %4246 = vperm.xlu0 %4245, %v532
        %v4247 = vpop.permute.xlu0 %4246
        %v4250 = vunpack.c.l.s4 839922192
        %v4251 = vunpack.c.0.s8 %v4250
        %v4252 = vlaneseq
        %v4253 = vshrl.u32 %v4252, 7
        %v4254 = vsub.s32 %v4251, %v4253
        %v4255 = vrot.slane %v4247, %v4254
        %4256 = vset.pattern.permute.xlu0 6
        %4257 = vperm.xlu0 %4256, %v533
        %v4258 = vpop.permute.xlu0 %4257
        %v4261 = vunpack.c.l.s4 839922192
        %v4262 = vunpack.c.0.s8 %v4261
        %v4263 = vlaneseq
        %v4264 = vshrl.u32 %v4263, 7
        %v4265 = vsub.s32 %v4262, %v4264
        %v4266 = vrot.slane %v4258, %v4265
        %4267 = vset.pattern.permute.xlu0 6
        %4268 = vperm.xlu0 %4267, %v534
        %v4269 = vpop.permute.xlu0 %4268
        %v4272 = vunpack.c.l.s4 839922192
        %v4273 = vunpack.c.0.s8 %v4272
        %v4274 = vlaneseq
        %v4275 = vshrl.u32 %v4274, 7
        %v4276 = vsub.s32 %v4273, %v4275
        %v4277 = vrot.slane %v4269, %v4276
        %4278 = vset.pattern.permute.xlu0 6
        %4279 = vperm.xlu0 %4278, %v535
        %v4280 = vpop.permute.xlu0 %4279
        %v4283 = vunpack.c.l.s4 839922192
        %v4284 = vunpack.c.0.s8 %v4283
        %v4285 = vlaneseq
        %v4286 = vshrl.u32 %v4285, 7
        %v4287 = vsub.s32 %v4284, %v4286
        %v4288 = vrot.slane %v4280, %v4287
        %4289 = vset.pattern.permute.xlu0 6
        %4290 = vperm.xlu0 %4289, %v536
        %v4291 = vpop.permute.xlu0 %4290
        %v4294 = vunpack.c.l.s4 839922192
        %v4295 = vunpack.c.0.s8 %v4294
        %v4296 = vlaneseq
        %v4297 = vshrl.u32 %v4296, 7
        %v4298 = vsub.s32 %v4295, %v4297
        %v4299 = vrot.slane %v4291, %v4298
        %4300 = vset.pattern.permute.xlu0 6
        %4301 = vperm.xlu0 %4300, %v537
        %v4302 = vpop.permute.xlu0 %4301
        %v4305 = vunpack.c.l.s4 839922192
        %v4306 = vunpack.c.0.s8 %v4305
        %v4307 = vlaneseq
        %v4308 = vshrl.u32 %v4307, 7
        %v4309 = vsub.s32 %v4306, %v4308
        %v4310 = vrot.slane %v4302, %v4309
        %4311 = vset.pattern.permute.xlu0 6
        %4312 = vperm.xlu0 %4311, %v538
        %v4313 = vpop.permute.xlu0 %4312
        %v4316 = vunpack.c.l.s4 839922192
        %v4317 = vunpack.c.0.s8 %v4316
        %v4318 = vlaneseq
        %v4319 = vshrl.u32 %v4318, 7
        %v4320 = vsub.s32 %v4317, %v4319
        %v4321 = vrot.slane %v4313, %v4320
        %4322 = vset.pattern.permute.xlu0 6
        %4323 = vperm.xlu0 %4322, %v539
        %v4324 = vpop.permute.xlu0 %4323
        %v4327 = vunpack.c.l.s4 839922192
        %v4328 = vunpack.c.0.s8 %v4327
        %v4329 = vlaneseq
        %v4330 = vshrl.u32 %v4329, 7
        %v4331 = vsub.s32 %v4328, %v4330
        %v4332 = vrot.slane %v4324, %v4331
        %4333 = vset.pattern.permute.xlu0 6
        %4334 = vperm.xlu0 %4333, %v540
        %v4335 = vpop.permute.xlu0 %4334
        %v4338 = vunpack.c.l.s4 839922192
        %v4339 = vunpack.c.0.s8 %v4338
        %v4340 = vlaneseq
        %v4341 = vshrl.u32 %v4340, 7
        %v4342 = vsub.s32 %v4339, %v4341
        %v4343 = vrot.slane %v4335, %v4342
        %4344 = vset.pattern.permute.xlu0 6
        %4345 = vperm.xlu0 %4344, %v541
        %v4346 = vpop.permute.xlu0 %4345
        %v4349 = vunpack.c.l.s4 839922192
        %v4350 = vunpack.c.0.s8 %v4349
        %v4351 = vlaneseq
        %v4352 = vshrl.u32 %v4351, 7
        %v4353 = vsub.s32 %v4350, %v4352
        %v4354 = vrot.slane %v4346, %v4353
        %4355 = vset.pattern.permute.xlu0 6
        %4356 = vperm.xlu0 %4355, %v542
        %v4357 = vpop.permute.xlu0 %4356
        %v4360 = vunpack.c.l.s4 839922192
        %v4361 = vunpack.c.0.s8 %v4360
        %v4362 = vlaneseq
        %v4363 = vshrl.u32 %v4362, 7
        %v4364 = vsub.s32 %v4361, %v4363
        %v4365 = vrot.slane %v4357, %v4364
        %v4382 = vunpack.c.l.b16 %v4200
        %v4383 = vunpack.c.l.b16 %v4211
        %v4384 = vunpack.c.l.b16 %v4222
        %v4385 = vunpack.c.l.b16 %v4233
        %v4386 = vunpack.c.l.b16 %v4244
        %v4387 = vunpack.c.l.b16 %v4255
        %v4388 = vunpack.c.l.b16 %v4266
        %v4389 = vunpack.c.l.b16 %v4277
        %v4390 = vunpack.c.l.b16 %v4288
        %v4391 = vunpack.c.l.b16 %v4299
        %v4392 = vunpack.c.l.b16 %v4310
        %v4393 = vunpack.c.l.b16 %v4321
        %v4394 = vunpack.c.l.b16 %v4332
        %v4395 = vunpack.c.l.b16 %v4343
        %v4396 = vunpack.c.l.b16 %v4354
        %v4397 = vunpack.c.l.b16 %v4365
        %v4398 = vpack.c.b16 %v4383, %v4382
        %v4399 = vpack.c.b16 %v4385, %v4384
        %v4400 = vpack.c.b16 %v4387, %v4386
        %v4401 = vpack.c.b16 %v4389, %v4388
        %v4402 = vpack.c.b16 %v4391, %v4390
        %v4403 = vpack.c.b16 %v4393, %v4392
        %v4404 = vpack.c.b16 %v4395, %v4394
        %v4405 = vpack.c.b16 %v4397, %v4396
        %v4414 = vmul.bf16 %v612, %v4398
        %v4415 = vmul.bf16 %v613, %v4398
        %v4416 = vmul.bf16 %v614, %v4399
        %v4417 = vmul.bf16 %v615, %v4399
        %v4418 = vmul.bf16 %v616, %v4400
        %v4419 = vmul.bf16 %v617, %v4400
        %v4420 = vmul.bf16 %v618, %v4401
        %v4421 = vmul.bf16 %v619, %v4401
        %v4422 = vmul.bf16 %v620, %v4402
        %v4423 = vmul.bf16 %v621, %v4402
        %v4424 = vmul.bf16 %v622, %v4403
        %v4425 = vmul.bf16 %v623, %v4403
        %v4426 = vmul.bf16 %v624, %v4404
        %v4427 = vmul.bf16 %v625, %v4404
        %v4428 = vmul.bf16 %v610, %v4405
        %v4429 = vmul.bf16 %v611, %v4405
        %s4430 = scalar_lea.vmem %s287, 1536 [#allocation5]
        %v4431 = vld [vmem:[%s4430] sm:$0xff]
        %v4432 = vld [vmem:[%s4430 + $0x8] sm:$0xff]
        %v4433 = vld [vmem:[%s4430 + $0x10] sm:$0xff]
        %v4434 = vld [vmem:[%s4430 + $0x18] sm:$0xff]
        %v4435 = vld [vmem:[%s4430 + $0x20] sm:$0xff]
        %v4436 = vld [vmem:[%s4430 + $0x28] sm:$0xff]
        %v4437 = vld [vmem:[%s4430 + $0x30] sm:$0xff]
        %v4438 = vld [vmem:[%s4430 + $0x38] sm:$0xff]
        %v4439 = vld [vmem:[%s4430 + $0x40] sm:$0xff]
        %v4440 = vld [vmem:[%s4430 + $0x48] sm:$0xff]
        %v4441 = vld [vmem:[%s4430 + $0x50] sm:$0xff]
        %v4442 = vld [vmem:[%s4430 + $0x58] sm:$0xff]
        %v4443 = vld [vmem:[%s4430 + $0x60] sm:$0xff]
        %v4444 = vld [vmem:[%s4430 + $0x68] sm:$0xff]
        %v4445 = vld [vmem:[%s4430 + $0x70] sm:$0xff]
        %v4446 = vld [vmem:[%s4430 + $0x78] sm:$0xff]
        %v4447 = vld [vmem:[%s4430 + $0x80] sm:$0xff]
        %v4448 = vld [vmem:[%s4430 + $0x88] sm:$0xff]
        %v4449 = vld [vmem:[%s4430 + $0x90] sm:$0xff]
        %v4450 = vld [vmem:[%s4430 + $0x98] sm:$0xff]
        %v4451 = vld [vmem:[%s4430 + $0xa0] sm:$0xff]
        %v4452 = vld [vmem:[%s4430 + $0xa8] sm:$0xff]
        %v4453 = vld [vmem:[%s4430 + $0xb0] sm:$0xff]
        %v4454 = vld [vmem:[%s4430 + $0xb8] sm:$0xff]
        %v4455 = vld [vmem:[%s4430 + $0xc0] sm:$0xff]
        %v4456 = vld [vmem:[%s4430 + $0xc8] sm:$0xff]
        %v4457 = vld [vmem:[%s4430 + $0xd0] sm:$0xff]
        %v4458 = vld [vmem:[%s4430 + $0xd8] sm:$0xff]
        %v4459 = vld [vmem:[%s4430 + $0xe0] sm:$0xff]
        %v4460 = vld [vmem:[%s4430 + $0xe8] sm:$0xff]
        %v4461 = vld [vmem:[%s4430 + $0xf0] sm:$0xff]
        %v4462 = vld [vmem:[%s4430 + $0xf8] sm:$0xff]
        %v4495 = vunpack.c.l.b16 %v4431
        %v4496 = vunpack.c.h.b16 %v4431
        %v4497 = vunpack.c.l.b16 %v4432
        %v4498 = vunpack.c.h.b16 %v4432
        %v4499 = vunpack.c.l.b16 %v4433
        %v4500 = vunpack.c.h.b16 %v4433
        %v4501 = vunpack.c.l.b16 %v4434
        %v4502 = vunpack.c.h.b16 %v4434
        %v4503 = vunpack.c.l.b16 %v4435
        %v4504 = vunpack.c.h.b16 %v4435
        %v4505 = vunpack.c.l.b16 %v4436
        %v4506 = vunpack.c.h.b16 %v4436
        %v4507 = vunpack.c.l.b16 %v4437
        %v4508 = vunpack.c.h.b16 %v4437
        %v4509 = vunpack.c.l.b16 %v4438
        %v4510 = vunpack.c.h.b16 %v4438
        %v4511 = vunpack.c.l.b16 %v4439
        %v4512 = vunpack.c.h.b16 %v4439
        %v4513 = vunpack.c.l.b16 %v4440
        %v4514 = vunpack.c.h.b16 %v4440
        %v4515 = vunpack.c.l.b16 %v4441
        %v4516 = vunpack.c.h.b16 %v4441
        %v4517 = vunpack.c.l.b16 %v4442
        %v4518 = vunpack.c.h.b16 %v4442
        %v4519 = vunpack.c.l.b16 %v4443
        %v4520 = vunpack.c.h.b16 %v4443
        %v4521 = vunpack.c.l.b16 %v4444
        %v4522 = vunpack.c.h.b16 %v4444
        %v4523 = vunpack.c.l.b16 %v4445
        %v4524 = vunpack.c.h.b16 %v4445
        %v4525 = vunpack.c.l.b16 %v4446
        %v4526 = vunpack.c.h.b16 %v4446
        %v4527 = vunpack.c.l.b16 %v4447
        %v4528 = vunpack.c.h.b16 %v4447
        %v4529 = vunpack.c.l.b16 %v4448
        %v4530 = vunpack.c.h.b16 %v4448
        %v4531 = vunpack.c.l.b16 %v4449
        %v4532 = vunpack.c.h.b16 %v4449
        %v4533 = vunpack.c.l.b16 %v4450
        %v4534 = vunpack.c.h.b16 %v4450
        %v4535 = vunpack.c.l.b16 %v4451
        %v4536 = vunpack.c.h.b16 %v4451
        %v4537 = vunpack.c.l.b16 %v4452
        %v4538 = vunpack.c.h.b16 %v4452
        %v4539 = vunpack.c.l.b16 %v4453
        %v4540 = vunpack.c.h.b16 %v4453
        %v4541 = vunpack.c.l.b16 %v4454
        %v4542 = vunpack.c.h.b16 %v4454
        %v4543 = vunpack.c.l.b16 %v4455
        %v4544 = vunpack.c.h.b16 %v4455
        %v4545 = vunpack.c.l.b16 %v4456
        %v4546 = vunpack.c.h.b16 %v4456
        %v4547 = vunpack.c.l.b16 %v4457
        %v4548 = vunpack.c.h.b16 %v4457
        %v4549 = vunpack.c.l.b16 %v4458
        %v4550 = vunpack.c.h.b16 %v4458
        %v4551 = vunpack.c.l.b16 %v4459
        %v4552 = vunpack.c.h.b16 %v4459
        %v4553 = vunpack.c.l.b16 %v4460
        %v4554 = vunpack.c.h.b16 %v4460
        %v4555 = vunpack.c.l.b16 %v4461
        %v4556 = vunpack.c.h.b16 %v4461
        %v4557 = vunpack.c.l.b16 %v4462
        %v4558 = vunpack.c.h.b16 %v4462
        %v4559 = vpack.c.b16 %v4497, %v4495
        %v4560 = vpack.c.b16 %v4498, %v4496
        %v4561 = vpack.c.b16 %v4501, %v4499
        %v4562 = vpack.c.b16 %v4502, %v4500
        %v4563 = vpack.c.b16 %v4505, %v4503
        %v4564 = vpack.c.b16 %v4506, %v4504
        %v4565 = vpack.c.b16 %v4509, %v4507
        %v4566 = vpack.c.b16 %v4510, %v4508
        %v4567 = vpack.c.b16 %v4513, %v4511
        %v4568 = vpack.c.b16 %v4514, %v4512
        %v4569 = vpack.c.b16 %v4517, %v4515
        %v4570 = vpack.c.b16 %v4518, %v4516
        %v4571 = vpack.c.b16 %v4521, %v4519
        %v4572 = vpack.c.b16 %v4522, %v4520
        %v4573 = vpack.c.b16 %v4525, %v4523
        %v4574 = vpack.c.b16 %v4526, %v4524
        %v4575 = vpack.c.b16 %v4529, %v4527
        %v4576 = vpack.c.b16 %v4530, %v4528
        %v4577 = vpack.c.b16 %v4533, %v4531
        %v4578 = vpack.c.b16 %v4534, %v4532
        %v4579 = vpack.c.b16 %v4537, %v4535
        %v4580 = vpack.c.b16 %v4538, %v4536
        %v4581 = vpack.c.b16 %v4541, %v4539
        %v4582 = vpack.c.b16 %v4542, %v4540
        %v4583 = vpack.c.b16 %v4545, %v4543
        %v4584 = vpack.c.b16 %v4546, %v4544
        %v4585 = vpack.c.b16 %v4549, %v4547
        %v4586 = vpack.c.b16 %v4550, %v4548
        %v4587 = vpack.c.b16 %v4553, %v4551
        %v4588 = vpack.c.b16 %v4554, %v4552
        %v4589 = vpack.c.b16 %v4557, %v4555
        %v4590 = vpack.c.b16 %v4558, %v4556
        %4623 = vmatprep.subr.bf16.mxu0 %v4560
        %4624 = vmatpush1.bf16.msra.mxu0 %v4559
        %4625 = vmatprep.subr.bf16.mxu0 %v4562
        %4626 = vmatpush1.bf16.msra.mxu0 %v4561
        %4627 = vmatprep.subr.bf16.mxu0 %v4564
        %4628 = vmatpush1.bf16.msra.mxu0 %v4563
        %4629 = vmatprep.subr.bf16.mxu0 %v4566
        %4630 = vmatpush1.bf16.msra.mxu0 %v4565
        %4631 = vmatprep.subr.bf16.mxu0 %v4568
        %4632 = vmatpush1.bf16.msra.mxu0 %v4567
        %4633 = vmatprep.subr.bf16.mxu0 %v4570
        %4634 = vmatpush1.bf16.msra.mxu0 %v4569
        %4635 = vmatprep.subr.bf16.mxu0 %v4572
        %4636 = vmatpush1.bf16.msra.mxu0 %v4571
        %4637 = vmatprep.subr.bf16.mxu0 %v4574
        %4638 = vmatpush1.bf16.msra.mxu0 %v4573
        %4639 = vmatprep.subr.bf16.mxu0 %v4576
        %4640 = vmatpush1.bf16.msra.mxu0 %v4575
        %4641 = vmatprep.subr.bf16.mxu0 %v4578
        %4642 = vmatpush1.bf16.msra.mxu0 %v4577
        %4643 = vmatprep.subr.bf16.mxu0 %v4580
        %4644 = vmatpush1.bf16.msra.mxu0 %v4579
        %4645 = vmatprep.subr.bf16.mxu0 %v4582
        %4646 = vmatpush1.bf16.msra.mxu0 %v4581
        %4647 = vmatprep.subr.bf16.mxu0 %v4584
        %4648 = vmatpush1.bf16.msra.mxu0 %v4583
        %4649 = vmatprep.subr.bf16.mxu0 %v4586
        %4650 = vmatpush1.bf16.msra.mxu0 %v4585
        %4651 = vmatprep.subr.bf16.mxu0 %v4588
        %4652 = vmatpush1.bf16.msra.mxu0 %v4587
        %4653 = vmatprep.subr.bf16.mxu0 %v4590
        %4654 = vmatpush1.bf16.msra.mxu0 %v4589
        %4655 = vmatprep.mubr.bf16.mxu0 %v4415
        %4656 = vmatmul.mubr.bf16.gmra.mrb[0].mxu0 %v4414
        %v4657 = vpop.f32.mrb[0].mxu0
        %v4658 = vadd.f32 0.0, %v4657
        %v4659 = vpop.f32.mrb[0].mxu0
        %v4660 = vadd.f32 0.0, %v4659
        %v4661 = vpop.f32.mrb[0].mxu0
        %v4662 = vadd.f32 0.0, %v4661
        %v4663 = vpop.f32.mrb[0].mxu0
        %v4664 = vadd.f32 0.0, %v4663
        %4665 = vmatprep.mubr.bf16.mxu0 %v4417
        %4666 = vmatmul.mubr.bf16.gmra.mrb[0].mxu0 %v4416
        %v4667 = vpop.f32.mrb[0].mxu0
        %v4668 = vadd.f32 0.0, %v4667
        %v4669 = vpop.f32.mrb[0].mxu0
        %v4670 = vadd.f32 0.0, %v4669
        %v4671 = vpop.f32.mrb[0].mxu0
        %v4672 = vadd.f32 0.0, %v4671
        %v4673 = vpop.f32.mrb[0].mxu0
        %v4674 = vadd.f32 0.0, %v4673
        %4675 = vmatprep.mubr.bf16.mxu0 %v4419
        %4676 = vmatmul.mubr.bf16.gmra.mrb[0].mxu0 %v4418
        %v4677 = vpop.f32.mrb[0].mxu0
        %v4678 = vadd.f32 0.0, %v4677
        %v4679 = vpop.f32.mrb[0].mxu0
        %v4680 = vadd.f32 0.0, %v4679
        %v4681 = vpop.f32.mrb[0].mxu0
        %v4682 = vadd.f32 0.0, %v4681
        %v4683 = vpop.f32.mrb[0].mxu0
        %v4684 = vadd.f32 0.0, %v4683
        %4685 = vmatprep.mubr.bf16.mxu0 %v4421
        %4686 = vmatmul.mubr.bf16.gmra.mrb[0].mxu0 %v4420
        %v4687 = vpop.f32.mrb[0].mxu0
        %v4688 = vadd.f32 0.0, %v4687
        %v4689 = vpop.f32.mrb[0].mxu0
        %v4690 = vadd.f32 0.0, %v4689
        %v4691 = vpop.f32.mrb[0].mxu0
        %v4692 = vadd.f32 0.0, %v4691
        %v4693 = vpop.f32.mrb[0].mxu0
        %v4694 = vadd.f32 0.0, %v4693
        %4695 = vmatprep.mubr.bf16.mxu0 %v4423
        %4696 = vmatmul.mubr.bf16.gmra.mrb[0].mxu0 %v4422
        %v4697 = vpop.f32.mrb[0].mxu0
        %v4698 = vadd.f32 0.0, %v4697
        %v4699 = vpop.f32.mrb[0].mxu0
        %v4700 = vadd.f32 0.0, %v4699
        %v4701 = vpop.f32.mrb[0].mxu0
        %v4702 = vadd.f32 0.0, %v4701
        %v4703 = vpop.f32.mrb[0].mxu0
        %v4704 = vadd.f32 0.0, %v4703
        %4705 = vmatprep.mubr.bf16.mxu0 %v4425
        %4706 = vmatmul.mubr.bf16.gmra.mrb[0].mxu0 %v4424
        %v4707 = vpop.f32.mrb[0].mxu0
        %v4708 = vadd.f32 0.0, %v4707
        %v4709 = vpop.f32.mrb[0].mxu0
        %v4710 = vadd.f32 0.0, %v4709
        %v4711 = vpop.f32.mrb[0].mxu0
        %v4712 = vadd.f32 0.0, %v4711
        %v4713 = vpop.f32.mrb[0].mxu0
        %v4714 = vadd.f32 0.0, %v4713
        %4715 = vmatprep.mubr.bf16.mxu0 %v4427
        %4716 = vmatmul.mubr.bf16.gmra.mrb[0].mxu0 %v4426
        %v4717 = vpop.f32.mrb[0].mxu0
        %v4718 = vadd.f32 0.0, %v4717
        %v4719 = vpop.f32.mrb[0].mxu0
        %v4720 = vadd.f32 0.0, %v4719
        %v4721 = vpop.f32.mrb[0].mxu0
        %v4722 = vadd.f32 0.0, %v4721
        %v4723 = vpop.f32.mrb[0].mxu0
        %v4724 = vadd.f32 0.0, %v4723
        %4725 = vmatprep.mubr.bf16.mxu0 %v4429
        %4726 = vmatmul.mubr.bf16.gmra.mrb[0].mxu0 %v4428
        %v4727 = vpop.f32.mrb[0].mxu0
        %v4728 = vadd.f32 0.0, %v4727
        %v4729 = vpop.f32.mrb[0].mxu0
        %v4730 = vadd.f32 0.0, %v4729
        %v4731 = vpop.f32.mrb[0].mxu0
        %v4732 = vadd.f32 0.0, %v4731
        %v4733 = vpop.f32.mrb[0].mxu0
        %v4734 = vadd.f32 0.0, %v4733
        %4735 = vdwg.mxu0
        %v4736 = vadd.f32 %v4158, %v4658
        %v4737 = vadd.f32 %v4159, %v4660
        %v4738 = vadd.f32 %v4160, %v4662
        %v4739 = vadd.f32 %v4161, %v4664
        %v4740 = vadd.f32 %v4162, %v4668
        %v4741 = vadd.f32 %v4163, %v4670
        %v4742 = vadd.f32 %v4164, %v4672
        %v4743 = vadd.f32 %v4165, %v4674
        %v4744 = vadd.f32 %v4166, %v4678
        %v4745 = vadd.f32 %v4167, %v4680
        %v4746 = vadd.f32 %v4168, %v4682
        %v4747 = vadd.f32 %v4169, %v4684
        %v4748 = vadd.f32 %v4170, %v4688
        %v4749 = vadd.f32 %v4171, %v4690
        %v4750 = vadd.f32 %v4172, %v4692
        %v4751 = vadd.f32 %v4173, %v4694
        %v4752 = vadd.f32 %v4174, %v4698
        %v4753 = vadd.f32 %v4175, %v4700
        %v4754 = vadd.f32 %v4176, %v4702
        %v4755 = vadd.f32 %v4177, %v4704
        %v4756 = vadd.f32 %v4178, %v4708
        %v4757 = vadd.f32 %v4179, %v4710
        %v4758 = vadd.f32 %v4180, %v4712
        %v4759 = vadd.f32 %v4181, %v4714
        %v4760 = vadd.f32 %v4182, %v4718
        %v4761 = vadd.f32 %v4183, %v4720
        %v4762 = vadd.f32 %v4184, %v4722
        %v4763 = vadd.f32 %v4185, %v4724
        %v4764 = vadd.f32 %v4186, %v4728
        %v4765 = vadd.f32 %v4187, %v4730
        %v4766 = vadd.f32 %v4188, %v4732
        %v4767 = vadd.f32 %v4189, %v4734
        %4768 = vset.pattern.permute.xlu0 7
        %4769 = vperm.xlu0 %4768, %v527
        %v4770 = vpop.permute.xlu0 %4769
        %v4773 = vunpack.c.l.s4 839922192
        %v4774 = vunpack.c.0.s8 %v4773
        %v4775 = vlaneseq
        %v4776 = vshrl.u32 %v4775, 7
        %v4777 = vsub.s32 %v4774, %v4776
        %v4778 = vrot.slane %v4770, %v4777
        %4779 = vset.pattern.permute.xlu0 7
        %4780 = vperm.xlu0 %4779, %v528
        %v4781 = vpop.permute.xlu0 %4780
        %v4784 = vunpack.c.l.s4 839922192
        %v4785 = vunpack.c.0.s8 %v4784
        %v4786 = vlaneseq
        %v4787 = vshrl.u32 %v4786, 7
        %v4788 = vsub.s32 %v4785, %v4787
        %v4789 = vrot.slane %v4781, %v4788
        %4790 = vset.pattern.permute.xlu0 7
        %4791 = vperm.xlu0 %4790, %v529
        %v4792 = vpop.permute.xlu0 %4791
        %v4795 = vunpack.c.l.s4 839922192
        %v4796 = vunpack.c.0.s8 %v4795
        %v4797 = vlaneseq
        %v4798 = vshrl.u32 %v4797, 7
        %v4799 = vsub.s32 %v4796, %v4798
        %v4800 = vrot.slane %v4792, %v4799
        %4801 = vset.pattern.permute.xlu0 7
        %4802 = vperm.xlu0 %4801, %v530
        %v4803 = vpop.permute.xlu0 %4802
        %v4806 = vunpack.c.l.s4 839922192
        %v4807 = vunpack.c.0.s8 %v4806
        %v4808 = vlaneseq
        %v4809 = vshrl.u32 %v4808, 7
        %v4810 = vsub.s32 %v4807, %v4809
        %v4811 = vrot.slane %v4803, %v4810
        %4812 = vset.pattern.permute.xlu0 7
        %4813 = vperm.xlu0 %4812, %v531
        %v4814 = vpop.permute.xlu0 %4813
        %v4817 = vunpack.c.l.s4 839922192
        %v4818 = vunpack.c.0.s8 %v4817
        %v4819 = vlaneseq
        %v4820 = vshrl.u32 %v4819, 7
        %v4821 = vsub.s32 %v4818, %v4820
        %v4822 = vrot.slane %v4814, %v4821
        %4823 = vset.pattern.permute.xlu0 7
        %4824 = vperm.xlu0 %4823, %v532
        %v4825 = vpop.permute.xlu0 %4824
        %v4828 = vunpack.c.l.s4 839922192
        %v4829 = vunpack.c.0.s8 %v4828
        %v4830 = vlaneseq
        %v4831 = vshrl.u32 %v4830, 7
        %v4832 = vsub.s32 %v4829, %v4831
        %v4833 = vrot.slane %v4825, %v4832
        %4834 = vset.pattern.permute.xlu0 7
        %4835 = vperm.xlu0 %4834, %v533
        %v4836 = vpop.permute.xlu0 %4835
        %v4839 = vunpack.c.l.s4 839922192
        %v4840 = vunpack.c.0.s8 %v4839
        %v4841 = vlaneseq
        %v4842 = vshrl.u32 %v4841, 7
        %v4843 = vsub.s32 %v4840, %v4842
        %v4844 = vrot.slane %v4836, %v4843
        %4845 = vset.pattern.permute.xlu0 7
        %4846 = vperm.xlu0 %4845, %v534
        %v4847 = vpop.permute.xlu0 %4846
        %v4850 = vunpack.c.l.s4 839922192
        %v4851 = vunpack.c.0.s8 %v4850
        %v4852 = vlaneseq
        %v4853 = vshrl.u32 %v4852, 7
        %v4854 = vsub.s32 %v4851, %v4853
        %v4855 = vrot.slane %v4847, %v4854
        %4856 = vset.pattern.permute.xlu0 7
        %4857 = vperm.xlu0 %4856, %v535
        %v4858 = vpop.permute.xlu0 %4857
        %v4861 = vunpack.c.l.s4 839922192
        %v4862 = vunpack.c.0.s8 %v4861
        %v4863 = vlaneseq
        %v4864 = vshrl.u32 %v4863, 7
        %v4865 = vsub.s32 %v4862, %v4864
        %v4866 = vrot.slane %v4858, %v4865
        %4867 = vset.pattern.permute.xlu0 7
        %4868 = vperm.xlu0 %4867, %v536
        %v4869 = vpop.permute.xlu0 %4868
        %v4872 = vunpack.c.l.s4 839922192
        %v4873 = vunpack.c.0.s8 %v4872
        %v4874 = vlaneseq
        %v4875 = vshrl.u32 %v4874, 7
        %v4876 = vsub.s32 %v4873, %v4875
        %v4877 = vrot.slane %v4869, %v4876
        %4878 = vset.pattern.permute.xlu0 7
        %4879 = vperm.xlu0 %4878, %v537
        %v4880 = vpop.permute.xlu0 %4879
        %v4883 = vunpack.c.l.s4 839922192
        %v4884 = vunpack.c.0.s8 %v4883
        %v4885 = vlaneseq
        %v4886 = vshrl.u32 %v4885, 7
        %v4887 = vsub.s32 %v4884, %v4886
        %v4888 = vrot.slane %v4880, %v4887
        %4889 = vset.pattern.permute.xlu0 7
        %4890 = vperm.xlu0 %4889, %v538
        %v4891 = vpop.permute.xlu0 %4890
        %v4894 = vunpack.c.l.s4 839922192
        %v4895 = vunpack.c.0.s8 %v4894
        %v4896 = vlaneseq
        %v4897 = vshrl.u32 %v4896, 7
        %v4898 = vsub.s32 %v4895, %v4897
        %v4899 = vrot.slane %v4891, %v4898
        %4900 = vset.pattern.permute.xlu0 7
        %4901 = vperm.xlu0 %4900, %v539
        %v4902 = vpop.permute.xlu0 %4901
        %v4905 = vunpack.c.l.s4 839922192
        %v4906 = vunpack.c.0.s8 %v4905
        %v4907 = vlaneseq
        %v4908 = vshrl.u32 %v4907, 7
        %v4909 = vsub.s32 %v4906, %v4908
        %v4910 = vrot.slane %v4902, %v4909
        %4911 = vset.pattern.permute.xlu0 7
        %4912 = vperm.xlu0 %4911, %v540
        %v4913 = vpop.permute.xlu0 %4912
        %v4916 = vunpack.c.l.s4 839922192
        %v4917 = vunpack.c.0.s8 %v4916
        %v4918 = vlaneseq
        %v4919 = vshrl.u32 %v4918, 7
        %v4920 = vsub.s32 %v4917, %v4919
        %v4921 = vrot.slane %v4913, %v4920
        %4922 = vset.pattern.permute.xlu0 7
        %4923 = vperm.xlu0 %4922, %v541
        %v4924 = vpop.permute.xlu0 %4923
        %v4927 = vunpack.c.l.s4 839922192
        %v4928 = vunpack.c.0.s8 %v4927
        %v4929 = vlaneseq
        %v4930 = vshrl.u32 %v4929, 7
        %v4931 = vsub.s32 %v4928, %v4930
        %v4932 = vrot.slane %v4924, %v4931
        %4933 = vset.pattern.permute.xlu0 7
        %4934 = vperm.xlu0 %4933, %v542
        %v4935 = vpop.permute.xlu0 %4934
        %v4938 = vunpack.c.l.s4 839922192
        %v4939 = vunpack.c.0.s8 %v4938
        %v4940 = vlaneseq
        %v4941 = vshrl.u32 %v4940, 7
        %v4942 = vsub.s32 %v4939, %v4941
        %v4943 = vrot.slane %v4935, %v4942
        %v4960 = vunpack.c.l.b16 %v4778
        %v4961 = vunpack.c.l.b16 %v4789
        %v4962 = vunpack.c.l.b16 %v4800
        %v4963 = vunpack.c.l.b16 %v4811
        %v4964 = vunpack.c.l.b16 %v4822
        %v4965 = vunpack.c.l.b16 %v4833
        %v4966 = vunpack.c.l.b16 %v4844
        %v4967 = vunpack.c.l.b16 %v4855
        %v4968 = vunpack.c.l.b16 %v4866
        %v4969 = vunpack.c.l.b16 %v4877
        %v4970 = vunpack.c.l.b16 %v4888
        %v4971 = vunpack.c.l.b16 %v4899
        %v4972 = vunpack.c.l.b16 %v4910
        %v4973 = vunpack.c.l.b16 %v4921
        %v4974 = vunpack.c.l.b16 %v4932
        %v4975 = vunpack.c.l.b16 %v4943
        %v4976 = vpack.c.b16 %v4961, %v4960
        %v4977 = vpack.c.b16 %v4963, %v4962
        %v4978 = vpack.c.b16 %v4965, %v4964
        %v4979 = vpack.c.b16 %v4967, %v4966
        %v4980 = vpack.c.b16 %v4969, %v4968
        %v4981 = vpack.c.b16 %v4971, %v4970
        %v4982 = vpack.c.b16 %v4973, %v4972
        %v4983 = vpack.c.b16 %v4975, %v4974
        %v4992 = vmul.bf16 %v916, %v4976
        %v4993 = vmul.bf16 %v917, %v4976
        %v4994 = vmul.bf16 %v918, %v4977
        %v4995 = vmul.bf16 %v919, %v4977
        %v4996 = vmul.bf16 %v920, %v4978
        %v4997 = vmul.bf16 %v921, %v4978
        %v4998 = vmul.bf16 %v922, %v4979
        %v4999 = vmul.bf16 %v923, %v4979
        %v5000 = vmul.bf16 %v924, %v4980
        %v5001 = vmul.bf16 %v925, %v4980
        %v5002 = vmul.bf16 %v926, %v4981
        %v5003 = vmul.bf16 %v927, %v4981
        %v5004 = vmul.bf16 %v928, %v4982
        %v5005 = vmul.bf16 %v929, %v4982
        %v5006 = vmul.bf16 %v914, %v4983
        %v5007 = vmul.bf16 %v915, %v4983
        %s5008 = scalar_lea.vmem %s287, 1792 [#allocation5]
        %v5009 = vld [vmem:[%s5008] sm:$0xff]
        %v5010 = vld [vmem:[%s5008 + $0x8] sm:$0xff]
        %v5011 = vld [vmem:[%s5008 + $0x10] sm:$0xff]
        %v5012 = vld [vmem:[%s5008 + $0x18] sm:$0xff]
        %v5013 = vld [vmem:[%s5008 + $0x20] sm:$0xff]
        %v5014 = vld [vmem:[%s5008 + $0x28] sm:$0xff]
        %v5015 = vld [vmem:[%s5008 + $0x30] sm:$0xff]
        %v5016 = vld [vmem:[%s5008 + $0x38] sm:$0xff]
        %v5017 = vld [vmem:[%s5008 + $0x40] sm:$0xff]
        %v5018 = vld [vmem:[%s5008 + $0x48] sm:$0xff]
        %v5019 = vld [vmem:[%s5008 + $0x50] sm:$0xff]
        %v5020 = vld [vmem:[%s5008 + $0x58] sm:$0xff]
        %v5021 = vld [vmem:[%s5008 + $0x60] sm:$0xff]
        %v5022 = vld [vmem:[%s5008 + $0x68] sm:$0xff]
        %v5023 = vld [vmem:[%s5008 + $0x70] sm:$0xff]
        %v5024 = vld [vmem:[%s5008 + $0x78] sm:$0xff]
        %v5025 = vld [vmem:[%s5008 + $0x80] sm:$0xff]
        %v5026 = vld [vmem:[%s5008 + $0x88] sm:$0xff]
        %v5027 = vld [vmem:[%s5008 + $0x90] sm:$0xff]
        %v5028 = vld [vmem:[%s5008 + $0x98] sm:$0xff]
        %v5029 = vld [vmem:[%s5008 + $0xa0] sm:$0xff]
        %v5030 = vld [vmem:[%s5008 + $0xa8] sm:$0xff]
        %v5031 = vld [vmem:[%s5008 + $0xb0] sm:$0xff]
        %v5032 = vld [vmem:[%s5008 + $0xb8] sm:$0xff]
        %v5033 = vld [vmem:[%s5008 + $0xc0] sm:$0xff]
        %v5034 = vld [vmem:[%s5008 + $0xc8] sm:$0xff]
        %v5035 = vld [vmem:[%s5008 + $0xd0] sm:$0xff]
        %v5036 = vld [vmem:[%s5008 + $0xd8] sm:$0xff]
        %v5037 = vld [vmem:[%s5008 + $0xe0] sm:$0xff]
        %v5038 = vld [vmem:[%s5008 + $0xe8] sm:$0xff]
        %v5039 = vld [vmem:[%s5008 + $0xf0] sm:$0xff]
        %v5040 = vld [vmem:[%s5008 + $0xf8] sm:$0xff]
        %v5073 = vunpack.c.l.b16 %v5009
        %v5074 = vunpack.c.h.b16 %v5009
        %v5075 = vunpack.c.l.b16 %v5010
        %v5076 = vunpack.c.h.b16 %v5010
        %v5077 = vunpack.c.l.b16 %v5011
        %v5078 = vunpack.c.h.b16 %v5011
        %v5079 = vunpack.c.l.b16 %v5012
        %v5080 = vunpack.c.h.b16 %v5012
        %v5081 = vunpack.c.l.b16 %v5013
        %v5082 = vunpack.c.h.b16 %v5013
        %v5083 = vunpack.c.l.b16 %v5014
        %v5084 = vunpack.c.h.b16 %v5014
        %v5085 = vunpack.c.l.b16 %v5015
        %v5086 = vunpack.c.h.b16 %v5015
        %v5087 = vunpack.c.l.b16 %v5016
        %v5088 = vunpack.c.h.b16 %v5016
        %v5089 = vunpack.c.l.b16 %v5017
        %v5090 = vunpack.c.h.b16 %v5017
        %v5091 = vunpack.c.l.b16 %v5018
        %v5092 = vunpack.c.h.b16 %v5018
        %v5093 = vunpack.c.l.b16 %v5019
        %v5094 = vunpack.c.h.b16 %v5019
        %v5095 = vunpack.c.l.b16 %v5020
        %v5096 = vunpack.c.h.b16 %v5020
        %v5097 = vunpack.c.l.b16 %v5021
        %v5098 = vunpack.c.h.b16 %v5021
        %v5099 = vunpack.c.l.b16 %v5022
        %v5100 = vunpack.c.h.b16 %v5022
        %v5101 = vunpack.c.l.b16 %v5023
        %v5102 = vunpack.c.h.b16 %v5023
        %v5103 = vunpack.c.l.b16 %v5024
        %v5104 = vunpack.c.h.b16 %v5024
        %v5105 = vunpack.c.l.b16 %v5025
        %v5106 = vunpack.c.h.b16 %v5025
        %v5107 = vunpack.c.l.b16 %v5026
        %v5108 = vunpack.c.h.b16 %v5026
        %v5109 = vunpack.c.l.b16 %v5027
        %v5110 = vunpack.c.h.b16 %v5027
        %v5111 = vunpack.c.l.b16 %v5028
        %v5112 = vunpack.c.h.b16 %v5028
        %v5113 = vunpack.c.l.b16 %v5029
        %v5114 = vunpack.c.h.b16 %v5029
        %v5115 = vunpack.c.l.b16 %v5030
        %v5116 = vunpack.c.h.b16 %v5030
        %v5117 = vunpack.c.l.b16 %v5031
        %v5118 = vunpack.c.h.b16 %v5031
        %v5119 = vunpack.c.l.b16 %v5032
        %v5120 = vunpack.c.h.b16 %v5032
        %v5121 = vunpack.c.l.b16 %v5033
        %v5122 = vunpack.c.h.b16 %v5033
        %v5123 = vunpack.c.l.b16 %v5034
        %v5124 = vunpack.c.h.b16 %v5034
        %v5125 = vunpack.c.l.b16 %v5035
        %v5126 = vunpack.c.h.b16 %v5035
        %v5127 = vunpack.c.l.b16 %v5036
        %v5128 = vunpack.c.h.b16 %v5036
        %v5129 = vunpack.c.l.b16 %v5037
        %v5130 = vunpack.c.h.b16 %v5037
        %v5131 = vunpack.c.l.b16 %v5038
        %v5132 = vunpack.c.h.b16 %v5038
        %v5133 = vunpack.c.l.b16 %v5039
        %v5134 = vunpack.c.h.b16 %v5039
        %v5135 = vunpack.c.l.b16 %v5040
        %v5136 = vunpack.c.h.b16 %v5040
        %v5137 = vpack.c.b16 %v5075, %v5073
        %v5138 = vpack.c.b16 %v5076, %v5074
        %v5139 = vpack.c.b16 %v5079, %v5077
        %v5140 = vpack.c.b16 %v5080, %v5078
        %v5141 = vpack.c.b16 %v5083, %v5081
        %v5142 = vpack.c.b16 %v5084, %v5082
        %v5143 = vpack.c.b16 %v5087, %v5085
        %v5144 = vpack.c.b16 %v5088, %v5086
        %v5145 = vpack.c.b16 %v5091, %v5089
        %v5146 = vpack.c.b16 %v5092, %v5090
        %v5147 = vpack.c.b16 %v5095, %v5093
        %v5148 = vpack.c.b16 %v5096, %v5094
        %v5149 = vpack.c.b16 %v5099, %v5097
        %v5150 = vpack.c.b16 %v5100, %v5098
        %v5151 = vpack.c.b16 %v5103, %v5101
        %v5152 = vpack.c.b16 %v5104, %v5102
        %v5153 = vpack.c.b16 %v5107, %v5105
        %v5154 = vpack.c.b16 %v5108, %v5106
        %v5155 = vpack.c.b16 %v5111, %v5109
        %v5156 = vpack.c.b16 %v5112, %v5110
        %v5157 = vpack.c.b16 %v5115, %v5113
        %v5158 = vpack.c.b16 %v5116, %v5114
        %v5159 = vpack.c.b16 %v5119, %v5117
        %v5160 = vpack.c.b16 %v5120, %v5118
        %v5161 = vpack.c.b16 %v5123, %v5121
        %v5162 = vpack.c.b16 %v5124, %v5122
        %v5163 = vpack.c.b16 %v5127, %v5125
        %v5164 = vpack.c.b16 %v5128, %v5126
        %v5165 = vpack.c.b16 %v5131, %v5129
        %v5166 = vpack.c.b16 %v5132, %v5130
        %v5167 = vpack.c.b16 %v5135, %v5133
        %v5168 = vpack.c.b16 %v5136, %v5134
        %5201 = vmatprep.subr.bf16.mxu0 %v5138
        %5202 = vmatpush1.bf16.msra.mxu0 %v5137
        %5203 = vmatprep.subr.bf16.mxu0 %v5140
        %5204 = vmatpush1.bf16.msra.mxu0 %v5139
        %5205 = vmatprep.subr.bf16.mxu0 %v5142
        %5206 = vmatpush1.bf16.msra.mxu0 %v5141
        %5207 = vmatprep.subr.bf16.mxu0 %v5144
        %5208 = vmatpush1.bf16.msra.mxu0 %v5143
        %5209 = vmatprep.subr.bf16.mxu0 %v5146
        %5210 = vmatpush1.bf16.msra.mxu0 %v5145
        %5211 = vmatprep.subr.bf16.mxu0 %v5148
        %5212 = vmatpush1.bf16.msra.mxu0 %v5147
        %5213 = vmatprep.subr.bf16.mxu0 %v5150
        %5214 = vmatpush1.bf16.msra.mxu0 %v5149
        %5215 = vmatprep.subr.bf16.mxu0 %v5152
        %5216 = vmatpush1.bf16.msra.mxu0 %v5151
        %5217 = vmatprep.subr.bf16.mxu0 %v5154
        %5218 = vmatpush1.bf16.msra.mxu0 %v5153
        %5219 = vmatprep.subr.bf16.mxu0 %v5156
        %5220 = vmatpush1.bf16.msra.mxu0 %v5155
        %5221 = vmatprep.subr.bf16.mxu0 %v5158
        %5222 = vmatpush1.bf16.msra.mxu0 %v5157
        %5223 = vmatprep.subr.bf16.mxu0 %v5160
        %5224 = vmatpush1.bf16.msra.mxu0 %v5159
        %5225 = vmatprep.subr.bf16.mxu0 %v5162
        %5226 = vmatpush1.bf16.msra.mxu0 %v5161
        %5227 = vmatprep.subr.bf16.mxu0 %v5164
        %5228 = vmatpush1.bf16.msra.mxu0 %v5163
        %5229 = vmatprep.subr.bf16.mxu0 %v5166
        %5230 = vmatpush1.bf16.msra.mxu0 %v5165
        %5231 = vmatprep.subr.bf16.mxu0 %v5168
        %5232 = vmatpush1.bf16.msra.mxu0 %v5167
        %5233 = vmatprep.mubr.bf16.mxu0 %v4993
        %5234 = vmatmul.mubr.bf16.gmra.mrb[0].mxu0 %v4992
        %v5235 = vpop.f32.mrb[0].mxu0
        %v5236 = vadd.f32 0.0, %v5235
        %v5237 = vpop.f32.mrb[0].mxu0
        %v5238 = vadd.f32 0.0, %v5237
        %v5239 = vpop.f32.mrb[0].mxu0
        %v5240 = vadd.f32 0.0, %v5239
        %v5241 = vpop.f32.mrb[0].mxu0
        %v5242 = vadd.f32 0.0, %v5241
        %5243 = vmatprep.mubr.bf16.mxu0 %v4995
        %5244 = vmatmul.mubr.bf16.gmra.mrb[0].mxu0 %v4994
        %v5245 = vpop.f32.mrb[0].mxu0
        %v5246 = vadd.f32 0.0, %v5245
        %v5247 = vpop.f32.mrb[0].mxu0
        %v5248 = vadd.f32 0.0, %v5247
        %v5249 = vpop.f32.mrb[0].mxu0
        %v5250 = vadd.f32 0.0, %v5249
        %v5251 = vpop.f32.mrb[0].mxu0
        %v5252 = vadd.f32 0.0, %v5251
        %5253 = vmatprep.mubr.bf16.mxu0 %v4997
        %5254 = vmatmul.mubr.bf16.gmra.mrb[0].mxu0 %v4996
        %v5255 = vpop.f32.mrb[0].mxu0
        %v5256 = vadd.f32 0.0, %v5255
        %v5257 = vpop.f32.mrb[0].mxu0
        %v5258 = vadd.f32 0.0, %v5257
        %v5259 = vpop.f32.mrb[0].mxu0
        %v5260 = vadd.f32 0.0, %v5259
        %v5261 = vpop.f32.mrb[0].mxu0
        %v5262 = vadd.f32 0.0, %v5261
        %5263 = vmatprep.mubr.bf16.mxu0 %v4999
        %5264 = vmatmul.mubr.bf16.gmra.mrb[0].mxu0 %v4998
        %v5265 = vpop.f32.mrb[0].mxu0
        %v5266 = vadd.f32 0.0, %v5265
        %v5267 = vpop.f32.mrb[0].mxu0
        %v5268 = vadd.f32 0.0, %v5267
        %v5269 = vpop.f32.mrb[0].mxu0
        %v5270 = vadd.f32 0.0, %v5269
        %v5271 = vpop.f32.mrb[0].mxu0
        %v5272 = vadd.f32 0.0, %v5271
        %5273 = vmatprep.mubr.bf16.mxu0 %v5001
        %5274 = vmatmul.mubr.bf16.gmra.mrb[0].mxu0 %v5000
        %v5275 = vpop.f32.mrb[0].mxu0
        %v5276 = vadd.f32 0.0, %v5275
        %v5277 = vpop.f32.mrb[0].mxu0
        %v5278 = vadd.f32 0.0, %v5277
        %v5279 = vpop.f32.mrb[0].mxu0
        %v5280 = vadd.f32 0.0, %v5279
        %v5281 = vpop.f32.mrb[0].mxu0
        %v5282 = vadd.f32 0.0, %v5281
        %5283 = vmatprep.mubr.bf16.mxu0 %v5003
        %5284 = vmatmul.mubr.bf16.gmra.mrb[0].mxu0 %v5002
        %v5285 = vpop.f32.mrb[0].mxu0
        %v5286 = vadd.f32 0.0, %v5285
        %v5287 = vpop.f32.mrb[0].mxu0
        %v5288 = vadd.f32 0.0, %v5287
        %v5289 = vpop.f32.mrb[0].mxu0
        %v5290 = vadd.f32 0.0, %v5289
        %v5291 = vpop.f32.mrb[0].mxu0
        %v5292 = vadd.f32 0.0, %v5291
        %5293 = vmatprep.mubr.bf16.mxu0 %v5005
        %5294 = vmatmul.mubr.bf16.gmra.mrb[0].mxu0 %v5004
        %v5295 = vpop.f32.mrb[0].mxu0
        %v5296 = vadd.f32 0.0, %v5295
        %v5297 = vpop.f32.mrb[0].mxu0
        %v5298 = vadd.f32 0.0, %v5297
        %v5299 = vpop.f32.mrb[0].mxu0
        %v5300 = vadd.f32 0.0, %v5299
        %v5301 = vpop.f32.mrb[0].mxu0
        %v5302 = vadd.f32 0.0, %v5301
        %5303 = vmatprep.mubr.bf16.mxu0 %v5007
        %5304 = vmatmul.mubr.bf16.gmra.mrb[0].mxu0 %v5006
        %v5305 = vpop.f32.mrb[0].mxu0
        %v5306 = vadd.f32 0.0, %v5305
        %v5307 = vpop.f32.mrb[0].mxu0
        %v5308 = vadd.f32 0.0, %v5307
        %v5309 = vpop.f32.mrb[0].mxu0
        %v5310 = vadd.f32 0.0, %v5309
        %v5311 = vpop.f32.mrb[0].mxu0
        %v5312 = vadd.f32 0.0, %v5311
        %5313 = vdwg.mxu0
        %v5314 = vadd.f32 %v4736, %v5236
        %v5315 = vadd.f32 %v4737, %v5238
        %v5316 = vadd.f32 %v4738, %v5240
        %v5317 = vadd.f32 %v4739, %v5242
        %v5318 = vadd.f32 %v4740, %v5246
        %v5319 = vadd.f32 %v4741, %v5248
        %v5320 = vadd.f32 %v4742, %v5250
        %v5321 = vadd.f32 %v4743, %v5252
        %v5322 = vadd.f32 %v4744, %v5256
        %v5323 = vadd.f32 %v4745, %v5258
        %v5324 = vadd.f32 %v4746, %v5260
        %v5325 = vadd.f32 %v4747, %v5262
        %v5326 = vadd.f32 %v4748, %v5266
        %v5327 = vadd.f32 %v4749, %v5268
        %v5328 = vadd.f32 %v4750, %v5270
        %v5329 = vadd.f32 %v4751, %v5272
        %v5330 = vadd.f32 %v4752, %v5276
        %v5331 = vadd.f32 %v4753, %v5278
        %v5332 = vadd.f32 %v4754, %v5280
        %v5333 = vadd.f32 %v4755, %v5282
        %v5334 = vadd.f32 %v4756, %v5286
        %v5335 = vadd.f32 %v4757, %v5288
        %v5336 = vadd.f32 %v4758, %v5290
        %v5337 = vadd.f32 %v4759, %v5292
        %v5338 = vadd.f32 %v4760, %v5296
        %v5339 = vadd.f32 %v4761, %v5298
        %v5340 = vadd.f32 %v4762, %v5300
        %v5341 = vadd.f32 %v4763, %v5302
        %v5342 = vadd.f32 %v4764, %v5306
        %v5343 = vadd.f32 %v4765, %v5308
        %v5344 = vadd.f32 %v4766, %v5310
        %v5345 = vadd.f32 %v4767, %v5312
        %5346 = vset.pattern.permute.xlu0 8
        %5347 = vperm.xlu0 %5346, %v527
        %v5348 = vpop.permute.xlu0 %5347
        %v5351 = vunpack.c.l.s4 839922192
        %v5352 = vunpack.c.0.s8 %v5351
        %v5353 = vlaneseq
        %v5354 = vshrl.u32 %v5353, 7
        %v5355 = vsub.s32 %v5352, %v5354
        %v5356 = vrot.slane %v5348, %v5355
        %5357 = vset.pattern.permute.xlu0 8
        %5358 = vperm.xlu0 %5357, %v528
        %v5359 = vpop.permute.xlu0 %5358
        %v5362 = vunpack.c.l.s4 839922192
        %v5363 = vunpack.c.0.s8 %v5362
        %v5364 = vlaneseq
        %v5365 = vshrl.u32 %v5364, 7
        %v5366 = vsub.s32 %v5363, %v5365
        %v5367 = vrot.slane %v5359, %v5366
        %5368 = vset.pattern.permute.xlu0 8
        %5369 = vperm.xlu0 %5368, %v529
        %v5370 = vpop.permute.xlu0 %5369
        %v5373 = vunpack.c.l.s4 839922192
        %v5374 = vunpack.c.0.s8 %v5373
        %v5375 = vlaneseq
        %v5376 = vshrl.u32 %v5375, 7
        %v5377 = vsub.s32 %v5374, %v5376
        %v5378 = vrot.slane %v5370, %v5377
        %5379 = vset.pattern.permute.xlu0 8
        %5380 = vperm.xlu0 %5379, %v530
        %v5381 = vpop.permute.xlu0 %5380
        %v5384 = vunpack.c.l.s4 839922192
        %v5385 = vunpack.c.0.s8 %v5384
        %v5386 = vlaneseq
        %v5387 = vshrl.u32 %v5386, 7
        %v5388 = vsub.s32 %v5385, %v5387
        %v5389 = vrot.slane %v5381, %v5388
        %5390 = vset.pattern.permute.xlu0 8
        %5391 = vperm.xlu0 %5390, %v531
        %v5392 = vpop.permute.xlu0 %5391
        %v5395 = vunpack.c.l.s4 839922192
        %v5396 = vunpack.c.0.s8 %v5395
        %v5397 = vlaneseq
        %v5398 = vshrl.u32 %v5397, 7
        %v5399 = vsub.s32 %v5396, %v5398
        %v5400 = vrot.slane %v5392, %v5399
        %5401 = vset.pattern.permute.xlu0 8
        %5402 = vperm.xlu0 %5401, %v532
        %v5403 = vpop.permute.xlu0 %5402
        %v5406 = vunpack.c.l.s4 839922192
        %v5407 = vunpack.c.0.s8 %v5406
        %v5408 = vlaneseq
        %v5409 = vshrl.u32 %v5408, 7
        %v5410 = vsub.s32 %v5407, %v5409
        %v5411 = vrot.slane %v5403, %v5410
        %5412 = vset.pattern.permute.xlu0 8
        %5413 = vperm.xlu0 %5412, %v533
        %v5414 = vpop.permute.xlu0 %5413
        %v5417 = vunpack.c.l.s4 839922192
        %v5418 = vunpack.c.0.s8 %v5417
        %v5419 = vlaneseq
        %v5420 = vshrl.u32 %v5419, 7
        %v5421 = vsub.s32 %v5418, %v5420
        %v5422 = vrot.slane %v5414, %v5421
        %5423 = vset.pattern.permute.xlu0 8
        %5424 = vperm.xlu0 %5423, %v534
        %v5425 = vpop.permute.xlu0 %5424
        %v5428 = vunpack.c.l.s4 839922192
        %v5429 = vunpack.c.0.s8 %v5428
        %v5430 = vlaneseq
        %v5431 = vshrl.u32 %v5430, 7
        %v5432 = vsub.s32 %v5429, %v5431
        %v5433 = vrot.slane %v5425, %v5432
        %5434 = vset.pattern.permute.xlu0 8
        %5435 = vperm.xlu0 %5434, %v535
        %v5436 = vpop.permute.xlu0 %5435
        %v5439 = vunpack.c.l.s4 839922192
        %v5440 = vunpack.c.0.s8 %v5439
        %v5441 = vlaneseq
        %v5442 = vshrl.u32 %v5441, 7
        %v5443 = vsub.s32 %v5440, %v5442
        %v5444 = vrot.slane %v5436, %v5443
        %5445 = vset.pattern.permute.xlu0 8
        %5446 = vperm.xlu0 %5445, %v536
        %v5447 = vpop.permute.xlu0 %5446
        %v5450 = vunpack.c.l.s4 839922192
        %v5451 = vunpack.c.0.s8 %v5450
        %v5452 = vlaneseq
        %v5453 = vshrl.u32 %v5452, 7
        %v5454 = vsub.s32 %v5451, %v5453
        %v5455 = vrot.slane %v5447, %v5454
        %5456 = vset.pattern.permute.xlu0 8
        %5457 = vperm.xlu0 %5456, %v537
        %v5458 = vpop.permute.xlu0 %5457
        %v5461 = vunpack.c.l.s4 839922192
        %v5462 = vunpack.c.0.s8 %v5461
        %v5463 = vlaneseq
        %v5464 = vshrl.u32 %v5463, 7
        %v5465 = vsub.s32 %v5462, %v5464
        %v5466 = vrot.slane %v5458, %v5465
        %5467 = vset.pattern.permute.xlu0 8
        %5468 = vperm.xlu0 %5467, %v538
        %v5469 = vpop.permute.xlu0 %5468
        %v5472 = vunpack.c.l.s4 839922192
        %v5473 = vunpack.c.0.s8 %v5472
        %v5474 = vlaneseq
        %v5475 = vshrl.u32 %v5474, 7
        %v5476 = vsub.s32 %v5473, %v5475
        %v5477 = vrot.slane %v5469, %v5476
        %5478 = vset.pattern.permute.xlu0 8
        %5479 = vperm.xlu0 %5478, %v539
        %v5480 = vpop.permute.xlu0 %5479
        %v5483 = vunpack.c.l.s4 839922192
        %v5484 = vunpack.c.0.s8 %v5483
        %v5485 = vlaneseq
        %v5486 = vshrl.u32 %v5485, 7
        %v5487 = vsub.s32 %v5484, %v5486
        %v5488 = vrot.slane %v5480, %v5487
        %5489 = vset.pattern.permute.xlu0 8
        %5490 = vperm.xlu0 %5489, %v540
        %v5491 = vpop.permute.xlu0 %5490
        %v5494 = vunpack.c.l.s4 839922192
        %v5495 = vunpack.c.0.s8 %v5494
        %v5496 = vlaneseq
        %v5497 = vshrl.u32 %v5496, 7
        %v5498 = vsub.s32 %v5495, %v5497
        %v5499 = vrot.slane %v5491, %v5498
        %5500 = vset.pattern.permute.xlu0 8
        %5501 = vperm.xlu0 %5500, %v541
        %v5502 = vpop.permute.xlu0 %5501
        %v5505 = vunpack.c.l.s4 839922192
        %v5506 = vunpack.c.0.s8 %v5505
        %v5507 = vlaneseq
        %v5508 = vshrl.u32 %v5507, 7
        %v5509 = vsub.s32 %v5506, %v5508
        %v5510 = vrot.slane %v5502, %v5509
        %5511 = vset.pattern.permute.xlu0 8
        %5512 = vperm.xlu0 %5511, %v542
        %v5513 = vpop.permute.xlu0 %5512
        %v5516 = vunpack.c.l.s4 839922192
        %v5517 = vunpack.c.0.s8 %v5516
        %v5518 = vlaneseq
        %v5519 = vshrl.u32 %v5518, 7
        %v5520 = vsub.s32 %v5517, %v5519
        %v5521 = vrot.slane %v5513, %v5520
        %v5538 = vunpack.c.l.b16 %v5356
        %v5539 = vunpack.c.l.b16 %v5367
        %v5540 = vunpack.c.l.b16 %v5378
        %v5541 = vunpack.c.l.b16 %v5389
        %v5542 = vunpack.c.l.b16 %v5400
        %v5543 = vunpack.c.l.b16 %v5411
        %v5544 = vunpack.c.l.b16 %v5422
        %v5545 = vunpack.c.l.b16 %v5433
        %v5546 = vunpack.c.l.b16 %v5444
        %v5547 = vunpack.c.l.b16 %v5455
        %v5548 = vunpack.c.l.b16 %v5466
        %v5549 = vunpack.c.l.b16 %v5477
        %v5550 = vunpack.c.l.b16 %v5488
        %v5551 = vunpack.c.l.b16 %v5499
        %v5552 = vunpack.c.l.b16 %v5510
        %v5553 = vunpack.c.l.b16 %v5521
        %v5554 = vpack.c.b16 %v5539, %v5538
        %v5555 = vpack.c.b16 %v5541, %v5540
        %v5556 = vpack.c.b16 %v5543, %v5542
        %v5557 = vpack.c.b16 %v5545, %v5544
        %v5558 = vpack.c.b16 %v5547, %v5546
        %v5559 = vpack.c.b16 %v5549, %v5548
        %v5560 = vpack.c.b16 %v5551, %v5550
        %v5561 = vpack.c.b16 %v5553, %v5552
        %v5570 = vmul.bf16 %v1816, %v5554
        %v5571 = vmul.bf16 %v1817, %v5554
        %v5572 = vmul.bf16 %v1818, %v5555
        %v5573 = vmul.bf16 %v1819, %v5555
        %v5574 = vmul.bf16 %v1820, %v5556
        %v5575 = vmul.bf16 %v1821, %v5556
        %v5576 = vmul.bf16 %v1822, %v5557
        %v5577 = vmul.bf16 %v1823, %v5557
        %v5578 = vmul.bf16 %v1824, %v5558
        %v5579 = vmul.bf16 %v1825, %v5558
        %v5580 = vmul.bf16 %v1826, %v5559
        %v5581 = vmul.bf16 %v1827, %v5559
        %v5582 = vmul.bf16 %v1828, %v5560
        %v5583 = vmul.bf16 %v1829, %v5560
        %v5584 = vmul.bf16 %v1814, %v5561
        %v5585 = vmul.bf16 %v1815, %v5561
        %s5586 = scalar_lea.vmem %s287, 2048 [#allocation5]
        %v5587 = vld [vmem:[%s5586] sm:$0xff]
        %v5588 = vld [vmem:[%s5586 + $0x8] sm:$0xff]
        %v5589 = vld [vmem:[%s5586 + $0x10] sm:$0xff]
        %v5590 = vld [vmem:[%s5586 + $0x18] sm:$0xff]
        %v5591 = vld [vmem:[%s5586 + $0x20] sm:$0xff]
        %v5592 = vld [vmem:[%s5586 + $0x28] sm:$0xff]
        %v5593 = vld [vmem:[%s5586 + $0x30] sm:$0xff]
        %v5594 = vld [vmem:[%s5586 + $0x38] sm:$0xff]
        %v5595 = vld [vmem:[%s5586 + $0x40] sm:$0xff]
        %v5596 = vld [vmem:[%s5586 + $0x48] sm:$0xff]
        %v5597 = vld [vmem:[%s5586 + $0x50] sm:$0xff]
        %v5598 = vld [vmem:[%s5586 + $0x58] sm:$0xff]
        %v5599 = vld [vmem:[%s5586 + $0x60] sm:$0xff]
        %v5600 = vld [vmem:[%s5586 + $0x68] sm:$0xff]
        %v5601 = vld [vmem:[%s5586 + $0x70] sm:$0xff]
        %v5602 = vld [vmem:[%s5586 + $0x78] sm:$0xff]
        %v5603 = vld [vmem:[%s5586 + $0x80] sm:$0xff]
        %v5604 = vld [vmem:[%s5586 + $0x88] sm:$0xff]
        %v5605 = vld [vmem:[%s5586 + $0x90] sm:$0xff]
        %v5606 = vld [vmem:[%s5586 + $0x98] sm:$0xff]
        %v5607 = vld [vmem:[%s5586 + $0xa0] sm:$0xff]
        %v5608 = vld [vmem:[%s5586 + $0xa8] sm:$0xff]
        %v5609 = vld [vmem:[%s5586 + $0xb0] sm:$0xff]
        %v5610 = vld [vmem:[%s5586 + $0xb8] sm:$0xff]
        %v5611 = vld [vmem:[%s5586 + $0xc0] sm:$0xff]
        %v5612 = vld [vmem:[%s5586 + $0xc8] sm:$0xff]
        %v5613 = vld [vmem:[%s5586 + $0xd0] sm:$0xff]
        %v5614 = vld [vmem:[%s5586 + $0xd8] sm:$0xff]
        %v5615 = vld [vmem:[%s5586 + $0xe0] sm:$0xff]
        %v5616 = vld [vmem:[%s5586 + $0xe8] sm:$0xff]
        %v5617 = vld [vmem:[%s5586 + $0xf0] sm:$0xff]
        %v5618 = vld [vmem:[%s5586 + $0xf8] sm:$0xff]
        %v5651 = vunpack.c.l.b16 %v5587
        %v5652 = vunpack.c.h.b16 %v5587
        %v5653 = vunpack.c.l.b16 %v5588
        %v5654 = vunpack.c.h.b16 %v5588
        %v5655 = vunpack.c.l.b16 %v5589
        %v5656 = vunpack.c.h.b16 %v5589
        %v5657 = vunpack.c.l.b16 %v5590
        %v5658 = vunpack.c.h.b16 %v5590
        %v5659 = vunpack.c.l.b16 %v5591
        %v5660 = vunpack.c.h.b16 %v5591
        %v5661 = vunpack.c.l.b16 %v5592
        %v5662 = vunpack.c.h.b16 %v5592
        %v5663 = vunpack.c.l.b16 %v5593
        %v5664 = vunpack.c.h.b16 %v5593
        %v5665 = vunpack.c.l.b16 %v5594
        %v5666 = vunpack.c.h.b16 %v5594
        %v5667 = vunpack.c.l.b16 %v5595
        %v5668 = vunpack.c.h.b16 %v5595
        %v5669 = vunpack.c.l.b16 %v5596
        %v5670 = vunpack.c.h.b16 %v5596
        %v5671 = vunpack.c.l.b16 %v5597
        %v5672 = vunpack.c.h.b16 %v5597
        %v5673 = vunpack.c.l.b16 %v5598
        %v5674 = vunpack.c.h.b16 %v5598
        %v5675 = vunpack.c.l.b16 %v5599
        %v5676 = vunpack.c.h.b16 %v5599
        %v5677 = vunpack.c.l.b16 %v5600
        %v5678 = vunpack.c.h.b16 %v5600
        %v5679 = vunpack.c.l.b16 %v5601
        %v5680 = vunpack.c.h.b16 %v5601
        %v5681 = vunpack.c.l.b16 %v5602
        %v5682 = vunpack.c.h.b16 %v5602
        %v5683 = vunpack.c.l.b16 %v5603
        %v5684 = vunpack.c.h.b16 %v5603
        %v5685 = vunpack.c.l.b16 %v5604
        %v5686 = vunpack.c.h.b16 %v5604
        %v5687 = vunpack.c.l.b16 %v5605
        %v5688 = vunpack.c.h.b16 %v5605
        %v5689 = vunpack.c.l.b16 %v5606
        %v5690 = vunpack.c.h.b16 %v5606
        %v5691 = vunpack.c.l.b16 %v5607
        %v5692 = vunpack.c.h.b16 %v5607
        %v5693 = vunpack.c.l.b16 %v5608
        %v5694 = vunpack.c.h.b16 %v5608
        %v5695 = vunpack.c.l.b16 %v5609
        %v5696 = vunpack.c.h.b16 %v5609
        %v5697 = vunpack.c.l.b16 %v5610
        %v5698 = vunpack.c.h.b16 %v5610
        %v5699 = vunpack.c.l.b16 %v5611
        %v5700 = vunpack.c.h.b16 %v5611
        %v5701 = vunpack.c.l.b16 %v5612
        %v5702 = vunpack.c.h.b16 %v5612
        %v5703 = vunpack.c.l.b16 %v5613
        %v5704 = vunpack.c.h.b16 %v5613
        %v5705 = vunpack.c.l.b16 %v5614
        %v5706 = vunpack.c.h.b16 %v5614
        %v5707 = vunpack.c.l.b16 %v5615
        %v5708 = vunpack.c.h.b16 %v5615
        %v5709 = vunpack.c.l.b16 %v5616
        %v5710 = vunpack.c.h.b16 %v5616
        %v5711 = vunpack.c.l.b16 %v5617
        %v5712 = vunpack.c.h.b16 %v5617
        %v5713 = vunpack.c.l.b16 %v5618
        %v5714 = vunpack.c.h.b16 %v5618
        %v5715 = vpack.c.b16 %v5653, %v5651
        %v5716 = vpack.c.b16 %v5654, %v5652
        %v5717 = vpack.c.b16 %v5657, %v5655
        %v5718 = vpack.c.b16 %v5658, %v5656
        %v5719 = vpack.c.b16 %v5661, %v5659
        %v5720 = vpack.c.b16 %v5662, %v5660
        %v5721 = vpack.c.b16 %v5665, %v5663
        %v5722 = vpack.c.b16 %v5666, %v5664
        %v5723 = vpack.c.b16 %v5669, %v5667
        %v5724 = vpack.c.b16 %v5670, %v5668
        %v5725 = vpack.c.b16 %v5673, %v5671
        %v5726 = vpack.c.b16 %v5674, %v5672
        %v5727 = vpack.c.b16 %v5677, %v5675
        %v5728 = vpack.c.b16 %v5678, %v5676
        %v5729 = vpack.c.b16 %v5681, %v5679
        %v5730 = vpack.c.b16 %v5682, %v5680
        %v5731 = vpack.c.b16 %v5685, %v5683
        %v5732 = vpack.c.b16 %v5686, %v5684
        %v5733 = vpack.c.b16 %v5689, %v5687
        %v5734 = vpack.c.b16 %v5690, %v5688
        %v5735 = vpack.c.b16 %v5693, %v5691
        %v5736 = vpack.c.b16 %v5694, %v5692
        %v5737 = vpack.c.b16 %v5697, %v5695
        %v5738 = vpack.c.b16 %v5698, %v5696
        %v5739 = vpack.c.b16 %v5701, %v5699
        %v5740 = vpack.c.b16 %v5702, %v5700
        %v5741 = vpack.c.b16 %v5705, %v5703
        %v5742 = vpack.c.b16 %v5706, %v5704
        %v5743 = vpack.c.b16 %v5709, %v5707
        %v5744 = vpack.c.b16 %v5710, %v5708
        %v5745 = vpack.c.b16 %v5713, %v5711
        %v5746 = vpack.c.b16 %v5714, %v5712
        %5779 = vmatprep.subr.bf16.mxu0 %v5716
        %5780 = vmatpush1.bf16.msra.mxu0 %v5715
        %5781 = vmatprep.subr.bf16.mxu0 %v5718
        %5782 = vmatpush1.bf16.msra.mxu0 %v5717
        %5783 = vmatprep.subr.bf16.mxu0 %v5720
        %5784 = vmatpush1.bf16.msra.mxu0 %v5719
        %5785 = vmatprep.subr.bf16.mxu0 %v5722
        %5786 = vmatpush1.bf16.msra.mxu0 %v5721
        %5787 = vmatprep.subr.bf16.mxu0 %v5724
        %5788 = vmatpush1.bf16.msra.mxu0 %v5723
        %5789 = vmatprep.subr.bf16.mxu0 %v5726
        %5790 = vmatpush1.bf16.msra.mxu0 %v5725
        %5791 = vmatprep.subr.bf16.mxu0 %v5728
        %5792 = vmatpush1.bf16.msra.mxu0 %v5727
        %5793 = vmatprep.subr.bf16.mxu0 %v5730
        %5794 = vmatpush1.bf16.msra.mxu0 %v5729
        %5795 = vmatprep.subr.bf16.mxu0 %v5732
        %5796 = vmatpush1.bf16.msra.mxu0 %v5731
        %5797 = vmatprep.subr.bf16.mxu0 %v5734
        %5798 = vmatpush1.bf16.msra.mxu0 %v5733
        %5799 = vmatprep.subr.bf16.mxu0 %v5736
        %5800 = vmatpush1.bf16.msra.mxu0 %v5735
        %5801 = vmatprep.subr.bf16.mxu0 %v5738
        %5802 = vmatpush1.bf16.msra.mxu0 %v5737
        %5803 = vmatprep.subr.bf16.mxu0 %v5740
        %5804 = vmatpush1.bf16.msra.mxu0 %v5739
        %5805 = vmatprep.subr.bf16.mxu0 %v5742
        %5806 = vmatpush1.bf16.msra.mxu0 %v5741
        %5807 = vmatprep.subr.bf16.mxu0 %v5744
        %5808 = vmatpush1.bf16.msra.mxu0 %v5743
        %5809 = vmatprep.subr.bf16.mxu0 %v5746
        %5810 = vmatpush1.bf16.msra.mxu0 %v5745
        %5811 = vmatprep.mubr.bf16.mxu0 %v5571
        %5812 = vmatmul.mubr.bf16.gmra.mrb[0].mxu0 %v5570
        %v5813 = vpop.f32.mrb[0].mxu0
        %v5814 = vadd.f32 0.0, %v5813
        %v5815 = vpop.f32.mrb[0].mxu0
        %v5816 = vadd.f32 0.0, %v5815
        %v5817 = vpop.f32.mrb[0].mxu0
        %v5818 = vadd.f32 0.0, %v5817
        %v5819 = vpop.f32.mrb[0].mxu0
        %v5820 = vadd.f32 0.0, %v5819
        %5821 = vmatprep.mubr.bf16.mxu0 %v5573
        %5822 = vmatmul.mubr.bf16.gmra.mrb[0].mxu0 %v5572
        %v5823 = vpop.f32.mrb[0].mxu0
        %v5824 = vadd.f32 0.0, %v5823
        %v5825 = vpop.f32.mrb[0].mxu0
        %v5826 = vadd.f32 0.0, %v5825
        %v5827 = vpop.f32.mrb[0].mxu0
        %v5828 = vadd.f32 0.0, %v5827
        %v5829 = vpop.f32.mrb[0].mxu0
        %v5830 = vadd.f32 0.0, %v5829
        %5831 = vmatprep.mubr.bf16.mxu0 %v5575
        %5832 = vmatmul.mubr.bf16.gmra.mrb[0].mxu0 %v5574
        %v5833 = vpop.f32.mrb[0].mxu0
        %v5834 = vadd.f32 0.0, %v5833
        %v5835 = vpop.f32.mrb[0].mxu0
        %v5836 = vadd.f32 0.0, %v5835
        %v5837 = vpop.f32.mrb[0].mxu0
        %v5838 = vadd.f32 0.0, %v5837
        %v5839 = vpop.f32.mrb[0].mxu0
        %v5840 = vadd.f32 0.0, %v5839
        %5841 = vmatprep.mubr.bf16.mxu0 %v5577
        %5842 = vmatmul.mubr.bf16.gmra.mrb[0].mxu0 %v5576
        %v5843 = vpop.f32.mrb[0].mxu0
        %v5844 = vadd.f32 0.0, %v5843
        %v5845 = vpop.f32.mrb[0].mxu0
        %v5846 = vadd.f32 0.0, %v5845
        %v5847 = vpop.f32.mrb[0].mxu0
        %v5848 = vadd.f32 0.0, %v5847
        %v5849 = vpop.f32.mrb[0].mxu0
        %v5850 = vadd.f32 0.0, %v5849
        %5851 = vmatprep.mubr.bf16.mxu0 %v5579
        %5852 = vmatmul.mubr.bf16.gmra.mrb[0].mxu0 %v5578
        %v5853 = vpop.f32.mrb[0].mxu0
        %v5854 = vadd.f32 0.0, %v5853
        %v5855 = vpop.f32.mrb[0].mxu0
        %v5856 = vadd.f32 0.0, %v5855
        %v5857 = vpop.f32.mrb[0].mxu0
        %v5858 = vadd.f32 0.0, %v5857
        %v5859 = vpop.f32.mrb[0].mxu0
        %v5860 = vadd.f32 0.0, %v5859
        %5861 = vmatprep.mubr.bf16.mxu0 %v5581
        %5862 = vmatmul.mubr.bf16.gmra.mrb[0].mxu0 %v5580
        %v5863 = vpop.f32.mrb[0].mxu0
        %v5864 = vadd.f32 0.0, %v5863
        %v5865 = vpop.f32.mrb[0].mxu0
        %v5866 = vadd.f32 0.0, %v5865
        %v5867 = vpop.f32.mrb[0].mxu0
        %v5868 = vadd.f32 0.0, %v5867
        %v5869 = vpop.f32.mrb[0].mxu0
        %v5870 = vadd.f32 0.0, %v5869
        %5871 = vmatprep.mubr.bf16.mxu0 %v5583
        %5872 = vmatmul.mubr.bf16.gmra.mrb[0].mxu0 %v5582
        %v5873 = vpop.f32.mrb[0].mxu0
        %v5874 = vadd.f32 0.0, %v5873
        %v5875 = vpop.f32.mrb[0].mxu0
        %v5876 = vadd.f32 0.0, %v5875
        %v5877 = vpop.f32.mrb[0].mxu0
        %v5878 = vadd.f32 0.0, %v5877
        %v5879 = vpop.f32.mrb[0].mxu0
        %v5880 = vadd.f32 0.0, %v5879
        %5881 = vmatprep.mubr.bf16.mxu0 %v5585
        %5882 = vmatmul.mubr.bf16.gmra.mrb[0].mxu0 %v5584
        %v5883 = vpop.f32.mrb[0].mxu0
        %v5884 = vadd.f32 0.0, %v5883
        %v5885 = vpop.f32.mrb[0].mxu0
        %v5886 = vadd.f32 0.0, %v5885
        %v5887 = vpop.f32.mrb[0].mxu0
        %v5888 = vadd.f32 0.0, %v5887
        %v5889 = vpop.f32.mrb[0].mxu0
        %v5890 = vadd.f32 0.0, %v5889
        %5891 = vdwg.mxu0
        %v5892 = vadd.f32 %v5314, %v5814
        %v5893 = vadd.f32 %v5315, %v5816
        %v5894 = vadd.f32 %v5316, %v5818
        %v5895 = vadd.f32 %v5317, %v5820
        %v5896 = vadd.f32 %v5318, %v5824
        %v5897 = vadd.f32 %v5319, %v5826
        %v5898 = vadd.f32 %v5320, %v5828
        %v5899 = vadd.f32 %v5321, %v5830
        %v5900 = vadd.f32 %v5322, %v5834
        %v5901 = vadd.f32 %v5323, %v5836
        %v5902 = vadd.f32 %v5324, %v5838
        %v5903 = vadd.f32 %v5325, %v5840
        %v5904 = vadd.f32 %v5326, %v5844
        %v5905 = vadd.f32 %v5327, %v5846
        %v5906 = vadd.f32 %v5328, %v5848
        %v5907 = vadd.f32 %v5329, %v5850
        %v5908 = vadd.f32 %v5330, %v5854
        %v5909 = vadd.f32 %v5331, %v5856
        %v5910 = vadd.f32 %v5332, %v5858
        %v5911 = vadd.f32 %v5333, %v5860
        %v5912 = vadd.f32 %v5334, %v5864
        %v5913 = vadd.f32 %v5335, %v5866
        %v5914 = vadd.f32 %v5336, %v5868
        %v5915 = vadd.f32 %v5337, %v5870
        %v5916 = vadd.f32 %v5338, %v5874
        %v5917 = vadd.f32 %v5339, %v5876
        %v5918 = vadd.f32 %v5340, %v5878
        %v5919 = vadd.f32 %v5341, %v5880
        %v5920 = vadd.f32 %v5342, %v5884
        %v5921 = vadd.f32 %v5343, %v5886
        %v5922 = vadd.f32 %v5344, %v5888
        %v5923 = vadd.f32 %v5345, %v5890
        %v5924 = vld [vmem:[%s296] sm:$0x3]
        %v5926 = vlaneseq
        %v5927 = vshrl.u32 %v5926, 7
        %v5928 = vsub.s32 0, %v5927
        %v5929 = vrot.slane %v5924, %v5928
        %v5930 = vlaneseq
        %v5931 = vshrl.u32 %v5930, 7
        %v5932 = vsub.s32 1, %v5931
        %v5933 = vrot.slane %v5924, %v5932
        %v5936 = vadd.f32 %v5892, %v5929
        %v5937 = vadd.f32 %v5893, %v5933
        %v5938 = vadd.f32 %v5894, %v5929
        %v5939 = vadd.f32 %v5895, %v5933
        %v5940 = vadd.f32 %v5896, %v5929
        %v5941 = vadd.f32 %v5897, %v5933
        %v5942 = vadd.f32 %v5898, %v5929
        %v5943 = vadd.f32 %v5899, %v5933
        %v5944 = vadd.f32 %v5900, %v5929
        %v5945 = vadd.f32 %v5901, %v5933
        %v5946 = vadd.f32 %v5902, %v5929
        %v5947 = vadd.f32 %v5903, %v5933
        %v5948 = vadd.f32 %v5904, %v5929
        %v5949 = vadd.f32 %v5905, %v5933
        %v5950 = vadd.f32 %v5906, %v5929
        %v5951 = vadd.f32 %v5907, %v5933
        %v5952 = vadd.f32 %v5908, %v5929
        %v5953 = vadd.f32 %v5909, %v5933
        %v5954 = vadd.f32 %v5910, %v5929
        %v5955 = vadd.f32 %v5911, %v5933
        %v5956 = vadd.f32 %v5912, %v5929
        %v5957 = vadd.f32 %v5913, %v5933
        %v5958 = vadd.f32 %v5914, %v5929
        %v5959 = vadd.f32 %v5915, %v5933
        %v5960 = vadd.f32 %v5916, %v5929
        %v5961 = vadd.f32 %v5917, %v5933
        %v5962 = vadd.f32 %v5918, %v5929
        %v5963 = vadd.f32 %v5919, %v5933
        %v5964 = vadd.f32 %v5920, %v5929
        %v5965 = vadd.f32 %v5921, %v5933
        %v5966 = vadd.f32 %v5922, %v5929
        %v5967 = vadd.f32 %v5923, %v5933
        %p5968 = scmp.ge.s32.totalorder %s30, 2
        %p5969 = scmp.eq.s32.totalorder %s426, 0
        %p5970 = pnand %p5968, %p5969
        %p5971 = pneg %p5970
        // Predicated region
        $region61: #{value_network_forward.2} parent=43 // pred_check
          _
        $region62: #{value_network_forward.2} parent=43 // pred_check_branch
          %5973 = sbr.rel (%p5970) target = $region64
        $region63: #{value_network_forward.2} parent=43 // pred_region
          %v5974 = vld [vmem:[#allocation3] sm:$0xff]
          %v5975 = vld [vmem:[#allocation3 + $0x8] sm:$0xff]
          %v5976 = vld [vmem:[#allocation3 + $0x10] sm:$0xff]
          %v5977 = vld [vmem:[#allocation3 + $0x18] sm:$0xff]
          %v5978 = vld [vmem:[#allocation3 + $0x20] sm:$0xff]
          %v5979 = vld [vmem:[#allocation3 + $0x28] sm:$0xff]
          %v5980 = vld [vmem:[#allocation3 + $0x30] sm:$0xff]
          %v5981 = vld [vmem:[#allocation3 + $0x38] sm:$0xff]
          %v5982 = vld [vmem:[#allocation3 + $0x40] sm:$0xff]
          %v5983 = vld [vmem:[#allocation3 + $0x48] sm:$0xff]
          %v5984 = vld [vmem:[#allocation3 + $0x50] sm:$0xff]
          %v5985 = vld [vmem:[#allocation3 + $0x58] sm:$0xff]
          %v5986 = vld [vmem:[#allocation3 + $0x60] sm:$0xff]
          %v5987 = vld [vmem:[#allocation3 + $0x68] sm:$0xff]
          %v5988 = vld [vmem:[#allocation3 + $0x70] sm:$0xff]
          %v5989 = vld [vmem:[#allocation3 + $0x78] sm:$0xff]
          %v5990 = vld [vmem:[#allocation3 + $0x80] sm:$0xff]
          %v5991 = vld [vmem:[#allocation3 + $0x88] sm:$0xff]
          %v5992 = vld [vmem:[#allocation3 + $0x90] sm:$0xff]
          %v5993 = vld [vmem:[#allocation3 + $0x98] sm:$0xff]
          %v5994 = vld [vmem:[#allocation3 + $0xa0] sm:$0xff]
          %v5995 = vld [vmem:[#allocation3 + $0xa8] sm:$0xff]
          %v5996 = vld [vmem:[#allocation3 + $0xb0] sm:$0xff]
          %v5997 = vld [vmem:[#allocation3 + $0xb8] sm:$0xff]
          %v5998 = vld [vmem:[#allocation3 + $0xc0] sm:$0xff]
          %v5999 = vld [vmem:[#allocation3 + $0xc8] sm:$0xff]
          %v6000 = vld [vmem:[#allocation3 + $0xd0] sm:$0xff]
          %v6001 = vld [vmem:[#allocation3 + $0xd8] sm:$0xff]
          %v6002 = vld [vmem:[#allocation3 + $0xe0] sm:$0xff]
          %v6003 = vld [vmem:[#allocation3 + $0xe8] sm:$0xff]
          %v6004 = vld [vmem:[#allocation3 + $0xf0] sm:$0xff]
          %v6005 = vld [vmem:[#allocation3 + $0xf8] sm:$0xff]
          %v6006 = vadd.f32 %v5936, %v5974
          %v6007 = vadd.f32 %v5937, %v5975
          %v6008 = vadd.f32 %v5938, %v5976
          %v6009 = vadd.f32 %v5939, %v5977
          %v6010 = vadd.f32 %v5940, %v5978
          %v6011 = vadd.f32 %v5941, %v5979
          %v6012 = vadd.f32 %v5942, %v5980
          %v6013 = vadd.f32 %v5943, %v5981
          %v6014 = vadd.f32 %v5944, %v5982
          %v6015 = vadd.f32 %v5945, %v5983
          %v6016 = vadd.f32 %v5946, %v5984
          %v6017 = vadd.f32 %v5947, %v5985
          %v6018 = vadd.f32 %v5948, %v5986
          %v6019 = vadd.f32 %v5949, %v5987
          %v6020 = vadd.f32 %v5950, %v5988
          %v6021 = vadd.f32 %v5951, %v5989
          %v6022 = vadd.f32 %v5952, %v5990
          %v6023 = vadd.f32 %v5953, %v5991
          %v6024 = vadd.f32 %v5954, %v5992
          %v6025 = vadd.f32 %v5955, %v5993
          %v6026 = vadd.f32 %v5956, %v5994
          %v6027 = vadd.f32 %v5957, %v5995
          %v6028 = vadd.f32 %v5958, %v5996
          %v6029 = vadd.f32 %v5959, %v5997
          %v6030 = vadd.f32 %v5960, %v5998
          %v6031 = vadd.f32 %v5961, %v5999
          %v6032 = vadd.f32 %v5962, %v6000
          %v6033 = vadd.f32 %v5963, %v6001
          %v6034 = vadd.f32 %v5964, %v6002
          %v6035 = vadd.f32 %v5965, %v6003
          %v6036 = vadd.f32 %v5966, %v6004
          %v6037 = vadd.f32 %v5967, %v6005
          %v6038 = vmax.f32 %v6006, 0.0
          %v6039 = vmax.f32 %v6007, 0.0
          %v6040 = vmax.f32 %v6008, 0.0
          %v6041 = vmax.f32 %v6009, 0.0
          %v6042 = vmax.f32 %v6010, 0.0
          %v6043 = vmax.f32 %v6011, 0.0
          %v6044 = vmax.f32 %v6012, 0.0
          %v6045 = vmax.f32 %v6013, 0.0
          %v6046 = vmax.f32 %v6014, 0.0
          %v6047 = vmax.f32 %v6015, 0.0
          %v6048 = vmax.f32 %v6016, 0.0
          %v6049 = vmax.f32 %v6017, 0.0
          %v6050 = vmax.f32 %v6018, 0.0
          %v6051 = vmax.f32 %v6019, 0.0
          %v6052 = vmax.f32 %v6020, 0.0
          %v6053 = vmax.f32 %v6021, 0.0
          %v6054 = vmax.f32 %v6022, 0.0
          %v6055 = vmax.f32 %v6023, 0.0
          %v6056 = vmax.f32 %v6024, 0.0
          %v6057 = vmax.f32 %v6025, 0.0
          %v6058 = vmax.f32 %v6026, 0.0
          %v6059 = vmax.f32 %v6027, 0.0
          %v6060 = vmax.f32 %v6028, 0.0
          %v6061 = vmax.f32 %v6029, 0.0
          %v6062 = vmax.f32 %v6030, 0.0
          %v6063 = vmax.f32 %v6031, 0.0
          %v6064 = vmax.f32 %v6032, 0.0
          %v6065 = vmax.f32 %v6033, 0.0
          %v6066 = vmax.f32 %v6034, 0.0
          %v6067 = vmax.f32 %v6035, 0.0
          %v6068 = vmax.f32 %v6036, 0.0
          %v6069 = vmax.f32 %v6037, 0.0
          %6070 = vst [vmem:[#allocation2] sm:$0xff] %v6038
          %6071 = vst [vmem:[#allocation2 + $0x8] sm:$0xff] %v6039
          %6072 = vst [vmem:[#allocation2 + $0x10] sm:$0xff] %v6040
          %6073 = vst [vmem:[#allocation2 + $0x18] sm:$0xff] %v6041
          %6074 = vst [vmem:[#allocation2 + $0x20] sm:$0xff] %v6042
          %6075 = vst [vmem:[#allocation2 + $0x28] sm:$0xff] %v6043
          %6076 = vst [vmem:[#allocation2 + $0x30] sm:$0xff] %v6044
          %6077 = vst [vmem:[#allocation2 + $0x38] sm:$0xff] %v6045
          %6078 = vst [vmem:[#allocation2 + $0x40] sm:$0xff] %v6046
          %6079 = vst [vmem:[#allocation2 + $0x48] sm:$0xff] %v6047
          %6080 = vst [vmem:[#allocation2 + $0x50] sm:$0xff] %v6048
          %6081 = vst [vmem:[#allocation2 + $0x58] sm:$0xff] %v6049
          %6082 = vst [vmem:[#allocation2 + $0x60] sm:$0xff] %v6050
          %6083 = vst [vmem:[#allocation2 + $0x68] sm:$0xff] %v6051
          %6084 = vst [vmem:[#allocation2 + $0x70] sm:$0xff] %v6052
          %6085 = vst [vmem:[#allocation2 + $0x78] sm:$0xff] %v6053
          %6086 = vst [vmem:[#allocation2 + $0x80] sm:$0xff] %v6054
          %6087 = vst [vmem:[#allocation2 + $0x88] sm:$0xff] %v6055
          %6088 = vst [vmem:[#allocation2 + $0x90] sm:$0xff] %v6056
          %6089 = vst [vmem:[#allocation2 + $0x98] sm:$0xff] %v6057
          %6090 = vst [vmem:[#allocation2 + $0xa0] sm:$0xff] %v6058
          %6091 = vst [vmem:[#allocation2 + $0xa8] sm:$0xff] %v6059
          %6092 = vst [vmem:[#allocation2 + $0xb0] sm:$0xff] %v6060
          %6093 = vst [vmem:[#allocation2 + $0xb8] sm:$0xff] %v6061
          %6094 = vst [vmem:[#allocation2 + $0xc0] sm:$0xff] %v6062
          %6095 = vst [vmem:[#allocation2 + $0xc8] sm:$0xff] %v6063
          %6096 = vst [vmem:[#allocation2 + $0xd0] sm:$0xff] %v6064
          %6097 = vst [vmem:[#allocation2 + $0xd8] sm:$0xff] %v6065
          %6098 = vst [vmem:[#allocation2 + $0xe0] sm:$0xff] %v6066
          %6099 = vst [vmem:[#allocation2 + $0xe8] sm:$0xff] %v6067
          %6100 = vst [vmem:[#allocation2 + $0xf0] sm:$0xff] %v6068
          %6101 = vst [vmem:[#allocation2 + $0xf8] sm:$0xff] %v6069
        $region64: #{value_network_forward.2} parent=43 // pred_fallthru
          _
        %p6102 = pneg %p5971
        // Predicated region
        $region65: #{value_network_forward.2} parent=43 // pred_check
          _
        $region66: #{value_network_forward.2} parent=43 // pred_check_branch
          %6104 = sbr.rel (%p5971) target = $region68
        $region67: #{value_network_forward.2} parent=43 // pred_region
          %v6105 = vmax.f32 %v5936, 0.0
          %v6106 = vmax.f32 %v5937, 0.0
          %v6107 = vmax.f32 %v5938, 0.0
          %v6108 = vmax.f32 %v5939, 0.0
          %v6109 = vmax.f32 %v5940, 0.0
          %v6110 = vmax.f32 %v5941, 0.0
          %v6111 = vmax.f32 %v5942, 0.0
          %v6112 = vmax.f32 %v5943, 0.0
          %v6113 = vmax.f32 %v5944, 0.0
          %v6114 = vmax.f32 %v5945, 0.0
          %v6115 = vmax.f32 %v5946, 0.0
          %v6116 = vmax.f32 %v5947, 0.0
          %v6117 = vmax.f32 %v5948, 0.0
          %v6118 = vmax.f32 %v5949, 0.0
          %v6119 = vmax.f32 %v5950, 0.0
          %v6120 = vmax.f32 %v5951, 0.0
          %v6121 = vmax.f32 %v5952, 0.0
          %v6122 = vmax.f32 %v5953, 0.0
          %v6123 = vmax.f32 %v5954, 0.0
          %v6124 = vmax.f32 %v5955, 0.0
          %v6125 = vmax.f32 %v5956, 0.0
          %v6126 = vmax.f32 %v5957, 0.0
          %v6127 = vmax.f32 %v5958, 0.0
          %v6128 = vmax.f32 %v5959, 0.0
          %v6129 = vmax.f32 %v5960, 0.0
          %v6130 = vmax.f32 %v5961, 0.0
          %v6131 = vmax.f32 %v5962, 0.0
          %v6132 = vmax.f32 %v5963, 0.0
          %v6133 = vmax.f32 %v5964, 0.0
          %v6134 = vmax.f32 %v5965, 0.0
          %v6135 = vmax.f32 %v5966, 0.0
          %v6136 = vmax.f32 %v5967, 0.0
          %6137 = vst [vmem:[#allocation2] sm:$0xff] %v6105
          %6138 = vst [vmem:[#allocation2 + $0x8] sm:$0xff] %v6106
          %6139 = vst [vmem:[#allocation2 + $0x10] sm:$0xff] %v6107
          %6140 = vst [vmem:[#allocation2 + $0x18] sm:$0xff] %v6108
          %6141 = vst [vmem:[#allocation2 + $0x20] sm:$0xff] %v6109
          %6142 = vst [vmem:[#allocation2 + $0x28] sm:$0xff] %v6110
          %6143 = vst [vmem:[#allocation2 + $0x30] sm:$0xff] %v6111
          %6144 = vst [vmem:[#allocation2 + $0x38] sm:$0xff] %v6112
          %6145 = vst [vmem:[#allocation2 + $0x40] sm:$0xff] %v6113
          %6146 = vst [vmem:[#allocation2 + $0x48] sm:$0xff] %v6114
          %6147 = vst [vmem:[#allocation2 + $0x50] sm:$0xff] %v6115
          %6148 = vst [vmem:[#allocation2 + $0x58] sm:$0xff] %v6116
          %6149 = vst [vmem:[#allocation2 + $0x60] sm:$0xff] %v6117
          %6150 = vst [vmem:[#allocation2 + $0x68] sm:$0xff] %v6118
          %6151 = vst [vmem:[#allocation2 + $0x70] sm:$0xff] %v6119
          %6152 = vst [vmem:[#allocation2 + $0x78] sm:$0xff] %v6120
          %6153 = vst [vmem:[#allocation2 + $0x80] sm:$0xff] %v6121
          %6154 = vst [vmem:[#allocation2 + $0x88] sm:$0xff] %v6122
          %6155 = vst [vmem:[#allocation2 + $0x90] sm:$0xff] %v6123
          %6156 = vst [vmem:[#allocation2 + $0x98] sm:$0xff] %v6124
          %6157 = vst [vmem:[#allocation2 + $0xa0] sm:$0xff] %v6125
          %6158 = vst [vmem:[#allocation2 + $0xa8] sm:$0xff] %v6126
          %6159 = vst [vmem:[#allocation2 + $0xb0] sm:$0xff] %v6127
          %6160 = vst [vmem:[#allocation2 + $0xb8] sm:$0xff] %v6128
          %6161 = vst [vmem:[#allocation2 + $0xc0] sm:$0xff] %v6129
          %6162 = vst [vmem:[#allocation2 + $0xc8] sm:$0xff] %v6130
          %6163 = vst [vmem:[#allocation2 + $0xd0] sm:$0xff] %v6131
          %6164 = vst [vmem:[#allocation2 + $0xd8] sm:$0xff] %v6132
          %6165 = vst [vmem:[#allocation2 + $0xe0] sm:$0xff] %v6133
          %6166 = vst [vmem:[#allocation2 + $0xe8] sm:$0xff] %v6134
          %6167 = vst [vmem:[#allocation2 + $0xf0] sm:$0xff] %v6135
          %6168 = vst [vmem:[#allocation2 + $0xf8] sm:$0xff] %v6136
        $region68: #{value_network_forward.2} parent=43 // pred_fallthru
          _
        %p6169 = scmp.eq.s32.totalorder %s30, 26
        // Predicated region
        $region69: #{value_network_forward.2} parent=43 // pred_check
          %p6170 = pneg %p6169
        $region70: #{value_network_forward.2} parent=43 // pred_check_branch
          %6172 = sbr.rel (%p6170) target = $region72
        $region71: #{value_network_forward.2} parent=43 // pred_region
          %v6173 = vld [vmem:[#allocation2] sm:$0xff]
          %v6174 = vld [vmem:[#allocation2 + $0x8] sm:$0xff]
          %v6175 = vld [vmem:[#allocation2 + $0x10] sm:$0xff]
          %v6176 = vld [vmem:[#allocation2 + $0x18] sm:$0xff]
          %v6177 = vld [vmem:[#allocation2 + $0x20] sm:$0xff]
          %v6178 = vld [vmem:[#allocation2 + $0x28] sm:$0xff]
          %v6179 = vld [vmem:[#allocation2 + $0x30] sm:$0xff]
          %v6180 = vld [vmem:[#allocation2 + $0x38] sm:$0xff]
          %v6181 = vld [vmem:[#allocation2 + $0x40] sm:$0xff]
          %v6182 = vld [vmem:[#allocation2 + $0x48] sm:$0xff]
          %v6183 = vld [vmem:[#allocation2 + $0x50] sm:$0xff]
          %v6184 = vld [vmem:[#allocation2 + $0x58] sm:$0xff]
          %v6185 = vld [vmem:[#allocation2 + $0x60] sm:$0xff]
          %v6186 = vld [vmem:[#allocation2 + $0x68] sm:$0xff]
          %v6187 = vld [vmem:[#allocation2 + $0x70] sm:$0xff]
          %v6188 = vld [vmem:[#allocation2 + $0x78] sm:$0xff]
          %v6189 = vld [vmem:[#allocation2 + $0x80] sm:$0xff]
          %v6190 = vld [vmem:[#allocation2 + $0x88] sm:$0xff]
          %v6191 = vld [vmem:[#allocation2 + $0x90] sm:$0xff]
          %v6192 = vld [vmem:[#allocation2 + $0x98] sm:$0xff]
          %v6193 = vld [vmem:[#allocation2 + $0xa0] sm:$0xff]
          %v6194 = vld [vmem:[#allocation2 + $0xa8] sm:$0xff]
          %v6195 = vld [vmem:[#allocation2 + $0xb0] sm:$0xff]
          %v6196 = vld [vmem:[#allocation2 + $0xb8] sm:$0xff]
          %v6197 = vld [vmem:[#allocation2 + $0xc0] sm:$0xff]
          %v6198 = vld [vmem:[#allocation2 + $0xc8] sm:$0xff]
          %v6199 = vld [vmem:[#allocation2 + $0xd0] sm:$0xff]
          %v6200 = vld [vmem:[#allocation2 + $0xd8] sm:$0xff]
          %v6201 = vld [vmem:[#allocation2 + $0xe0] sm:$0xff]
          %v6202 = vld [vmem:[#allocation2 + $0xe8] sm:$0xff]
          %v6203 = vld [vmem:[#allocation2 + $0xf0] sm:$0xff]
          %v6204 = vld [vmem:[#allocation2 + $0xf8] sm:$0xff]
          %v6205 = vld [vmem:[%s4] sm:$0xff]
          %v6206 = vld [vmem:[%s4 + $0x8] sm:$0xff]
          %v6207 = vld [vmem:[%s4 + $0x10] sm:$0xff]
          %v6208 = vld [vmem:[%s4 + $0x18] sm:$0xff]
          %v6209 = vld [vmem:[%s4 + $0x20] sm:$0xff]
          %v6210 = vld [vmem:[%s4 + $0x28] sm:$0xff]
          %v6211 = vld [vmem:[%s4 + $0x30] sm:$0xff]
          %v6212 = vld [vmem:[%s4 + $0x38] sm:$0xff]
          %v6213 = vld [vmem:[%s4 + $0x40] sm:$0xff]
          %v6214 = vld [vmem:[%s4 + $0x48] sm:$0xff]
          %v6215 = vld [vmem:[%s4 + $0x50] sm:$0xff]
          %v6216 = vld [vmem:[%s4 + $0x58] sm:$0xff]
          %v6217 = vld [vmem:[%s4 + $0x60] sm:$0xff]
          %v6218 = vld [vmem:[%s4 + $0x68] sm:$0xff]
          %v6219 = vld [vmem:[%s4 + $0x70] sm:$0xff]
          %v6220 = vld [vmem:[%s4 + $0x78] sm:$0xff]
          %v6221 = vld [vmem:[%s4 + $0x80] sm:$0xff]
          %v6222 = vld [vmem:[%s4 + $0x88] sm:$0xff]
          %v6223 = vld [vmem:[%s4 + $0x90] sm:$0xff]
          %v6224 = vld [vmem:[%s4 + $0x98] sm:$0xff]
          %v6225 = vld [vmem:[%s4 + $0xa0] sm:$0xff]
          %v6226 = vld [vmem:[%s4 + $0xa8] sm:$0xff]
          %v6227 = vld [vmem:[%s4 + $0xb0] sm:$0xff]
          %v6228 = vld [vmem:[%s4 + $0xb8] sm:$0xff]
          %v6229 = vld [vmem:[%s4 + $0xc0] sm:$0xff]
          %v6230 = vld [vmem:[%s4 + $0xc8] sm:$0xff]
          %v6231 = vld [vmem:[%s4 + $0xd0] sm:$0xff]
          %v6232 = vld [vmem:[%s4 + $0xd8] sm:$0xff]
          %v6233 = vld [vmem:[%s4 + $0xe0] sm:$0xff]
          %v6234 = vld [vmem:[%s4 + $0xe8] sm:$0xff]
          %v6235 = vld [vmem:[%s4 + $0xf0] sm:$0xff]
          %v6236 = vld [vmem:[%s4 + $0xf8] sm:$0xff]
          %v6237 = vld [vmem:[#allocation4] sm:$0x1]
          %v6239 = vlaneseq
          %v6240 = vshrl.u32 %v6239, 7
          %v6241 = vsub.s32 0, %v6240
          %v6242 = vrot.slane %v6237, %v6241
          %6244 = vmatprep.subr.mxu0 0.0
          %6245 = vmatpush1.msra.mxu0 %v6205
          %6246 = vmatprep.subr.mxu0 0.0
          %6247 = vmatpush1.msra.mxu0 %v6206
          %6248 = vmatprep.subr.mxu0 0.0
          %6249 = vmatpush1.msra.mxu0 %v6207
          %6250 = vmatprep.subr.mxu0 0.0
          %6251 = vmatpush1.msra.mxu0 %v6208
          %6252 = vmatprep.subr.mxu0 0.0
          %6253 = vmatpush1.msra.mxu0 %v6209
          %6254 = vmatprep.subr.mxu0 0.0
          %6255 = vmatpush1.msra.mxu0 %v6210
          %6256 = vmatprep.subr.mxu0 0.0
          %6257 = vmatpush1.msra.mxu0 %v6211
          %6258 = vmatprep.subr.mxu0 0.0
          %6259 = vmatpush1.msra.mxu0 %v6212
          %6260 = vmatprep.subr.mxu0 0.0
          %6261 = vmatpush1.msra.mxu0 %v6213
          %6262 = vmatprep.subr.mxu0 0.0
          %6263 = vmatpush1.msra.mxu0 %v6214
          %6264 = vmatprep.subr.mxu0 0.0
          %6265 = vmatpush1.msra.mxu0 %v6215
          %6266 = vmatprep.subr.mxu0 0.0
          %6267 = vmatpush1.msra.mxu0 %v6216
          %6268 = vmatprep.subr.mxu0 0.0
          %6269 = vmatpush1.msra.mxu0 %v6217
          %6270 = vmatprep.subr.mxu0 0.0
          %6271 = vmatpush1.msra.mxu0 %v6218
          %6272 = vmatprep.subr.mxu0 0.0
          %6273 = vmatpush1.msra.mxu0 %v6219
          %6274 = vmatprep.subr.mxu0 0.0
          %6275 = vmatpush1.msra.mxu0 %v6220
          %6276 = vmatprep.subr.mxu0 0.0
          %6277 = vmatpush1.msra.mxu0 %v6221
          %6278 = vmatprep.subr.mxu0 0.0
          %6279 = vmatpush1.msra.mxu0 %v6222
          %6280 = vmatprep.subr.mxu0 0.0
          %6281 = vmatpush1.msra.mxu0 %v6223
          %6282 = vmatprep.subr.mxu0 0.0
          %6283 = vmatpush1.msra.mxu0 %v6224
          %6284 = vmatprep.subr.mxu0 0.0
          %6285 = vmatpush1.msra.mxu0 %v6225
          %6286 = vmatprep.subr.mxu0 0.0
          %6287 = vmatpush1.msra.mxu0 %v6226
          %6288 = vmatprep.subr.mxu0 0.0
          %6289 = vmatpush1.msra.mxu0 %v6227
          %6290 = vmatprep.subr.mxu0 0.0
          %6291 = vmatpush1.msra.mxu0 %v6228
          %6292 = vmatprep.subr.mxu0 0.0
          %6293 = vmatpush1.msra.mxu0 %v6229
          %6294 = vmatprep.subr.mxu0 0.0
          %6295 = vmatpush1.msra.mxu0 %v6230
          %6296 = vmatprep.subr.mxu0 0.0
          %6297 = vmatpush1.msra.mxu0 %v6231
          %6298 = vmatprep.subr.mxu0 0.0
          %6299 = vmatpush1.msra.mxu0 %v6232
          %6300 = vmatprep.subr.mxu0 0.0
          %6301 = vmatpush1.msra.mxu0 %v6233
          %6302 = vmatprep.subr.mxu0 0.0
          %6303 = vmatpush1.msra.mxu0 %v6234
          %6304 = vmatprep.subr.mxu0 0.0
          %6305 = vmatpush1.msra.mxu0 %v6235
          %6306 = vmatprep.subr.mxu0 0.0
          %6307 = vmatpush1.msra.mxu0 %v6236
          %6308 = vmatprep.mubr.f32.mxu0 %v6174
          %6309 = vmatmul.mubr.f32.gmra.mrb[0].mxu0 %v6173
          %v6310 = vpop.f32.mrb[0].mxu0
          %v6311 = vadd.f32 %v6242, %v6310
          %v6312 = vpop.f32.mrb[0].mxu0
          %6313 = vmatprep.mubr.f32.mxu0 %v6176
          %6314 = vmatmul.mubr.f32.gmra.mrb[0].mxu0 %v6175
          %v6315 = vpop.f32.mrb[0].mxu0
          %v6316 = vadd.f32 %v6242, %v6315
          %v6317 = vpop.f32.mrb[0].mxu0
          %6318 = vmatprep.mubr.f32.mxu0 %v6178
          %6319 = vmatmul.mubr.f32.gmra.mrb[0].mxu0 %v6177
          %v6320 = vpop.f32.mrb[0].mxu0
          %v6321 = vadd.f32 %v6242, %v6320
          %v6322 = vpop.f32.mrb[0].mxu0
          %6323 = vmatprep.mubr.f32.mxu0 %v6180
          %6324 = vmatmul.mubr.f32.gmra.mrb[0].mxu0 %v6179
          %v6325 = vpop.f32.mrb[0].mxu0
          %v6326 = vadd.f32 %v6242, %v6325
          %v6327 = vpop.f32.mrb[0].mxu0
          %6328 = vmatprep.mubr.f32.mxu0 %v6182
          %6329 = vmatmul.mubr.f32.gmra.mrb[0].mxu0 %v6181
          %v6330 = vpop.f32.mrb[0].mxu0
          %v6331 = vadd.f32 %v6242, %v6330
          %v6332 = vpop.f32.mrb[0].mxu0
          %6333 = vmatprep.mubr.f32.mxu0 %v6184
          %6334 = vmatmul.mubr.f32.gmra.mrb[0].mxu0 %v6183
          %v6335 = vpop.f32.mrb[0].mxu0
          %v6336 = vadd.f32 %v6242, %v6335
          %v6337 = vpop.f32.mrb[0].mxu0
          %6338 = vmatprep.mubr.f32.mxu0 %v6186
          %6339 = vmatmul.mubr.f32.gmra.mrb[0].mxu0 %v6185
          %v6340 = vpop.f32.mrb[0].mxu0
          %v6341 = vadd.f32 %v6242, %v6340
          %v6342 = vpop.f32.mrb[0].mxu0
          %6343 = vmatprep.mubr.f32.mxu0 %v6188
          %6344 = vmatmul.mubr.f32.gmra.mrb[0].mxu0 %v6187
          %v6345 = vpop.f32.mrb[0].mxu0
          %v6346 = vadd.f32 %v6242, %v6345
          %v6347 = vpop.f32.mrb[0].mxu0
          %6348 = vmatprep.mubr.f32.mxu0 %v6190
          %6349 = vmatmul.mubr.f32.gmra.mrb[0].mxu0 %v6189
          %v6350 = vpop.f32.mrb[0].mxu0
          %v6351 = vadd.f32 %v6242, %v6350
          %v6352 = vpop.f32.mrb[0].mxu0
          %6353 = vmatprep.mubr.f32.mxu0 %v6192
          %6354 = vmatmul.mubr.f32.gmra.mrb[0].mxu0 %v6191
          %v6355 = vpop.f32.mrb[0].mxu0
          %v6356 = vadd.f32 %v6242, %v6355
          %v6357 = vpop.f32.mrb[0].mxu0
          %6358 = vmatprep.mubr.f32.mxu0 %v6194
          %6359 = vmatmul.mubr.f32.gmra.mrb[0].mxu0 %v6193
          %v6360 = vpop.f32.mrb[0].mxu0
          %v6361 = vadd.f32 %v6242, %v6360
          %v6362 = vpop.f32.mrb[0].mxu0
          %6363 = vmatprep.mubr.f32.mxu0 %v6196
          %6364 = vmatmul.mubr.f32.gmra.mrb[0].mxu0 %v6195
          %v6365 = vpop.f32.mrb[0].mxu0
          %v6366 = vadd.f32 %v6242, %v6365
          %v6367 = vpop.f32.mrb[0].mxu0
          %6368 = vmatprep.mubr.f32.mxu0 %v6198
          %6369 = vmatmul.mubr.f32.gmra.mrb[0].mxu0 %v6197
          %v6370 = vpop.f32.mrb[0].mxu0
          %v6371 = vadd.f32 %v6242, %v6370
          %v6372 = vpop.f32.mrb[0].mxu0
          %6373 = vmatprep.mubr.f32.mxu0 %v6200
          %6374 = vmatmul.mubr.f32.gmra.mrb[0].mxu0 %v6199
          %v6375 = vpop.f32.mrb[0].mxu0
          %v6376 = vadd.f32 %v6242, %v6375
          %v6377 = vpop.f32.mrb[0].mxu0
          %6378 = vmatprep.mubr.f32.mxu0 %v6202
          %6379 = vmatmul.mubr.f32.gmra.mrb[0].mxu0 %v6201
          %v6380 = vpop.f32.mrb[0].mxu0
          %v6381 = vadd.f32 %v6242, %v6380
          %v6382 = vpop.f32.mrb[0].mxu0
          %6383 = vmatprep.mubr.f32.mxu0 %v6204
          %6384 = vmatmul.mubr.f32.gmra.mrb[0].mxu0 %v6203
          %v6385 = vpop.f32.mrb[0].mxu0
          %v6386 = vadd.f32 %v6242, %v6385
          %v6387 = vpop.f32.mrb[0].mxu0
          %6388 = vdwg.mxu0
          %v6389 = vmax.f32 %v6311, 0.0
          %v6390 = vmax.f32 %v6316, 0.0
          %v6391 = vmax.f32 %v6321, 0.0
          %v6392 = vmax.f32 %v6326, 0.0
          %v6393 = vmax.f32 %v6331, 0.0
          %v6394 = vmax.f32 %v6336, 0.0
          %v6395 = vmax.f32 %v6341, 0.0
          %v6396 = vmax.f32 %v6346, 0.0
          %v6397 = vmax.f32 %v6351, 0.0
          %v6398 = vmax.f32 %v6356, 0.0
          %v6399 = vmax.f32 %v6361, 0.0
          %v6400 = vmax.f32 %v6366, 0.0
          %v6401 = vmax.f32 %v6371, 0.0
          %v6402 = vmax.f32 %v6376, 0.0
          %v6403 = vmax.f32 %v6381, 0.0
          %v6404 = vmax.f32 %v6386, 0.0
          %vm6405 = vcmask 7168
          %6406 = vst.msk [vmem:[%s345] sm:$0xff] %vm6405, %v6389
          %6407 = vst.msk [vmem:[%s345 + $0x8] sm:$0xff] %vm6405, %v6390
          %6408 = vst.msk [vmem:[%s345 + $0x10] sm:$0xff] %vm6405, %v6391
          %6409 = vst.msk [vmem:[%s345 + $0x18] sm:$0xff] %vm6405, %v6392
          %6410 = vst.msk [vmem:[%s345 + $0x20] sm:$0xff] %vm6405, %v6393
          %6411 = vst.msk [vmem:[%s345 + $0x28] sm:$0xff] %vm6405, %v6394
          %6412 = vst.msk [vmem:[%s345 + $0x30] sm:$0xff] %vm6405, %v6395
          %6413 = vst.msk [vmem:[%s345 + $0x38] sm:$0xff] %vm6405, %v6396
          %6414 = vst.msk [vmem:[%s345 + $0x40] sm:$0xff] %vm6405, %v6397
          %6415 = vst.msk [vmem:[%s345 + $0x48] sm:$0xff] %vm6405, %v6398
          %6416 = vst.msk [vmem:[%s345 + $0x50] sm:$0xff] %vm6405, %v6399
          %6417 = vst.msk [vmem:[%s345 + $0x58] sm:$0xff] %vm6405, %v6400
          %6418 = vst.msk [vmem:[%s345 + $0x60] sm:$0xff] %vm6405, %v6401
          %6419 = vst.msk [vmem:[%s345 + $0x68] sm:$0xff] %vm6405, %v6402
          %6420 = vst.msk [vmem:[%s345 + $0x70] sm:$0xff] %vm6405, %v6403
          %6421 = vst.msk [vmem:[%s345 + $0x78] sm:$0xff] %vm6405, %v6404
        $region72: #{value_network_forward.2} parent=43 // pred_fallthru
          _
        %s6422 = smul.u32 16, %s29
        %p6423 = scmp.lt.s32.totalorder %s6422, 31
        %s6424 = scalar_select %p6423, %s6422, 31
        %s6425 = smul.addr %s6424, 8
        %s6426 = scalar_lea.vmem %s6, %s6425
        // Predicated region
        $region73: #{value_network_forward.2} parent=43 // pred_check
          %p6427 = pneg %p196
        $region74: #{value_network_forward.2} parent=43 // pred_check_branch
          %6429 = sbr.rel (%p6427) target = $region76
        $region75: #{value_network_forward.2} parent=43 // pred_region
          %s6430 = smul.u32 16, %s29
        $region76: #{value_network_forward.2} parent=43 // pred_fallthru
          _
      $region44: #{value_network_forward.2} parent=5 // pred_fallthru
        _
      %p6431 = scmp.le.s32.totalorder 2, %s20
      // Predicated region
      $region77: #{value_network_forward.2} parent=5 // pred_check
        %p6432 = pneg %p6431
      $region78: #{value_network_forward.2} parent=5 // pred_check_branch
        %6434 = sbr.rel (%p6432) target = $region80
      $region79: #{value_network_forward.2} parent=5 // pred_region
        %s6435 = ssub.s32 %s20, 2
        // Predicated region
        $region81: #{value_network_forward.2} parent=79 // pred_check
          %p6436 = pneg %p202
        $region82: #{value_network_forward.2} parent=79 // pred_check_branch
          %6438 = sbr.rel (%p6436) target = $region84
        $region83: #{value_network_forward.2} parent=79 // pred_region
          %s6439 = smul.u32 16, %s31
          %p6440 = scmp.lt.s32.totalorder %s6439, 31
          %s6441 = scalar_select %p6440, %s6439, 31
          %s6442 = smul.addr %s6441, 8
          %s6443 = scalar_lea.vmem %s6, %s6442
        $region84: #{value_network_forward.2} parent=79 // pred_fallthru
          _
      $region80: #{value_network_forward.2} parent=5 // pred_fallthru
        _
    $region6: #{value_network_forward.2} parent=1 // loop_footer
      %s24 = sadd.s32 1, %s20
    $region7: #{value_network_forward.2} parent=1 // loop_footer_branch
      %19 = sbr.rel target = $region3
    $region8: #{value_network_forward.2} parent=1 // loop_exit
      _
    %6444 = vsyncpa [#allocation6], 1
    %s6445 = scalar_lea.sflag [#allocation6], 1
    %6446 = vsyncpa %s6445, 1
    %6447 = vsyncpa [#allocation8], 1
    %s6448 = scalar_lea.sflag [#allocation8], 1
    %6449 = vsyncpa %s6448, 1

</llo_original>
